<compile_context>
chip_gen: v7x
topology: tpu7x:2x2x1
jax: 0.10.0
libtpu: 0.0.40
codegen_flags: <defaults>
</compile_context>

<pallas_src>
import jax
import jax.numpy as jnp
from jax.experimental import pallas as pl
from jax.experimental.pallas import tpu as pltpu


def _round_up(x, m):
    return ((x + m - 1) // m) * m


_COMPILER_PARAMS = pltpu.CompilerParams(
    dimension_semantics=("parallel",),
    vmem_limit_bytes=32 * 1024 * 1024,
)


# ---------------- Pallas kernels ----------------

def _mm_bias_kernel(x_ref, w_ref, b_ref, o_ref):
    # (tm, K) bf16 @ (K, Cop) bf16 -> f32 accumulate, + bias, cast to output dtype.
    acc = jnp.dot(x_ref[...], w_ref[...], preferred_element_type=jnp.float32)
    o_ref[...] = (acc + b_ref[...]).astype(o_ref.dtype)


def _mm_bias_stats_kernel(x_ref, w_ref, b_ref, y_ref, stats_ref):
    # Pass 1 of 2-pass BatchNorm: matmul + bias, plus per-tile per-channel
    # sum (row 0) and sum-of-squares (row 1) written to a lane-dense stats block.
    y = jnp.dot(x_ref[...], w_ref[...], preferred_element_type=jnp.float32) + b_ref[...]
    y_ref[...] = y
    s = jnp.sum(y, axis=0, keepdims=True)            # (1, Cop)
    sq = jnp.sum(y * y, axis=0, keepdims=True)       # (1, Cop)
    row = jax.lax.broadcasted_iota(jnp.int32, (8, y.shape[1]), 0)
    stats_ref[0] = jnp.where(row == 0, s, jnp.where(row == 1, sq, 0.0))


def _affine_relu_kernel(y_ref, scale_ref, shift_ref, o_ref):
    # Pass 2: y * scale + shift, ReLU.
    o_ref[...] = jnp.maximum(y_ref[...] * scale_ref[...] + shift_ref[...],
                             0.0).astype(o_ref.dtype)


# ---------------- Tiled pallas_call wrappers ----------------

def _tile_rows(M, tm):
    tm_eff = min(tm, _round_up(M, 8))
    grid = (M + tm_eff - 1) // tm_eff
    return tm_eff, grid, grid * tm_eff


def matmul_bias(x, w, b, out_dtype, tm=512):
    """Row-tiled (M, K) @ (K, Cop) + b.  x/w: bf16, b: f32 (1, Cop)."""
    M, K = x.shape
    Cop = w.shape[1]
    tm_eff, grid, Mp = _tile_rows(M, tm)
    if Mp != M:
        x = jnp.pad(x, ((0, Mp - M), (0, 0)))
    out = pl.pallas_call(
        _mm_bias_kernel,
        out_shape=jax.ShapeDtypeStruct((Mp, Cop), out_dtype),
        grid=(grid,),
        in_specs=[pl.BlockSpec((tm_eff, K), lambda i: (i, 0)),
                  pl.BlockSpec((K, Cop), lambda i: (0, 0)),
                  pl.BlockSpec((1, Cop), lambda i: (0, 0))],
        out_specs=pl.BlockSpec((tm_eff, Cop), lambda i: (i, 0)),
        compiler_params=_COMPILER_PARAMS,
    )(x, w, b)
    return out[:M]


def _matmul_bias_stats(x, w, b, tm_eff, grid):
    Mp, K = x.shape
    Cop = w.shape[1]
    return pl.pallas_call(
        _mm_bias_stats_kernel,
        out_shape=(jax.ShapeDtypeStruct((Mp, Cop), jnp.float32),
                   jax.ShapeDtypeStruct((grid, 8, Cop), jnp.float32)),
        grid=(grid,),
        in_specs=[pl.BlockSpec((tm_eff, K), lambda i: (i, 0)),
                  pl.BlockSpec((K, Cop), lambda i: (0, 0)),
                  pl.BlockSpec((1, Cop), lambda i: (0, 0))],
        out_specs=(pl.BlockSpec((tm_eff, Cop), lambda i: (i, 0)),
                   pl.BlockSpec((1, 8, Cop), lambda i: (i, 0, 0))),
        compiler_params=_COMPILER_PARAMS,
    )(x, w, b)


def _affine_relu(y, scale, shift, out_dtype, tm_eff, grid):
    Mp, Cop = y.shape
    return pl.pallas_call(
        _affine_relu_kernel,
        out_shape=jax.ShapeDtypeStruct((Mp, Cop), out_dtype),
        grid=(grid,),
        in_specs=[pl.BlockSpec((tm_eff, Cop), lambda i: (i, 0)),
                  pl.BlockSpec((1, Cop), lambda i: (0, 0)),
                  pl.BlockSpec((1, Cop), lambda i: (0, 0))],
        out_specs=pl.BlockSpec((tm_eff, Cop), lambda i: (i, 0)),
        compiler_params=_COMPILER_PARAMS,
    )(y, scale, shift)


# ---------------- Layers ----------------

def conv3x3_bn_relu(x_nhwc, w_oihw, b, gamma, beta, out_dtype, tm=512):
    """3x3 conv (pad=1) + BatchNorm (training-mode batch stats) + ReLU.

    x_nhwc: bf16 NHWC activations. Weights/bias/gamma/beta: f32, PyTorch layouts.
    """
    N, H, W, Ci = x_nhwc.shape
    Co = w_oihw.shape[0]
    Cop = _round_up(Co, 128)          # lane-dense output columns
    K = 9 * Ci
    M = N * H * W

    # im2col in bf16 (XLA glue).  Column layout (ky, kx, ci).
    # TODO(synk): fuse halo'd im2col into the matmul kernel to avoid the 9x HBM expansion.
    xpad = jnp.pad(x_nhwc, ((0, 0), (1, 1), (1, 1), (0, 0)))
    patches = jnp.concatenate(
        [xpad[:, ky:ky + H, kx:kx + W, :] for ky in range(3) for kx in range(3)],
        axis=-1).reshape(M, K)

    tm_eff, grid, Mp = _tile_rows(M, tm)
    if Mp != M:
        patches = jnp.pad(patches, ((0, Mp - M), (0, 0)))

    # PyTorch weight (Co, Ci, 3, 3) -> (ky, kx, ci, co) -> (K, Co) -> pad lanes to Cop.
    wmat = jnp.transpose(w_oihw, (2, 3, 1, 0)).reshape(K, Co)
    wmat = jnp.pad(wmat, ((0, 0), (0, Cop - Co))).astype(jnp.bfloat16)
    bp = jnp.pad(b, (0, Cop - Co)).astype(jnp.float32)
    gp = jnp.pad(gamma, (0, Cop - Co)).astype(jnp.float32)
    betap = jnp.pad(beta, (0, Cop - Co)).astype(jnp.float32)

    # Pass 1: tiled matmul + bias, per-tile channel sums for BN.
    y, stats = _matmul_bias_stats(patches, wmat, bp.reshape(1, Cop), tm_eff, grid)

    # Exact full-batch stats: zero pad rows produce y == bias, subtract their contribution.
    n_pad = Mp - M
    tot_sum = jnp.sum(stats[:, 0, :], axis=0) - n_pad * bp
    tot_sq = jnp.sum(stats[:, 1, :], axis=0) - n_pad * bp * bp
    mean = tot_sum / M
    var = jnp.maximum(tot_sq / M - mean * mean, 0.0)     # biased variance (training mode)
    inv = jax.lax.rsqrt(var + 1e-5)
    scale = (gp * inv).reshape(1, Cop)
    shift = (betap - mean * gp * inv).reshape(1, Cop)

    # Pass 2: tiled affine + ReLU.
    out = _affine_relu(y, scale, shift, out_dtype, tm_eff, grid)
    return out[:M, :Co].reshape(N, H, W, Co)


def up_forward(params, x1_nchw, x2_nchw, tm=512):
    """Forward of Up(in_channels, out_channels, bilinear=False). NCHW in / NCHW out."""
    x1 = jnp.transpose(x1_nchw, (0, 2, 3, 1)).astype(jnp.bfloat16)   # NHWC
    x2 = jnp.transpose(x2_nchw, (0, 2, 3, 1)).astype(jnp.bfloat16)   # NHWC
    N, H1, W1, Cin = x1.shape

    # --- ConvTranspose2d(Cin, Cin//2, kernel_size=2, stride=2) as one tiled matmul ---
    wt = params["up_w"]                                  # (Cin, Cout_up, 2, 2)
    Cout_up = wt.shape[1]
    C4 = 4 * Cout_up
    C4p = _round_up(C4, 128)
    # (Cin, Cout, 2, 2) -> (Cin, ki, kj, co) -> (Cin, 4*Cout); column layout (ki, kj, co)
    wmat = jnp.transpose(wt, (0, 2, 3, 1)).reshape(Cin, C4)
    wmat = jnp.pad(wmat, ((0, 0), (0, C4p - C4))).astype(jnp.bfloat16)
    b4 = jnp.pad(jnp.tile(params["up_b"], 4),
                 (0, C4p - C4)).reshape(1, C4p).astype(jnp.float32)

    M = N * H1 * W1
    y = matmul_bias(x1.reshape(M, Cin), wmat, b4, jnp.bfloat16, tm=tm)   # (M, C4p)
    y = y[:, :C4].reshape(N, H1, W1, 2, 2, Cout_up)
    y = jnp.transpose(y, (0, 1, 3, 2, 4, 5)).reshape(N, 2 * H1, 2 * W1, Cout_up)

    # --- F.pad to skip-connection size, then torch.cat([x2, x1], dim=channels) ---
    diffY = x2.shape[1] - y.shape[1]
    diffX = x2.shape[2] - y.shape[2]
    y = jnp.pad(y, ((0, 0),
                    (diffY // 2, diffY - diffY // 2),
                    (diffX // 2, diffX - diffX // 2),
                    (0, 0)))
    x = jnp.concatenate([x2, y], axis=-1)                # x2 channels first, then upsampled x1

    # --- DoubleConv: (Conv3x3 -> BN -> ReLU) x 2 ---
    x = conv3x3_bn_relu(x, params["c1_w"], params["c1_b"],
                        params["bn1_g"], params["bn1_b"],
                        out_dtype=jnp.bfloat16, tm=tm)
    x = conv3x3_bn_relu(x, params["c2_w"], params["c2_b"],
                        params["bn2_g"], params["bn2_b"],
                        out_dtype=jnp.float32, tm=tm)
    return jnp.transpose(x, (0, 3, 1, 2))                # back to NCHW


if __name__ == "__main__":
    key = jax.random.PRNGKey(0)
    keys = jax.random.split(key, 12)

    in_channels, out_channels = 8, 4
    N, H1, W1 = 2, 8, 8            # x1: low-res decoder feature map
    H2, W2 = 2 * H1, 2 * W1        # x2: encoder skip connection

    params = {
        # ConvTranspose2d weight: (Cin, Cin//2, 2, 2)
        "up_w": 0.1 * jax.random.normal(keys[0], (in_channels, in_channels // 2, 2, 2), jnp.float32),
        "up_b": 0.1 * jax.random.normal(keys[1], (in_channels // 2,), jnp.float32),
        # DoubleConv conv1: (out, in, 3, 3)
        "c1_w": 0.1 * jax.random.normal(keys[2], (out_channels, in_channels, 3, 3), jnp.float32),
        "c1_b": 0.1 * jax.random.normal(keys[3], (out_channels,), jnp.float32),
        "bn1_g": 1.0 + 0.1 * jax.random.normal(keys[4], (out_channels,), jnp.float32),
        "bn1_b": 0.1 * jax.random.normal(keys[5], (out_channels,), jnp.float32),
        # DoubleConv conv2: (out, out, 3, 3)
        "c2_w": 0.1 * jax.random.normal(keys[6], (out_channels, out_channels, 3, 3), jnp.float32),
        "c2_b": 0.1 * jax.random.normal(keys[7], (out_channels,), jnp.float32),
        "bn2_g": 1.0 + 0.1 * jax.random.normal(keys[8], (out_channels,), jnp.float32),
        "bn2_b": 0.1 * jax.random.normal(keys[9], (out_channels,), jnp.float32),
    }

    # PyTorch-convention NCHW inputs
    x1 = jax.random.normal(keys[10], (N, in_channels, H1, W1), jnp.float32)
    x2 = jax.random.normal(keys[11], (N, in_channels // 2, H2, W2), jnp.float32)

    out = jax.jit(up_forward)(params, x1, x2)
    out = jax.block_until_ready(out)
    assert out.shape == (N, out_channels, H2, W2), out.shape
    assert bool(jnp.all(jnp.isfinite(out)))
    print("KERNEL_OK")
</pallas_src>

<mosaic_0001>
module attributes {stable_mosaic.version = 11 : i64} {
  func.func @_mm_bias_kernel(%arg0: i32, %arg1: memref<128x8xbf16, #tpu.memory_space<vmem>>, %arg2: memref<8x128xbf16, #tpu.memory_space<vmem>>, %arg3: memref<1x128xf32, #tpu.memory_space<vmem>>, %arg4: memref<128x128xbf16, #tpu.memory_space<vmem>>) attributes {dimension_semantics = [#tpu.dimension_semantics<parallel>], iteration_bounds = array<i64: 1>, scalar_prefetch = 0 : i64, scratch_operands = 0 : i64, tpu.core_type = #tpu.core_type<tc>, window_params = [{transform_indices = @transform_0, window_bounds = array<i64: 128, 8>}, {pipeline_mode = #tpu.pipeline_mode<synchronous>, transform_indices = @transform_1, window_bounds = array<i64: 8, 128>}, {pipeline_mode = #tpu.pipeline_mode<synchronous>, transform_indices = @transform_2, window_bounds = array<i64: 1, 128>}, {transform_indices = @transform_3, window_bounds = array<i64: 128, 128>}]} {
    %c0 = arith.constant 0 : index
    %c0_0 = arith.constant 0 : index
    %0 = vector.load %arg1[%c0, %c0_0] : memref<128x8xbf16, #tpu.memory_space<vmem>>, vector<128x8xbf16>
    %c0_1 = arith.constant 0 : index
    %c0_2 = arith.constant 0 : index
    %1 = vector.load %arg2[%c0_1, %c0_2] : memref<8x128xbf16, #tpu.memory_space<vmem>>, vector<8x128xbf16>
    %cst = arith.constant dense<0.000000e+00> : vector<128x128xf32>
    %2 = tpu.matmul %0, %1, %cst {dimension_numbers = #tpu.dot_dimension_numbers<[1], [0], [0], [1], [0, 0, 1, 1], [], []>} : vector<128x8xbf16>, vector<8x128xbf16>, vector<128x128xf32> -> vector<128x128xf32>
    %c0_3 = arith.constant 0 : index
    %c0_4 = arith.constant 0 : index
    %3 = vector.load %arg3[%c0_3, %c0_4] : memref<1x128xf32, #tpu.memory_space<vmem>>, vector<1x128xf32>
    %4 = vector.broadcast %3 : vector<1x128xf32> to vector<128x128xf32>
    %5 = arith.addf %2, %4 : vector<128x128xf32>
    %6 = arith.truncf %5 : vector<128x128xf32> to vector<128x128xbf16>
    %c0_5 = arith.constant 0 : index
    %c0_6 = arith.constant 0 : index
    %7 = vector.load %arg4[%c0_5, %c0_6] : memref<128x128xbf16, #tpu.memory_space<vmem>>, vector<128x128xbf16>
    tpu.vector_store %arg4[%c0_5, %c0_6], %6 {strides = array<i32>} : memref<128x128xbf16, #tpu.memory_space<vmem>>, vector<128x128xbf16>,
    return
  }
  func.func @transform_0(%arg0: i32) -> (i32, i32) {
    %c0_i32 = arith.constant 0 : i32
    %c0_i32_0 = arith.constant 0 : i32
    return %arg0, %c0_i32 : i32, i32
  }
  func.func @transform_1(%arg0: i32) -> (i32, i32) {
    %c0_i32 = arith.constant 0 : i32
    %c0_i32_0 = arith.constant 0 : i32
    %c0_i32_1 = arith.constant 0 : i32
    return %c0_i32, %c0_i32_0 : i32, i32
  }
  func.func @transform_2(%arg0: i32) -> (i32, i32) {
    %c0_i32 = arith.constant 0 : i32
    %c0_i32_0 = arith.constant 0 : i32
    %c0_i32_1 = arith.constant 0 : i32
    return %c0_i32, %c0_i32_0 : i32, i32
  }
  func.func @transform_3(%arg0: i32) -> (i32, i32) {
    %c0_i32 = arith.constant 0 : i32
    %c0_i32_0 = arith.constant 0 : i32
    return %arg0, %c0_i32 : i32, i32
  }
}

module attributes {stable_mosaic.version = 11 : i64} {
  func.func @_mm_bias_stats_kernel(%arg0: i32, %arg1: memref<512x72xbf16, #tpu.memory_space<vmem>>, %arg2: memref<72x128xbf16, #tpu.memory_space<vmem>>, %arg3: memref<1x128xf32, #tpu.memory_space<vmem>>, %arg4: memref<512x128xf32, #tpu.memory_space<vmem>>, %arg5: memref<1x8x128xf32, #tpu.memory_space<vmem>>) attributes {dimension_semantics = [#tpu.dimension_semantics<parallel>], iteration_bounds = array<i64: 1>, scalar_prefetch = 0 : i64, scratch_operands = 0 : i64, tpu.core_type = #tpu.core_type<tc>, window_params = [{transform_indices = @transform_0, window_bounds = array<i64: 512, 72>}, {pipeline_mode = #tpu.pipeline_mode<synchronous>, transform_indices = @transform_1, window_bounds = array<i64: 72, 128>}, {pipeline_mode = #tpu.pipeline_mode<synchronous>, transform_indices = @transform_2, window_bounds = array<i64: 1, 128>}, {transform_indices = @transform_3, window_bounds = array<i64: 512, 128>}, {transform_indices = @transform_4, window_bounds = array<i64: 1, 8, 128>}]} {
    %c0 = arith.constant 0 : index
    %c0_0 = arith.constant 0 : index
    %0 = vector.load %arg1[%c0, %c0_0] : memref<512x72xbf16, #tpu.memory_space<vmem>>, vector<512x72xbf16>
    %c0_1 = arith.constant 0 : index
    %c0_2 = arith.constant 0 : index
    %1 = vector.load %arg2[%c0_1, %c0_2] : memref<72x128xbf16, #tpu.memory_space<vmem>>, vector<72x128xbf16>
    %cst = arith.constant dense<0.000000e+00> : vector<512x128xf32>
    %2 = tpu.matmul %0, %1, %cst {dimension_numbers = #tpu.dot_dimension_numbers<[1], [0], [0], [1], [0, 0, 1, 1], [], []>} : vector<512x72xbf16>, vector<72x128xbf16>, vector<512x128xf32> -> vector<512x128xf32>
    %c0_3 = arith.constant 0 : index
    %c0_4 = arith.constant 0 : index
    %3 = vector.load %arg3[%c0_3, %c0_4] : memref<1x128xf32, #tpu.memory_space<vmem>>, vector<1x128xf32>
    %4 = vector.broadcast %3 : vector<1x128xf32> to vector<512x128xf32>
    %5 = arith.addf %2, %4 : vector<512x128xf32>
    %c0_5 = arith.constant 0 : index
    %c0_6 = arith.constant 0 : index
    %6 = vector.load %arg4[%c0_5, %c0_6] : memref<512x128xf32, #tpu.memory_space<vmem>>, vector<512x128xf32>
    tpu.vector_store %arg4[%c0_5, %c0_6], %5 {strides = array<i32>} : memref<512x128xf32, #tpu.memory_space<vmem>>, vector<512x128xf32>,
    %cst_7 = arith.constant dense<0.000000e+00> : vector<128xf32>
    %7 = vector.multi_reduction <add>, %5, %cst_7 [0] : vector<512x128xf32> to vector<128xf32>
    %8 = vector.shape_cast %7 : vector<128xf32> to vector<1x128xf32>
    %9 = arith.mulf %5, %5 : vector<512x128xf32>
    %cst_8 = arith.constant dense<0.000000e+00> : vector<128xf32>
    %10 = vector.multi_reduction <add>, %9, %cst_8 [0] : vector<512x128xf32> to vector<128xf32>
    %11 = vector.shape_cast %10 : vector<128xf32> to vector<1x128xf32>
    %12 = tpu.iota {dimensions = array<i32: 0>} : vector<8x128xi32>
    %c0_i32 = arith.constant 0 : i32
    %13 = vector.broadcast %c0_i32 : i32 to vector<8x128xi32>
    %14 = arith.cmpi eq, %12, %13 : vector<8x128xi32>
    %c1_i32 = arith.constant 1 : i32
    %15 = vector.broadcast %c1_i32 : i32 to vector<8x128xi32>
    %16 = arith.cmpi eq, %12, %15 : vector<8x128xi32>
    %cst_9 = arith.constant 0.000000e+00 : f32
    %17 = vector.shape_cast %11 : vector<1x128xf32> to vector<1x128xf32>
    %18 = vector.broadcast %17 : vector<1x128xf32> to vector<8x128xf32>
    %19 = vector.broadcast %cst_9 : f32 to vector<8x128xf32>
    %20 = arith.select %16, %18, %19 : vector<8x128xi1>, vector<8x128xf32>
    %21 = vector.shape_cast %8 : vector<1x128xf32> to vector<1x128xf32>
    %22 = vector.broadcast %21 : vector<1x128xf32> to vector<8x128xf32>
    %23 = arith.select %14, %22, %20 : vector<8x128xi1>, vector<8x128xf32>
    %c0_10 = arith.constant 0 : index
    %c0_11 = arith.constant 0 : index
    %c0_12 = arith.constant 0 : index
    %24 = vector.load %arg5[%c0_10, %c0_11, %c0_12] : memref<1x8x128xf32, #tpu.memory_space<vmem>>, vector<1x8x128xf32>
    %25 = vector.shape_cast %24 : vector<1x8x128xf32> to vector<8x128xf32>
    %26 = vector.shape_cast %23 : vector<8x128xf32> to vector<1x8x128xf32>
    tpu.vector_store %arg5[%c0_10, %c0_11, %c0_12], %26 {strides = array<i32>} : memref<1x8x128xf32, #tpu.memory_space<vmem>>, vector<1x8x128xf32>,
    return
  }
  func.func @transform_0(%arg0: i32) -> (i32, i32) {
    %c0_i32 = arith.constant 0 : i32
    %c0_i32_0 = arith.constant 0 : i32
    return %arg0, %c0_i32 : i32, i32
  }
  func.func @transform_1(%arg0: i32) -> (i32, i32) {
    %c0_i32 = arith.constant 0 : i32
    %c0_i32_0 = arith.constant 0 : i32
    %c0_i32_1 = arith.constant 0 : i32
    return %c0_i32, %c0_i32_0 : i32, i32
  }
  func.func @transform_2(%arg0: i32) -> (i32, i32) {
    %c0_i32 = arith.constant 0 : i32
    %c0_i32_0 = arith.constant 0 : i32
    %c0_i32_1 = arith.constant 0 : i32
    return %c0_i32, %c0_i32_0 : i32, i32
  }
  func.func @transform_3(%arg0: i32) -> (i32, i32) {
    %c0_i32 = arith.constant 0 : i32
    %c0_i32_0 = arith.constant 0 : i32
    return %arg0, %c0_i32 : i32, i32
  }
  func.func @transform_4(%arg0: i32) -> (i32, i32, i32) {
    %c0_i32 = arith.constant 0 : i32
    %c0_i32_0 = arith.constant 0 : i32
    %c0_i32_1 = arith.constant 0 : i32
    return %arg0, %c0_i32, %c0_i32_0 : i32, i32, i32
  }
}

module attributes {stable_mosaic.version = 11 : i64} {
  func.func @_affine_relu_kernel(%arg0: i32, %arg1: memref<512x128xf32, #tpu.memory_space<vmem>>, %arg2: memref<1x128xf32, #tpu.memory_space<vmem>>, %arg3: memref<1x128xf32, #tpu.memory_space<vmem>>, %arg4: memref<512x128xbf16, #tpu.memory_space<vmem>>) attributes {dimension_semantics = [#tpu.dimension_semantics<parallel>], iteration_bounds = array<i64: 1>, scalar_prefetch = 0 : i64, scratch_operands = 0 : i64, tpu.core_type = #tpu.core_type<tc>, window_params = [{transform_indices = @transform_0, window_bounds = array<i64: 512, 128>}, {pipeline_mode = #tpu.pipeline_mode<synchronous>, transform_indices = @transform_1, window_bounds = array<i64: 1, 128>}, {pipeline_mode = #tpu.pipeline_mode<synchronous>, transform_indices = @transform_2, window_bounds = array<i64: 1, 128>}, {transform_indices = @transform_3, window_bounds = array<i64: 512, 128>}]} {
    %c0 = arith.constant 0 : index
    %c0_0 = arith.constant 0 : index
    %0 = vector.load %arg1[%c0, %c0_0] : memref<512x128xf32, #tpu.memory_space<vmem>>, vector<512x128xf32>
    %c0_1 = arith.constant 0 : index
    %c0_2 = arith.constant 0 : index
    %1 = vector.load %arg2[%c0_1, %c0_2] : memref<1x128xf32, #tpu.memory_space<vmem>>, vector<1x128xf32>
    %2 = vector.broadcast %1 : vector<1x128xf32> to vector<512x128xf32>
    %3 = arith.mulf %0, %2 : vector<512x128xf32>
    %c0_3 = arith.constant 0 : index
    %c0_4 = arith.constant 0 : index
    %4 = vector.load %arg3[%c0_3, %c0_4] : memref<1x128xf32, #tpu.memory_space<vmem>>, vector<1x128xf32>
    %5 = vector.broadcast %4 : vector<1x128xf32> to vector<512x128xf32>
    %6 = arith.addf %3, %5 : vector<512x128xf32>
    %cst = arith.constant 0.000000e+00 : f32
    %7 = vector.broadcast %cst : f32 to vector<512x128xf32>
    %8 = arith.maximumf %6, %7 : vector<512x128xf32>
    %9 = arith.truncf %8 : vector<512x128xf32> to vector<512x128xbf16>
    %c0_5 = arith.constant 0 : index
    %c0_6 = arith.constant 0 : index
    %10 = vector.load %arg4[%c0_5, %c0_6] : memref<512x128xbf16, #tpu.memory_space<vmem>>, vector<512x128xbf16>
    tpu.vector_store %arg4[%c0_5, %c0_6], %9 {strides = array<i32>} : memref<512x128xbf16, #tpu.memory_space<vmem>>, vector<512x128xbf16>,
    return
  }
  func.func @transform_0(%arg0: i32) -> (i32, i32) {
    %c0_i32 = arith.constant 0 : i32
    %c0_i32_0 = arith.constant 0 : i32
    return %arg0, %c0_i32 : i32, i32
  }
  func.func @transform_1(%arg0: i32) -> (i32, i32) {
    %c0_i32 = arith.constant 0 : i32
    %c0_i32_0 = arith.constant 0 : i32
    %c0_i32_1 = arith.constant 0 : i32
    return %c0_i32, %c0_i32_0 : i32, i32
  }
  func.func @transform_2(%arg0: i32) -> (i32, i32) {
    %c0_i32 = arith.constant 0 : i32
    %c0_i32_0 = arith.constant 0 : i32
    %c0_i32_1 = arith.constant 0 : i32
    return %c0_i32, %c0_i32_0 : i32, i32
  }
  func.func @transform_3(%arg0: i32) -> (i32, i32) {
    %c0_i32 = arith.constant 0 : i32
    %c0_i32_0 = arith.constant 0 : i32
    return %arg0, %c0_i32 : i32, i32
  }
}

module attributes {stable_mosaic.version = 11 : i64} {
  func.func @_affine_relu_kernel(%arg0: i32, %arg1: memref<512x128xf32, #tpu.memory_space<vmem>>, %arg2: memref<1x128xf32, #tpu.memory_space<vmem>>, %arg3: memref<1x128xf32, #tpu.memory_space<vmem>>, %arg4: memref<512x128xf32, #tpu.memory_space<vmem>>) attributes {dimension_semantics = [#tpu.dimension_semantics<parallel>], iteration_bounds = array<i64: 1>, scalar_prefetch = 0 : i64, scratch_operands = 0 : i64, tpu.core_type = #tpu.core_type<tc>, window_params = [{transform_indices = @transform_0, window_bounds = array<i64: 512, 128>}, {pipeline_mode = #tpu.pipeline_mode<synchronous>, transform_indices = @transform_1, window_bounds = array<i64: 1, 128>}, {pipeline_mode = #tpu.pipeline_mode<synchronous>, transform_indices = @transform_2, window_bounds = array<i64: 1, 128>}, {transform_indices = @transform_3, window_bounds = array<i64: 512, 128>}]} {
    %c0 = arith.constant 0 : index
    %c0_0 = arith.constant 0 : index
    %0 = vector.load %arg1[%c0, %c0_0] : memref<512x128xf32, #tpu.memory_space<vmem>>, vector<512x128xf32>
    %c0_1 = arith.constant 0 : index
    %c0_2 = arith.constant 0 : index
    %1 = vector.load %arg2[%c0_1, %c0_2] : memref<1x128xf32, #tpu.memory_space<vmem>>, vector<1x128xf32>
    %2 = vector.broadcast %1 : vector<1x128xf32> to vector<512x128xf32>
    %3 = arith.mulf %0, %2 : vector<512x128xf32>
    %c0_3 = arith.constant 0 : index
    %c0_4 = arith.constant 0 : index
    %4 = vector.load %arg3[%c0_3, %c0_4] : memref<1x128xf32, #tpu.memory_space<vmem>>, vector<1x128xf32>
    %5 = vector.broadcast %4 : vector<1x128xf32> to vector<512x128xf32>
    %6 = arith.addf %3, %5 : vector<512x128xf32>
    %cst = arith.constant 0.000000e+00 : f32
    %7 = vector.broadcast %cst : f32 to vector<512x128xf32>
    %8 = arith.maximumf %6, %7 : vector<512x128xf32>
    %c0_5 = arith.constant 0 : index
    %c0_6 = arith.constant 0 : index
    %9 = vector.load %arg4[%c0_5, %c0_6] : memref<512x128xf32, #tpu.memory_space<vmem>>, vector<512x128xf32>
    tpu.vector_store %arg4[%c0_5, %c0_6], %8 {strides = array<i32>} : memref<512x128xf32, #tpu.memory_space<vmem>>, vector<512x128xf32>,
    return
  }
  func.func @transform_0(%arg0: i32) -> (i32, i32) {
    %c0_i32 = arith.constant 0 : i32
    %c0_i32_0 = arith.constant 0 : i32
    return %arg0, %c0_i32 : i32, i32
  }
  func.func @transform_1(%arg0: i32) -> (i32, i32) {
    %c0_i32 = arith.constant 0 : i32
    %c0_i32_0 = arith.constant 0 : i32
    %c0_i32_1 = arith.constant 0 : i32
    return %c0_i32, %c0_i32_0 : i32, i32
  }
  func.func @transform_2(%arg0: i32) -> (i32, i32) {
    %c0_i32 = arith.constant 0 : i32
    %c0_i32_0 = arith.constant 0 : i32
    %c0_i32_1 = arith.constant 0 : i32
    return %c0_i32, %c0_i32_0 : i32, i32
  }
  func.func @transform_3(%arg0: i32) -> (i32, i32) {
    %c0_i32 = arith.constant 0 : i32
    %c0_i32_0 = arith.constant 0 : i32
    return %arg0, %c0_i32 : i32, i32
  }
}

module attributes {stable_mosaic.version = 11 : i64} {
  func.func @_mm_bias_stats_kernel(%arg0: i32, %arg1: memref<512x36xbf16, #tpu.memory_space<vmem>>, %arg2: memref<36x128xbf16, #tpu.memory_space<vmem>>, %arg3: memref<1x128xf32, #tpu.memory_space<vmem>>, %arg4: memref<512x128xf32, #tpu.memory_space<vmem>>, %arg5: memref<1x8x128xf32, #tpu.memory_space<vmem>>) attributes {dimension_semantics = [#tpu.dimension_semantics<parallel>], iteration_bounds = array<i64: 1>, scalar_prefetch = 0 : i64, scratch_operands = 0 : i64, tpu.core_type = #tpu.core_type<tc>, window_params = [{transform_indices = @transform_0, window_bounds = array<i64: 512, 36>}, {pipeline_mode = #tpu.pipeline_mode<synchronous>, transform_indices = @transform_1, window_bounds = array<i64: 36, 128>}, {pipeline_mode = #tpu.pipeline_mode<synchronous>, transform_indices = @transform_2, window_bounds = array<i64: 1, 128>}, {transform_indices = @transform_3, window_bounds = array<i64: 512, 128>}, {transform_indices = @transform_4, window_bounds = array<i64: 1, 8, 128>}]} {
    %c0 = arith.constant 0 : index
    %c0_0 = arith.constant 0 : index
    %0 = vector.load %arg1[%c0, %c0_0] : memref<512x36xbf16, #tpu.memory_space<vmem>>, vector<512x36xbf16>
    %c0_1 = arith.constant 0 : index
    %c0_2 = arith.constant 0 : index
    %1 = vector.load %arg2[%c0_1, %c0_2] : memref<36x128xbf16, #tpu.memory_space<vmem>>, vector<36x128xbf16>
    %cst = arith.constant dense<0.000000e+00> : vector<512x128xf32>
    %2 = tpu.matmul %0, %1, %cst {dimension_numbers = #tpu.dot_dimension_numbers<[1], [0], [0], [1], [0, 0, 1, 1], [], []>} : vector<512x36xbf16>, vector<36x128xbf16>, vector<512x128xf32> -> vector<512x128xf32>
    %c0_3 = arith.constant 0 : index
    %c0_4 = arith.constant 0 : index
    %3 = vector.load %arg3[%c0_3, %c0_4] : memref<1x128xf32, #tpu.memory_space<vmem>>, vector<1x128xf32>
    %4 = vector.broadcast %3 : vector<1x128xf32> to vector<512x128xf32>
    %5 = arith.addf %2, %4 : vector<512x128xf32>
    %c0_5 = arith.constant 0 : index
    %c0_6 = arith.constant 0 : index
    %6 = vector.load %arg4[%c0_5, %c0_6] : memref<512x128xf32, #tpu.memory_space<vmem>>, vector<512x128xf32>
    tpu.vector_store %arg4[%c0_5, %c0_6], %5 {strides = array<i32>} : memref<512x128xf32, #tpu.memory_space<vmem>>, vector<512x128xf32>,
    %cst_7 = arith.constant dense<0.000000e+00> : vector<128xf32>
    %7 = vector.multi_reduction <add>, %5, %cst_7 [0] : vector<512x128xf32> to vector<128xf32>
    %8 = vector.shape_cast %7 : vector<128xf32> to vector<1x128xf32>
    %9 = arith.mulf %5, %5 : vector<512x128xf32>
    %cst_8 = arith.constant dense<0.000000e+00> : vector<128xf32>
    %10 = vector.multi_reduction <add>, %9, %cst_8 [0] : vector<512x128xf32> to vector<128xf32>
    %11 = vector.shape_cast %10 : vector<128xf32> to vector<1x128xf32>
    %12 = tpu.iota {dimensions = array<i32: 0>} : vector<8x128xi32>
    %c0_i32 = arith.constant 0 : i32
    %13 = vector.broadcast %c0_i32 : i32 to vector<8x128xi32>
    %14 = arith.cmpi eq, %12, %13 : vector<8x128xi32>
    %c1_i32 = arith.constant 1 : i32
    %15 = vector.broadcast %c1_i32 : i32 to vector<8x128xi32>
    %16 = arith.cmpi eq, %12, %15 : vector<8x128xi32>
    %cst_9 = arith.constant 0.000000e+00 : f32
    %17 = vector.shape_cast %11 : vector<1x128xf32> to vector<1x128xf32>
    %18 = vector.broadcast %17 : vector<1x128xf32> to vector<8x128xf32>
    %19 = vector.broadcast %cst_9 : f32 to vector<8x128xf32>
    %20 = arith.select %16, %18, %19 : vector<8x128xi1>, vector<8x128xf32>
    %21 = vector.shape_cast %8 : vector<1x128xf32> to vector<1x128xf32>
    %22 = vector.broadcast %21 : vector<1x128xf32> to vector<8x128xf32>
    %23 = arith.select %14, %22, %20 : vector<8x128xi1>, vector<8x128xf32>
    %c0_10 = arith.constant 0 : index
    %c0_11 = arith.constant 0 : index
    %c0_12 = arith.constant 0 : index
    %24 = vector.load %arg5[%c0_10, %c0_11, %c0_12] : memref<1x8x128xf32, #tpu.memory_space<vmem>>, vector<1x8x128xf32>
    %25 = vector.shape_cast %24 : vector<1x8x128xf32> to vector<8x128xf32>
    %26 = vector.shape_cast %23 : vector<8x128xf32> to vector<1x8x128xf32>
    tpu.vector_store %arg5[%c0_10, %c0_11, %c0_12], %26 {strides = array<i32>} : memref<1x8x128xf32, #tpu.memory_space<vmem>>, vector<1x8x128xf32>,
    return
  }
  func.func @transform_0(%arg0: i32) -> (i32, i32) {
    %c0_i32 = arith.constant 0 : i32
    %c0_i32_0 = arith.constant 0 : i32
    return %arg0, %c0_i32 : i32, i32
  }
  func.func @transform_1(%arg0: i32) -> (i32, i32) {
    %c0_i32 = arith.constant 0 : i32
    %c0_i32_0 = arith.constant 0 : i32
    %c0_i32_1 = arith.constant 0 : i32
    return %c0_i32, %c0_i32_0 : i32, i32
  }
  func.func @transform_2(%arg0: i32) -> (i32, i32) {
    %c0_i32 = arith.constant 0 : i32
    %c0_i32_0 = arith.constant 0 : i32
    %c0_i32_1 = arith.constant 0 : i32
    return %c0_i32, %c0_i32_0 : i32, i32
  }
  func.func @transform_3(%arg0: i32) -> (i32, i32) {
    %c0_i32 = arith.constant 0 : i32
    %c0_i32_0 = arith.constant 0 : i32
    return %arg0, %c0_i32 : i32, i32
  }
  func.func @transform_4(%arg0: i32) -> (i32, i32, i32) {
    %c0_i32 = arith.constant 0 : i32
    %c0_i32_0 = arith.constant 0 : i32
    %c0_i32_1 = arith.constant 0 : i32
    return %arg0, %c0_i32, %c0_i32_0 : i32, i32, i32
  }
}

</mosaic_0001>

<llo_original>
// kernel: tile.8
$region0: #{tile.8}
  #allocation0 [shape = 's32[1]{0}', space=sflag, size = 0x4, scoped, tag = 'scoped memory for tile.8']
  %s0 = inlined_call_operand.vmem [shape: f32[4], index: 0, kind: input, shape index: {}]
  %s1 = inlined_call_operand.vmem [shape: f32[4,4], index: 1, kind: output, shape index: {}]
  // Predicated region
  $region2: #{tile.8} parent=0 // pred_check
    _
  $region3: #{tile.8} parent=0 // pred_check_branch
    %3 = sbr.rel (0) target = $region5
  $region4: #{tile.8} parent=0 // pred_region
    _
  $region5: #{tile.8} parent=0 // pred_fallthru
    _
  %v4 = vld [vmem:[%s0] ss:$0 sm:$0xff]
  %5 = vst [vmem:[%s1] sm:$0xf] %v4

// kernel: tile.9
$region0: #{tile.9}
  %s0 = inlined_call_operand.vmem [shape: f32[4,4], index: 0, kind: input, shape index: {}]
  %s1 = inlined_call_operand.vmem [shape: f32[16], index: 1, kind: output, shape index: {}]
  $region1: #{tile.9} parent=0
    #allocation0 [shape = 'u8[4096]{0}', space=vmem, size = 0x1000, scoped, tag = 'scoped mem for output reshape']
    #allocation1 [shape = 'u8[4096]{0}', space=vmem, size = 0x1000, scoped, tag = 'scoped mem for input reshape']
    %s3 = sshllo.u32 0, 4
    %v4 = vld [vmem:[%s0] sm:%s3]
    %5 = vst [vmem:[#allocation1] sm:%s3] %v4
    %v6 = vld [vmem:[#allocation1] sm:$0x1]
    %vm7 = vcmask 31744
    %8 = vst.msk [vmem:[#allocation0] sm:$0x1] %vm7, %v6
    %s9 = scalar_lea.vmem [#allocation1], 3
    %v10 = vld [vmem:[%s9] sm:$0x1]
    %11 = vrot.lane.b32.xlu0 %v10, 12
    %v12 = vpop.permute.xlu0 %11
    %vm13 = vcmask 130144
    %14 = vst.msk [vmem:[#allocation0] sm:$0x1] %vm13, %v12
    %s15 = scalar_lea.vmem [#allocation1], 2
    %v16 = vld [vmem:[%s15] sm:$0x1]
    %17 = vrot.lane.b32.xlu0 %v16, 8
    %v18 = vpop.permute.xlu0 %17
    %vm19 = vcmask 97344
    %20 = vst.msk [vmem:[#allocation0] sm:$0x1] %vm19, %v18
    %s21 = scalar_lea.vmem [#allocation1], 1
    %v22 = vld [vmem:[%s21] sm:$0x1]
    %23 = vrot.lane.b32.xlu0 %v22, 4
    %v24 = vpop.permute.xlu0 %23
    %vm25 = vcmask 64544
    %26 = vst.msk [vmem:[#allocation0] sm:$0x1] %vm25, %v24
    %s28 = sshllo.u32 0, 1
    %v30 = vld [vmem:[#allocation0] sm:%s28]
    %s31 = sshllo.u32 0, 1
    %32 = vst [vmem:[%s1] sm:%s31] %v30

// kernel: up_forward.5
$region0: #{up_forward.5}
  #allocation0 [shape = 'u32[]', space=smem, size = 0x4, offset = 0x4, fixed_abs, tag = 'smem constant byte address 0x4 - core index']
  #allocation1 [shape = 'u32[144,128]{1,0:T(1,128)}', space=vmem, size = 0x12000, scoped, tag = 'internal scratch']
  %s0 = inlined_call_operand.vmem [shape: bf16[128,8], index: 0, kind: input, shape index: {}]
  %s1 = inlined_call_operand.vmem [shape: bf16[8,128], index: 1, kind: input, shape index: {}]
  %s2 = inlined_call_operand.vmem [shape: f32[1,128], index: 2, kind: input, shape index: {}]
  %s3 = inlined_call_operand.vmem [shape: bf16[128,128], index: 3, kind: output, shape index: {}]
  %s4 = sld [smem:[#allocation0]]
  $region22: #{up_forward.5} parent=0
    _
  %s6 = ssub.s32 1, %s4
  %s7 = scalar_select 0, %s6, %s4
  // Predicated region
  $region2: #{up_forward.5} parent=0 // pred_check
    _
  $region3: #{up_forward.5} parent=0 // pred_check_branch
    %9 = sbr.rel (0) target = $region5
  $region4: #{up_forward.5} parent=0 // pred_region
    _
  $region5: #{up_forward.5} parent=0 // pred_fallthru
    _
  // Predicated region
  $region6: #{up_forward.5} parent=0 // pred_check
    _
  $region7: #{up_forward.5} parent=0 // pred_check_branch
    %11 = sbr.rel (0) target = $region9
  $region8: #{up_forward.5} parent=0 // pred_region
    _
  $region9: #{up_forward.5} parent=0 // pred_fallthru
    _
  // Predicated region
  $region10: #{up_forward.5} parent=0 // pred_check
    _
  $region11: #{up_forward.5} parent=0 // pred_check_branch
    %13 = sbr.rel (0) target = $region13
  $region12: #{up_forward.5} parent=0 // pred_region
    _
  $region13: #{up_forward.5} parent=0 // pred_fallthru
    _
  %v15 = vld [vmem:[%s0] sm:$0xf]
  %v16 = vld [vmem:[%s0 + $0x4] sm:$0xf]
  %v17 = vld [vmem:[%s0 + $0x8] sm:$0xf]
  %v18 = vld [vmem:[%s0 + $0xc] sm:$0xf]
  %v19 = vld [vmem:[%s0 + $0x10] sm:$0xf]
  %v20 = vld [vmem:[%s0 + $0x14] sm:$0xf]
  %v21 = vld [vmem:[%s0 + $0x18] sm:$0xf]
  %v22 = vld [vmem:[%s0 + $0x1c] sm:$0xf]
  %v23 = vld [vmem:[%s0 + $0x20] sm:$0xf]
  %v24 = vld [vmem:[%s0 + $0x24] sm:$0xf]
  %v25 = vld [vmem:[%s0 + $0x28] sm:$0xf]
  %v26 = vld [vmem:[%s0 + $0x2c] sm:$0xf]
  %v27 = vld [vmem:[%s0 + $0x30] sm:$0xf]
  %v28 = vld [vmem:[%s0 + $0x34] sm:$0xf]
  %v29 = vld [vmem:[%s0 + $0x38] sm:$0xf]
  %v30 = vld [vmem:[%s0 + $0x3c] sm:$0xf]
  %v31 = vld [vmem:[%s1] sm:$0xf]
  %v32 = vld [vmem:[%s2] sm:$0x1]
  %v34 = vlaneseq
  %v35 = vshrl.u32 %v34, 7
  %v36 = vsub.s32 0, %v35
  %v37 = vrot.slane %v32, %v36
  %v55 = vunpack.c.l.b16 %v15
  %v56 = vunpack.c.l.b16 %v16
  %v57 = vunpack.c.l.b16 %v17
  %v58 = vunpack.c.l.b16 %v18
  %v59 = vunpack.c.l.b16 %v19
  %v60 = vunpack.c.l.b16 %v20
  %v61 = vunpack.c.l.b16 %v21
  %v62 = vunpack.c.l.b16 %v22
  %v63 = vunpack.c.l.b16 %v23
  %v64 = vunpack.c.l.b16 %v24
  %v65 = vunpack.c.l.b16 %v25
  %v66 = vunpack.c.l.b16 %v26
  %v67 = vunpack.c.l.b16 %v27
  %v68 = vunpack.c.l.b16 %v28
  %v69 = vunpack.c.l.b16 %v29
  %v70 = vunpack.c.l.b16 %v30
  %v71 = vpack.c.b16 %v56, %v55
  %v72 = vpack.c.b16 %v58, %v57
  %v73 = vpack.c.b16 %v60, %v59
  %v74 = vpack.c.b16 %v62, %v61
  %v75 = vpack.c.b16 %v64, %v63
  %v76 = vpack.c.b16 %v66, %v65
  %v77 = vpack.c.b16 %v68, %v67
  %v78 = vpack.c.b16 %v70, %v69
  %vm79 = vcmask 64512
  %v81 = vsel %vm79, %v71, 0
  %v84 = vsel %vm79, %v72, 0
  %v87 = vsel %vm79, %v73, 0
  %v90 = vsel %vm79, %v74, 0
  %v93 = vsel %vm79, %v75, 0
  %v96 = vsel %vm79, %v76, 0
  %v99 = vsel %vm79, %v77, 0
  %v102 = vsel %vm79, %v78, 0
  %vm104 = vcmask 1043456
  %v106 = vsel %vm104, %v31, 0
  %108 = vmatprep.subr.bf16.mxu0 0
  %109 = vmatpush1.bf16.msra.mxu0 %v106
  %110 = vmatprep.subr.bf16.mxu0 0
  %111 = vmatpush1.bf16.msra.mxu0 0
  %112 = vmatprep.subr.bf16.mxu0 0
  %113 = vmatpush1.bf16.msra.mxu0 0
  %114 = vmatprep.subr.bf16.mxu0 0
  %115 = vmatpush1.bf16.msra.mxu0 0
  %116 = vmatprep.subr.bf16.mxu0 0
  %117 = vmatpush1.bf16.msra.mxu0 0
  %118 = vmatprep.subr.bf16.mxu0 0
  %119 = vmatpush1.bf16.msra.mxu0 0
  %120 = vmatprep.subr.bf16.mxu0 0
  %121 = vmatpush1.bf16.msra.mxu0 0
  %122 = vmatprep.subr.bf16.mxu0 0
  %123 = vmatpush1.bf16.msra.mxu0 0
  %124 = vmatprep.subr.bf16.mxu0 0
  %125 = vmatpush1.bf16.msra.mxu0 0
  %126 = vmatprep.subr.bf16.mxu0 0
  %127 = vmatpush1.bf16.msra.mxu0 0
  %128 = vmatprep.subr.bf16.mxu0 0
  %129 = vmatpush1.bf16.msra.mxu0 0
  %130 = vmatprep.subr.bf16.mxu0 0
  %131 = vmatpush1.bf16.msra.mxu0 0
  %132 = vmatprep.subr.bf16.mxu0 0
  %133 = vmatpush1.bf16.msra.mxu0 0
  %134 = vmatprep.subr.bf16.mxu0 0
  %135 = vmatpush1.bf16.msra.mxu0 0
  %136 = vmatprep.subr.bf16.mxu0 0
  %137 = vmatpush1.bf16.msra.mxu0 0
  %138 = vmatprep.subr.bf16.mxu0 0
  %139 = vmatpush1.bf16.msra.mxu0 0
  %140 = vmatprep.mubr.bf16.mxu0 0
  %141 = vmatmul.mubr.bf16.gmra.mrb[0].mxu0 %v81
  %v142 = vpop.f32.mrb[0].mxu0
  %v143 = vadd.f32 %v37, %v142
  %v144 = vpop.f32.mrb[0].mxu0
  %v145 = vpop.f32.mrb[0].mxu0
  %v146 = vadd.f32 %v37, %v145
  %v147 = vpop.f32.mrb[0].mxu0
  %148 = vmatprep.mubr.bf16.mxu0 0
  %149 = vmatmul.mubr.bf16.gmra.mrb[0].mxu0 %v84
  %v150 = vpop.f32.mrb[0].mxu0
  %v151 = vadd.f32 %v37, %v150
  %v152 = vpop.f32.mrb[0].mxu0
  %v153 = vpop.f32.mrb[0].mxu0
  %v154 = vadd.f32 %v37, %v153
  %v155 = vpop.f32.mrb[0].mxu0
  %156 = vmatprep.mubr.bf16.mxu0 0
  %157 = vmatmul.mubr.bf16.gmra.mrb[0].mxu0 %v87
  %v158 = vpop.f32.mrb[0].mxu0
  %v159 = vadd.f32 %v37, %v158
  %v160 = vpop.f32.mrb[0].mxu0
  %v161 = vpop.f32.mrb[0].mxu0
  %v162 = vadd.f32 %v37, %v161
  %v163 = vpop.f32.mrb[0].mxu0
  %164 = vmatprep.mubr.bf16.mxu0 0
  %165 = vmatmul.mubr.bf16.gmra.mrb[0].mxu0 %v90
  %v166 = vpop.f32.mrb[0].mxu0
  %v167 = vadd.f32 %v37, %v166
  %v168 = vpop.f32.mrb[0].mxu0
  %v169 = vpop.f32.mrb[0].mxu0
  %v170 = vadd.f32 %v37, %v169
  %v171 = vpop.f32.mrb[0].mxu0
  %172 = vmatprep.mubr.bf16.mxu0 0
  %173 = vmatmul.mubr.bf16.gmra.mrb[0].mxu0 %v93
  %v174 = vpop.f32.mrb[0].mxu0
  %v175 = vadd.f32 %v37, %v174
  %v176 = vpop.f32.mrb[0].mxu0
  %v177 = vpop.f32.mrb[0].mxu0
  %v178 = vadd.f32 %v37, %v177
  %v179 = vpop.f32.mrb[0].mxu0
  %180 = vmatprep.mubr.bf16.mxu0 0
  %181 = vmatmul.mubr.bf16.gmra.mrb[0].mxu0 %v96
  %v182 = vpop.f32.mrb[0].mxu0
  %v183 = vadd.f32 %v37, %v182
  %v184 = vpop.f32.mrb[0].mxu0
  %v185 = vpop.f32.mrb[0].mxu0
  %v186 = vadd.f32 %v37, %v185
  %v187 = vpop.f32.mrb[0].mxu0
  %188 = vmatprep.mubr.bf16.mxu0 0
  %189 = vmatmul.mubr.bf16.gmra.mrb[0].mxu0 %v99
  %v190 = vpop.f32.mrb[0].mxu0
  %v191 = vadd.f32 %v37, %v190
  %v192 = vpop.f32.mrb[0].mxu0
  %v193 = vpop.f32.mrb[0].mxu0
  %v194 = vadd.f32 %v37, %v193
  %v195 = vpop.f32.mrb[0].mxu0
  %196 = vmatprep.mubr.bf16.mxu0 0
  %197 = vmatmul.mubr.bf16.gmra.mrb[0].mxu0 %v102
  %v198 = vpop.f32.mrb[0].mxu0
  %v199 = vadd.f32 %v37, %v198
  %v200 = vpop.f32.mrb[0].mxu0
  %v201 = vpop.f32.mrb[0].mxu0
  %v202 = vadd.f32 %v37, %v201
  %v203 = vpop.f32.mrb[0].mxu0
  %204 = vdwg.mxu0
  %v205 = vpack.c.bf16 %v146, %v143
  %v206 = vpack.c.bf16 %v154, %v151
  %v207 = vpack.c.bf16 %v162, %v159
  %v208 = vpack.c.bf16 %v170, %v167
  %v209 = vpack.c.bf16 %v178, %v175
  %v210 = vpack.c.bf16 %v186, %v183
  %v211 = vpack.c.bf16 %v194, %v191
  %v212 = vpack.c.bf16 %v202, %v199
  %v221 = vunpack.c.l.b16 %v205
  %v222 = vunpack.c.h.b16 %v205
  %v223 = vunpack.c.l.b16 %v206
  %v224 = vunpack.c.h.b16 %v206
  %v225 = vunpack.c.l.b16 %v207
  %v226 = vunpack.c.h.b16 %v207
  %v227 = vunpack.c.l.b16 %v208
  %v228 = vunpack.c.h.b16 %v208
  %v229 = vunpack.c.l.b16 %v209
  %v230 = vunpack.c.h.b16 %v209
  %v231 = vunpack.c.l.b16 %v210
  %v232 = vunpack.c.h.b16 %v210
  %v233 = vunpack.c.l.b16 %v211
  %v234 = vunpack.c.h.b16 %v211
  %v235 = vunpack.c.l.b16 %v212
  %v236 = vunpack.c.h.b16 %v212
  %v237 = vpack.c.b16 %v221, %v221
  %v238 = vpack.c.b16 %v222, %v222
  %v239 = vpack.c.b16 %v223, %v223
  %v240 = vpack.c.b16 %v224, %v224
  %v241 = vpack.c.b16 %v225, %v225
  %v242 = vpack.c.b16 %v226, %v226
  %v243 = vpack.c.b16 %v227, %v227
  %v244 = vpack.c.b16 %v228, %v228
  %v245 = vpack.c.b16 %v229, %v229
  %v246 = vpack.c.b16 %v230, %v230
  %v247 = vpack.c.b16 %v231, %v231
  %v248 = vpack.c.b16 %v232, %v232
  %v249 = vpack.c.b16 %v233, %v233
  %v250 = vpack.c.b16 %v234, %v234
  %v251 = vpack.c.b16 %v235, %v235
  %v252 = vpack.c.b16 %v236, %v236
  %269 = vst [vmem:[%s3] sm:$0xf] %v237
  %270 = vst [vmem:[%s3 + $0x4] sm:$0xf] %v238
  %271 = vst [vmem:[%s3 + $0x8] sm:$0xf] %v239
  %272 = vst [vmem:[%s3 + $0xc] sm:$0xf] %v240
  %273 = vst [vmem:[%s3 + $0x10] sm:$0xf] %v241
  %274 = vst [vmem:[%s3 + $0x14] sm:$0xf] %v242
  %275 = vst [vmem:[%s3 + $0x18] sm:$0xf] %v243
  %276 = vst [vmem:[%s3 + $0x1c] sm:$0xf] %v244
  %277 = vst [vmem:[%s3 + $0x20] sm:$0xf] %v245
  %278 = vst [vmem:[%s3 + $0x24] sm:$0xf] %v246
  %279 = vst [vmem:[%s3 + $0x28] sm:$0xf] %v247
  %280 = vst [vmem:[%s3 + $0x2c] sm:$0xf] %v248
  %281 = vst [vmem:[%s3 + $0x30] sm:$0xf] %v249
  %282 = vst [vmem:[%s3 + $0x34] sm:$0xf] %v250
  %283 = vst [vmem:[%s3 + $0x38] sm:$0xf] %v251
  %284 = vst [vmem:[%s3 + $0x3c] sm:$0xf] %v252
  // Predicated region
  $region14: #{up_forward.5} parent=0 // pred_check
    _
  $region15: #{up_forward.5} parent=0 // pred_check_branch
    %286 = sbr.rel (0) target = $region17
  $region16: #{up_forward.5} parent=0 // pred_region
    _
  $region17: #{up_forward.5} parent=0 // pred_fallthru
    _
  // Predicated region
  $region18: #{up_forward.5} parent=0 // pred_check
    _
  $region19: #{up_forward.5} parent=0 // pred_check_branch
    %288 = sbr.rel (0) target = $region21
  $region20: #{up_forward.5} parent=0 // pred_region
    _
  $region21: #{up_forward.5} parent=0 // pred_fallthru
    _

// kernel: up_forward.7
$region0: #{up_forward.7}
  #allocation0 [shape = 'u32[]', space=smem, size = 0x4, offset = 0x4, fixed_abs, tag = 'smem constant byte address 0x4 - core index']
  #allocation1 [shape = 'u32[144,128]{1,0:T(1,128)}', space=vmem, size = 0x12000, scoped, tag = 'internal scratch']
  %s0 = inlined_call_operand.vmem [shape: f32[512,128], index: 0, kind: input, shape index: {}]
  %s1 = inlined_call_operand.vmem [shape: f32[1,128], index: 1, kind: input, shape index: {}]
  %s2 = inlined_call_operand.vmem [shape: f32[1,128], index: 2, kind: input, shape index: {}]
  %s3 = inlined_call_operand.vmem [shape: bf16[512,128], index: 3, kind: output, shape index: {}]
  %s4 = sld [smem:[#allocation0]]
  $region22: #{up_forward.7} parent=0
    _
  %s6 = ssub.s32 1, %s4
  %s7 = scalar_select 0, %s6, %s4
  // Predicated region
  $region2: #{up_forward.7} parent=0 // pred_check
    _
  $region3: #{up_forward.7} parent=0 // pred_check_branch
    %9 = sbr.rel (0) target = $region5
  $region4: #{up_forward.7} parent=0 // pred_region
    _
  $region5: #{up_forward.7} parent=0 // pred_fallthru
    _
  // Predicated region
  $region6: #{up_forward.7} parent=0 // pred_check
    _
  $region7: #{up_forward.7} parent=0 // pred_check_branch
    %11 = sbr.rel (0) target = $region9
  $region8: #{up_forward.7} parent=0 // pred_region
    _
  $region9: #{up_forward.7} parent=0 // pred_fallthru
    _
  // Predicated region
  $region10: #{up_forward.7} parent=0 // pred_check
    _
  $region11: #{up_forward.7} parent=0 // pred_check_branch
    %13 = sbr.rel (0) target = $region13
  $region12: #{up_forward.7} parent=0 // pred_region
    _
  $region13: #{up_forward.7} parent=0 // pred_fallthru
    _
  %v14 = vld [vmem:[%s0] sm:$0xff]
  %v15 = vld [vmem:[%s0 + $0x8] sm:$0xff]
  %v16 = vld [vmem:[%s0 + $0x10] sm:$0xff]
  %v17 = vld [vmem:[%s0 + $0x18] sm:$0xff]
  %v18 = vld [vmem:[%s0 + $0x20] sm:$0xff]
  %v19 = vld [vmem:[%s0 + $0x28] sm:$0xff]
  %v20 = vld [vmem:[%s0 + $0x30] sm:$0xff]
  %v21 = vld [vmem:[%s0 + $0x38] sm:$0xff]
  %v22 = vld [vmem:[%s0 + $0x40] sm:$0xff]
  %v23 = vld [vmem:[%s0 + $0x48] sm:$0xff]
  %v24 = vld [vmem:[%s0 + $0x50] sm:$0xff]
  %v25 = vld [vmem:[%s0 + $0x58] sm:$0xff]
  %v26 = vld [vmem:[%s0 + $0x60] sm:$0xff]
  %v27 = vld [vmem:[%s0 + $0x68] sm:$0xff]
  %v28 = vld [vmem:[%s0 + $0x70] sm:$0xff]
  %v29 = vld [vmem:[%s0 + $0x78] sm:$0xff]
  %v30 = vld [vmem:[%s0 + $0x80] sm:$0xff]
  %v31 = vld [vmem:[%s0 + $0x88] sm:$0xff]
  %v32 = vld [vmem:[%s0 + $0x90] sm:$0xff]
  %v33 = vld [vmem:[%s0 + $0x98] sm:$0xff]
  %v34 = vld [vmem:[%s0 + $0xa0] sm:$0xff]
  %v35 = vld [vmem:[%s0 + $0xa8] sm:$0xff]
  %v36 = vld [vmem:[%s0 + $0xb0] sm:$0xff]
  %v37 = vld [vmem:[%s0 + $0xb8] sm:$0xff]
  %v38 = vld [vmem:[%s0 + $0xc0] sm:$0xff]
  %v39 = vld [vmem:[%s0 + $0xc8] sm:$0xff]
  %v40 = vld [vmem:[%s0 + $0xd0] sm:$0xff]
  %v41 = vld [vmem:[%s0 + $0xd8] sm:$0xff]
  %v42 = vld [vmem:[%s0 + $0xe0] sm:$0xff]
  %v43 = vld [vmem:[%s0 + $0xe8] sm:$0xff]
  %v44 = vld [vmem:[%s0 + $0xf0] sm:$0xff]
  %v45 = vld [vmem:[%s0 + $0xf8] sm:$0xff]
  %v46 = vld [vmem:[%s0 + $0x100] sm:$0xff]
  %v47 = vld [vmem:[%s0 + $0x108] sm:$0xff]
  %v48 = vld [vmem:[%s0 + $0x110] sm:$0xff]
  %v49 = vld [vmem:[%s0 + $0x118] sm:$0xff]
  %v50 = vld [vmem:[%s0 + $0x120] sm:$0xff]
  %v51 = vld [vmem:[%s0 + $0x128] sm:$0xff]
  %v52 = vld [vmem:[%s0 + $0x130] sm:$0xff]
  %v53 = vld [vmem:[%s0 + $0x138] sm:$0xff]
  %v54 = vld [vmem:[%s0 + $0x140] sm:$0xff]
  %v55 = vld [vmem:[%s0 + $0x148] sm:$0xff]
  %v56 = vld [vmem:[%s0 + $0x150] sm:$0xff]
  %v57 = vld [vmem:[%s0 + $0x158] sm:$0xff]
  %v58 = vld [vmem:[%s0 + $0x160] sm:$0xff]
  %v59 = vld [vmem:[%s0 + $0x168] sm:$0xff]
  %v60 = vld [vmem:[%s0 + $0x170] sm:$0xff]
  %v61 = vld [vmem:[%s0 + $0x178] sm:$0xff]
  %v62 = vld [vmem:[%s0 + $0x180] sm:$0xff]
  %v63 = vld [vmem:[%s0 + $0x188] sm:$0xff]
  %v64 = vld [vmem:[%s0 + $0x190] sm:$0xff]
  %v65 = vld [vmem:[%s0 + $0x198] sm:$0xff]
  %v66 = vld [vmem:[%s0 + $0x1a0] sm:$0xff]
  %v67 = vld [vmem:[%s0 + $0x1a8] sm:$0xff]
  %v68 = vld [vmem:[%s0 + $0x1b0] sm:$0xff]
  %v69 = vld [vmem:[%s0 + $0x1b8] sm:$0xff]
  %v70 = vld [vmem:[%s0 + $0x1c0] sm:$0xff]
  %v71 = vld [vmem:[%s0 + $0x1c8] sm:$0xff]
  %v72 = vld [vmem:[%s0 + $0x1d0] sm:$0xff]
  %v73 = vld [vmem:[%s0 + $0x1d8] sm:$0xff]
  %v74 = vld [vmem:[%s0 + $0x1e0] sm:$0xff]
  %v75 = vld [vmem:[%s0 + $0x1e8] sm:$0xff]
  %v76 = vld [vmem:[%s0 + $0x1f0] sm:$0xff]
  %v77 = vld [vmem:[%s0 + $0x1f8] sm:$0xff]
  %v78 = vld [vmem:[%s1] sm:$0x1]
  %v80 = vlaneseq
  %v81 = vshrl.u32 %v80, 7
  %v82 = vsub.s32 0, %v81
  %v83 = vrot.slane %v78, %v82
  %v85 = vmul.f32 %v14, %v83
  %v86 = vmul.f32 %v15, %v83
  %v87 = vmul.f32 %v16, %v83
  %v88 = vmul.f32 %v17, %v83
  %v89 = vmul.f32 %v18, %v83
  %v90 = vmul.f32 %v19, %v83
  %v91 = vmul.f32 %v20, %v83
  %v92 = vmul.f32 %v21, %v83
  %v93 = vmul.f32 %v22, %v83
  %v94 = vmul.f32 %v23, %v83
  %v95 = vmul.f32 %v24, %v83
  %v96 = vmul.f32 %v25, %v83
  %v97 = vmul.f32 %v26, %v83
  %v98 = vmul.f32 %v27, %v83
  %v99 = vmul.f32 %v28, %v83
  %v100 = vmul.f32 %v29, %v83
  %v101 = vmul.f32 %v30, %v83
  %v102 = vmul.f32 %v31, %v83
  %v103 = vmul.f32 %v32, %v83
  %v104 = vmul.f32 %v33, %v83
  %v105 = vmul.f32 %v34, %v83
  %v106 = vmul.f32 %v35, %v83
  %v107 = vmul.f32 %v36, %v83
  %v108 = vmul.f32 %v37, %v83
  %v109 = vmul.f32 %v38, %v83
  %v110 = vmul.f32 %v39, %v83
  %v111 = vmul.f32 %v40, %v83
  %v112 = vmul.f32 %v41, %v83
  %v113 = vmul.f32 %v42, %v83
  %v114 = vmul.f32 %v43, %v83
  %v115 = vmul.f32 %v44, %v83
  %v116 = vmul.f32 %v45, %v83
  %v117 = vmul.f32 %v46, %v83
  %v118 = vmul.f32 %v47, %v83
  %v119 = vmul.f32 %v48, %v83
  %v120 = vmul.f32 %v49, %v83
  %v121 = vmul.f32 %v50, %v83
  %v122 = vmul.f32 %v51, %v83
  %v123 = vmul.f32 %v52, %v83
  %v124 = vmul.f32 %v53, %v83
  %v125 = vmul.f32 %v54, %v83
  %v126 = vmul.f32 %v55, %v83
  %v127 = vmul.f32 %v56, %v83
  %v128 = vmul.f32 %v57, %v83
  %v129 = vmul.f32 %v58, %v83
  %v130 = vmul.f32 %v59, %v83
  %v131 = vmul.f32 %v60, %v83
  %v132 = vmul.f32 %v61, %v83
  %v133 = vmul.f32 %v62, %v83
  %v134 = vmul.f32 %v63, %v83
  %v135 = vmul.f32 %v64, %v83
  %v136 = vmul.f32 %v65, %v83
  %v137 = vmul.f32 %v66, %v83
  %v138 = vmul.f32 %v67, %v83
  %v139 = vmul.f32 %v68, %v83
  %v140 = vmul.f32 %v69, %v83
  %v141 = vmul.f32 %v70, %v83
  %v142 = vmul.f32 %v71, %v83
  %v143 = vmul.f32 %v72, %v83
  %v144 = vmul.f32 %v73, %v83
  %v145 = vmul.f32 %v74, %v83
  %v146 = vmul.f32 %v75, %v83
  %v147 = vmul.f32 %v76, %v83
  %v148 = vmul.f32 %v77, %v83
  %v149 = vld [vmem:[%s2] sm:$0x1]
  %v151 = vlaneseq
  %v152 = vshrl.u32 %v151, 7
  %v153 = vsub.s32 0, %v152
  %v154 = vrot.slane %v149, %v153
  %v156 = vadd.f32 %v85, %v154
  %v157 = vadd.f32 %v86, %v154
  %v158 = vadd.f32 %v87, %v154
  %v159 = vadd.f32 %v88, %v154
  %v160 = vadd.f32 %v89, %v154
  %v161 = vadd.f32 %v90, %v154
  %v162 = vadd.f32 %v91, %v154
  %v163 = vadd.f32 %v92, %v154
  %v164 = vadd.f32 %v93, %v154
  %v165 = vadd.f32 %v94, %v154
  %v166 = vadd.f32 %v95, %v154
  %v167 = vadd.f32 %v96, %v154
  %v168 = vadd.f32 %v97, %v154
  %v169 = vadd.f32 %v98, %v154
  %v170 = vadd.f32 %v99, %v154
  %v171 = vadd.f32 %v100, %v154
  %v172 = vadd.f32 %v101, %v154
  %v173 = vadd.f32 %v102, %v154
  %v174 = vadd.f32 %v103, %v154
  %v175 = vadd.f32 %v104, %v154
  %v176 = vadd.f32 %v105, %v154
  %v177 = vadd.f32 %v106, %v154
  %v178 = vadd.f32 %v107, %v154
  %v179 = vadd.f32 %v108, %v154
  %v180 = vadd.f32 %v109, %v154
  %v181 = vadd.f32 %v110, %v154
  %v182 = vadd.f32 %v111, %v154
  %v183 = vadd.f32 %v112, %v154
  %v184 = vadd.f32 %v113, %v154
  %v185 = vadd.f32 %v114, %v154
  %v186 = vadd.f32 %v115, %v154
  %v187 = vadd.f32 %v116, %v154
  %v188 = vadd.f32 %v117, %v154
  %v189 = vadd.f32 %v118, %v154
  %v190 = vadd.f32 %v119, %v154
  %v191 = vadd.f32 %v120, %v154
  %v192 = vadd.f32 %v121, %v154
  %v193 = vadd.f32 %v122, %v154
  %v194 = vadd.f32 %v123, %v154
  %v195 = vadd.f32 %v124, %v154
  %v196 = vadd.f32 %v125, %v154
  %v197 = vadd.f32 %v126, %v154
  %v198 = vadd.f32 %v127, %v154
  %v199 = vadd.f32 %v128, %v154
  %v200 = vadd.f32 %v129, %v154
  %v201 = vadd.f32 %v130, %v154
  %v202 = vadd.f32 %v131, %v154
  %v203 = vadd.f32 %v132, %v154
  %v204 = vadd.f32 %v133, %v154
  %v205 = vadd.f32 %v134, %v154
  %v206 = vadd.f32 %v135, %v154
  %v207 = vadd.f32 %v136, %v154
  %v208 = vadd.f32 %v137, %v154
  %v209 = vadd.f32 %v138, %v154
  %v210 = vadd.f32 %v139, %v154
  %v211 = vadd.f32 %v140, %v154
  %v212 = vadd.f32 %v141, %v154
  %v213 = vadd.f32 %v142, %v154
  %v214 = vadd.f32 %v143, %v154
  %v215 = vadd.f32 %v144, %v154
  %v216 = vadd.f32 %v145, %v154
  %v217 = vadd.f32 %v146, %v154
  %v218 = vadd.f32 %v147, %v154
  %v219 = vadd.f32 %v148, %v154
  %v220 = vmax.f32 %v156, 0.0
  %v221 = vmax.f32 %v157, 0.0
  %v222 = vmax.f32 %v158, 0.0
  %v223 = vmax.f32 %v159, 0.0
  %v224 = vmax.f32 %v160, 0.0
  %v225 = vmax.f32 %v161, 0.0
  %v226 = vmax.f32 %v162, 0.0
  %v227 = vmax.f32 %v163, 0.0
  %v228 = vmax.f32 %v164, 0.0
  %v229 = vmax.f32 %v165, 0.0
  %v230 = vmax.f32 %v166, 0.0
  %v231 = vmax.f32 %v167, 0.0
  %v232 = vmax.f32 %v168, 0.0
  %v233 = vmax.f32 %v169, 0.0
  %v234 = vmax.f32 %v170, 0.0
  %v235 = vmax.f32 %v171, 0.0
  %v236 = vmax.f32 %v172, 0.0
  %v237 = vmax.f32 %v173, 0.0
  %v238 = vmax.f32 %v174, 0.0
  %v239 = vmax.f32 %v175, 0.0
  %v240 = vmax.f32 %v176, 0.0
  %v241 = vmax.f32 %v177, 0.0
  %v242 = vmax.f32 %v178, 0.0
  %v243 = vmax.f32 %v179, 0.0
  %v244 = vmax.f32 %v180, 0.0
  %v245 = vmax.f32 %v181, 0.0
  %v246 = vmax.f32 %v182, 0.0
  %v247 = vmax.f32 %v183, 0.0
  %v248 = vmax.f32 %v184, 0.0
  %v249 = vmax.f32 %v185, 0.0
  %v250 = vmax.f32 %v186, 0.0
  %v251 = vmax.f32 %v187, 0.0
  %v252 = vmax.f32 %v188, 0.0
  %v253 = vmax.f32 %v189, 0.0
  %v254 = vmax.f32 %v190, 0.0
  %v255 = vmax.f32 %v191, 0.0
  %v256 = vmax.f32 %v192, 0.0
  %v257 = vmax.f32 %v193, 0.0
  %v258 = vmax.f32 %v194, 0.0
  %v259 = vmax.f32 %v195, 0.0
  %v260 = vmax.f32 %v196, 0.0
  %v261 = vmax.f32 %v197, 0.0
  %v262 = vmax.f32 %v198, 0.0
  %v263 = vmax.f32 %v199, 0.0
  %v264 = vmax.f32 %v200, 0.0
  %v265 = vmax.f32 %v201, 0.0
  %v266 = vmax.f32 %v202, 0.0
  %v267 = vmax.f32 %v203, 0.0
  %v268 = vmax.f32 %v204, 0.0
  %v269 = vmax.f32 %v205, 0.0
  %v270 = vmax.f32 %v206, 0.0
  %v271 = vmax.f32 %v207, 0.0
  %v272 = vmax.f32 %v208, 0.0
  %v273 = vmax.f32 %v209, 0.0
  %v274 = vmax.f32 %v210, 0.0
  %v275 = vmax.f32 %v211, 0.0
  %v276 = vmax.f32 %v212, 0.0
  %v277 = vmax.f32 %v213, 0.0
  %v278 = vmax.f32 %v214, 0.0
  %v279 = vmax.f32 %v215, 0.0
  %v280 = vmax.f32 %v216, 0.0
  %v281 = vmax.f32 %v217, 0.0
  %v282 = vmax.f32 %v218, 0.0
  %v283 = vmax.f32 %v219, 0.0
  %v284 = vpack.c.bf16 %v221, %v220
  %v285 = vpack.c.bf16 %v223, %v222
  %v286 = vpack.c.bf16 %v225, %v224
  %v287 = vpack.c.bf16 %v227, %v226
  %v288 = vpack.c.bf16 %v229, %v228
  %v289 = vpack.c.bf16 %v231, %v230
  %v290 = vpack.c.bf16 %v233, %v232
  %v291 = vpack.c.bf16 %v235, %v234
  %v292 = vpack.c.bf16 %v237, %v236
  %v293 = vpack.c.bf16 %v239, %v238
  %v294 = vpack.c.bf16 %v241, %v240
  %v295 = vpack.c.bf16 %v243, %v242
  %v296 = vpack.c.bf16 %v245, %v244
  %v297 = vpack.c.bf16 %v247, %v246
  %v298 = vpack.c.bf16 %v249, %v248
  %v299 = vpack.c.bf16 %v251, %v250
  %v300 = vpack.c.bf16 %v253, %v252
  %v301 = vpack.c.bf16 %v255, %v254
  %v302 = vpack.c.bf16 %v257, %v256
  %v303 = vpack.c.bf16 %v259, %v258
  %v304 = vpack.c.bf16 %v261, %v260
  %v305 = vpack.c.bf16 %v263, %v262
  %v306 = vpack.c.bf16 %v265, %v264
  %v307 = vpack.c.bf16 %v267, %v266
  %v308 = vpack.c.bf16 %v269, %v268
  %v309 = vpack.c.bf16 %v271, %v270
  %v310 = vpack.c.bf16 %v273, %v272
  %v311 = vpack.c.bf16 %v275, %v274
  %v312 = vpack.c.bf16 %v277, %v276
  %v313 = vpack.c.bf16 %v279, %v278
  %v314 = vpack.c.bf16 %v281, %v280
  %v315 = vpack.c.bf16 %v283, %v282
  %v348 = vunpack.c.l.b16 %v284
  %v349 = vunpack.c.h.b16 %v284
  %v350 = vunpack.c.l.b16 %v285
  %v351 = vunpack.c.h.b16 %v285
  %v352 = vunpack.c.l.b16 %v286
  %v353 = vunpack.c.h.b16 %v286
  %v354 = vunpack.c.l.b16 %v287
  %v355 = vunpack.c.h.b16 %v287
  %v356 = vunpack.c.l.b16 %v288
  %v357 = vunpack.c.h.b16 %v288
  %v358 = vunpack.c.l.b16 %v289
  %v359 = vunpack.c.h.b16 %v289
  %v360 = vunpack.c.l.b16 %v290
  %v361 = vunpack.c.h.b16 %v290
  %v362 = vunpack.c.l.b16 %v291
  %v363 = vunpack.c.h.b16 %v291
  %v364 = vunpack.c.l.b16 %v292
  %v365 = vunpack.c.h.b16 %v292
  %v366 = vunpack.c.l.b16 %v293
  %v367 = vunpack.c.h.b16 %v293
  %v368 = vunpack.c.l.b16 %v294
  %v369 = vunpack.c.h.b16 %v294
  %v370 = vunpack.c.l.b16 %v295
  %v371 = vunpack.c.h.b16 %v295
  %v372 = vunpack.c.l.b16 %v296
  %v373 = vunpack.c.h.b16 %v296
  %v374 = vunpack.c.l.b16 %v297
  %v375 = vunpack.c.h.b16 %v297
  %v376 = vunpack.c.l.b16 %v298
  %v377 = vunpack.c.h.b16 %v298
  %v378 = vunpack.c.l.b16 %v299
  %v379 = vunpack.c.h.b16 %v299
  %v380 = vunpack.c.l.b16 %v300
  %v381 = vunpack.c.h.b16 %v300
  %v382 = vunpack.c.l.b16 %v301
  %v383 = vunpack.c.h.b16 %v301
  %v384 = vunpack.c.l.b16 %v302
  %v385 = vunpack.c.h.b16 %v302
  %v386 = vunpack.c.l.b16 %v303
  %v387 = vunpack.c.h.b16 %v303
  %v388 = vunpack.c.l.b16 %v304
  %v389 = vunpack.c.h.b16 %v304
  %v390 = vunpack.c.l.b16 %v305
  %v391 = vunpack.c.h.b16 %v305
  %v392 = vunpack.c.l.b16 %v306
  %v393 = vunpack.c.h.b16 %v306
  %v394 = vunpack.c.l.b16 %v307
  %v395 = vunpack.c.h.b16 %v307
  %v396 = vunpack.c.l.b16 %v308
  %v397 = vunpack.c.h.b16 %v308
  %v398 = vunpack.c.l.b16 %v309
  %v399 = vunpack.c.h.b16 %v309
  %v400 = vunpack.c.l.b16 %v310
  %v401 = vunpack.c.h.b16 %v310
  %v402 = vunpack.c.l.b16 %v311
  %v403 = vunpack.c.h.b16 %v311
  %v404 = vunpack.c.l.b16 %v312
  %v405 = vunpack.c.h.b16 %v312
  %v406 = vunpack.c.l.b16 %v313
  %v407 = vunpack.c.h.b16 %v313
  %v408 = vunpack.c.l.b16 %v314
  %v409 = vunpack.c.h.b16 %v314
  %v410 = vunpack.c.l.b16 %v315
  %v411 = vunpack.c.h.b16 %v315
  %v412 = vpack.c.b16 %v348, %v348
  %v413 = vpack.c.b16 %v349, %v349
  %v414 = vpack.c.b16 %v350, %v350
  %v415 = vpack.c.b16 %v351, %v351
  %v416 = vpack.c.b16 %v352, %v352
  %v417 = vpack.c.b16 %v353, %v353
  %v418 = vpack.c.b16 %v354, %v354
  %v419 = vpack.c.b16 %v355, %v355
  %v420 = vpack.c.b16 %v356, %v356
  %v421 = vpack.c.b16 %v357, %v357
  %v422 = vpack.c.b16 %v358, %v358
  %v423 = vpack.c.b16 %v359, %v359
  %v424 = vpack.c.b16 %v360, %v360
  %v425 = vpack.c.b16 %v361, %v361
  %v426 = vpack.c.b16 %v362, %v362
  %v427 = vpack.c.b16 %v363, %v363
  %v428 = vpack.c.b16 %v364, %v364
  %v429 = vpack.c.b16 %v365, %v365
  %v430 = vpack.c.b16 %v366, %v366
  %v431 = vpack.c.b16 %v367, %v367
  %v432 = vpack.c.b16 %v368, %v368
  %v433 = vpack.c.b16 %v369, %v369
  %v434 = vpack.c.b16 %v370, %v370
  %v435 = vpack.c.b16 %v371, %v371
  %v436 = vpack.c.b16 %v372, %v372
  %v437 = vpack.c.b16 %v373, %v373
  %v438 = vpack.c.b16 %v374, %v374
  %v439 = vpack.c.b16 %v375, %v375
  %v440 = vpack.c.b16 %v376, %v376
  %v441 = vpack.c.b16 %v377, %v377
  %v442 = vpack.c.b16 %v378, %v378
  %v443 = vpack.c.b16 %v379, %v379
  %v444 = vpack.c.b16 %v380, %v380
  %v445 = vpack.c.b16 %v381, %v381
  %v446 = vpack.c.b16 %v382, %v382
  %v447 = vpack.c.b16 %v383, %v383
  %v448 = vpack.c.b16 %v384, %v384
  %v449 = vpack.c.b16 %v385, %v385
  %v450 = vpack.c.b16 %v386, %v386
  %v451 = vpack.c.b16 %v387, %v387
  %v452 = vpack.c.b16 %v388, %v388
  %v453 = vpack.c.b16 %v389, %v389
  %v454 = vpack.c.b16 %v390, %v390
  %v455 = vpack.c.b16 %v391, %v391
  %v456 = vpack.c.b16 %v392, %v392
  %v457 = vpack.c.b16 %v393, %v393
  %v458 = vpack.c.b16 %v394, %v394
  %v459 = vpack.c.b16 %v395, %v395
  %v460 = vpack.c.b16 %v396, %v396
  %v461 = vpack.c.b16 %v397, %v397
  %v462 = vpack.c.b16 %v398, %v398
  %v463 = vpack.c.b16 %v399, %v399
  %v464 = vpack.c.b16 %v400, %v400
  %v465 = vpack.c.b16 %v401, %v401
  %v466 = vpack.c.b16 %v402, %v402
  %v467 = vpack.c.b16 %v403, %v403
  %v468 = vpack.c.b16 %v404, %v404
  %v469 = vpack.c.b16 %v405, %v405
  %v470 = vpack.c.b16 %v406, %v406
  %v471 = vpack.c.b16 %v407, %v407
  %v472 = vpack.c.b16 %v408, %v408
  %v473 = vpack.c.b16 %v409, %v409
  %v474 = vpack.c.b16 %v410, %v410
  %v475 = vpack.c.b16 %v411, %v411
  %540 = vst [vmem:[%s3] sm:$0xf] %v412
  %541 = vst [vmem:[%s3 + $0x4] sm:$0xf] %v413
  %542 = vst [vmem:[%s3 + $0x8] sm:$0xf] %v414
  %543 = vst [vmem:[%s3 + $0xc] sm:$0xf] %v415
  %544 = vst [vmem:[%s3 + $0x10] sm:$0xf] %v416
  %545 = vst [vmem:[%s3 + $0x14] sm:$0xf] %v417
  %546 = vst [vmem:[%s3 + $0x18] sm:$0xf] %v418
  %547 = vst [vmem:[%s3 + $0x1c] sm:$0xf] %v419
  %548 = vst [vmem:[%s3 + $0x20] sm:$0xf] %v420
  %549 = vst [vmem:[%s3 + $0x24] sm:$0xf] %v421
  %550 = vst [vmem:[%s3 + $0x28] sm:$0xf] %v422
  %551 = vst [vmem:[%s3 + $0x2c] sm:$0xf] %v423
  %552 = vst [vmem:[%s3 + $0x30] sm:$0xf] %v424
  %553 = vst [vmem:[%s3 + $0x34] sm:$0xf] %v425
  %554 = vst [vmem:[%s3 + $0x38] sm:$0xf] %v426
  %555 = vst [vmem:[%s3 + $0x3c] sm:$0xf] %v427
  %556 = vst [vmem:[%s3 + $0x40] sm:$0xf] %v428
  %557 = vst [vmem:[%s3 + $0x44] sm:$0xf] %v429
  %558 = vst [vmem:[%s3 + $0x48] sm:$0xf] %v430
  %559 = vst [vmem:[%s3 + $0x4c] sm:$0xf] %v431
  %560 = vst [vmem:[%s3 + $0x50] sm:$0xf] %v432
  %561 = vst [vmem:[%s3 + $0x54] sm:$0xf] %v433
  %562 = vst [vmem:[%s3 + $0x58] sm:$0xf] %v434
  %563 = vst [vmem:[%s3 + $0x5c] sm:$0xf] %v435
  %564 = vst [vmem:[%s3 + $0x60] sm:$0xf] %v436
  %565 = vst [vmem:[%s3 + $0x64] sm:$0xf] %v437
  %566 = vst [vmem:[%s3 + $0x68] sm:$0xf] %v438
  %567 = vst [vmem:[%s3 + $0x6c] sm:$0xf] %v439
  %568 = vst [vmem:[%s3 + $0x70] sm:$0xf] %v440
  %569 = vst [vmem:[%s3 + $0x74] sm:$0xf] %v441
  %570 = vst [vmem:[%s3 + $0x78] sm:$0xf] %v442
  %571 = vst [vmem:[%s3 + $0x7c] sm:$0xf] %v443
  %572 = vst [vmem:[%s3 + $0x80] sm:$0xf] %v444
  %573 = vst [vmem:[%s3 + $0x84] sm:$0xf] %v445
  %574 = vst [vmem:[%s3 + $0x88] sm:$0xf] %v446
  %575 = vst [vmem:[%s3 + $0x8c] sm:$0xf] %v447
  %576 = vst [vmem:[%s3 + $0x90] sm:$0xf] %v448
  %577 = vst [vmem:[%s3 + $0x94] sm:$0xf] %v449
  %578 = vst [vmem:[%s3 + $0x98] sm:$0xf] %v450
  %579 = vst [vmem:[%s3 + $0x9c] sm:$0xf] %v451
  %580 = vst [vmem:[%s3 + $0xa0] sm:$0xf] %v452
  %581 = vst [vmem:[%s3 + $0xa4] sm:$0xf] %v453
  %582 = vst [vmem:[%s3 + $0xa8] sm:$0xf] %v454
  %583 = vst [vmem:[%s3 + $0xac] sm:$0xf] %v455
  %584 = vst [vmem:[%s3 + $0xb0] sm:$0xf] %v456
  %585 = vst [vmem:[%s3 + $0xb4] sm:$0xf] %v457
  %586 = vst [vmem:[%s3 + $0xb8] sm:$0xf] %v458
  %587 = vst [vmem:[%s3 + $0xbc] sm:$0xf] %v459
  %588 = vst [vmem:[%s3 + $0xc0] sm:$0xf] %v460
  %589 = vst [vmem:[%s3 + $0xc4] sm:$0xf] %v461
  %590 = vst [vmem:[%s3 + $0xc8] sm:$0xf] %v462
  %591 = vst [vmem:[%s3 + $0xcc] sm:$0xf] %v463
  %592 = vst [vmem:[%s3 + $0xd0] sm:$0xf] %v464
  %593 = vst [vmem:[%s3 + $0xd4] sm:$0xf] %v465
  %594 = vst [vmem:[%s3 + $0xd8] sm:$0xf] %v466
  %595 = vst [vmem:[%s3 + $0xdc] sm:$0xf] %v467
  %596 = vst [vmem:[%s3 + $0xe0] sm:$0xf] %v468
  %597 = vst [vmem:[%s3 + $0xe4] sm:$0xf] %v469
  %598 = vst [vmem:[%s3 + $0xe8] sm:$0xf] %v470
  %599 = vst [vmem:[%s3 + $0xec] sm:$0xf] %v471
  %600 = vst [vmem:[%s3 + $0xf0] sm:$0xf] %v472
  %601 = vst [vmem:[%s3 + $0xf4] sm:$0xf] %v473
  %602 = vst [vmem:[%s3 + $0xf8] sm:$0xf] %v474
  %603 = vst [vmem:[%s3 + $0xfc] sm:$0xf] %v475
  // Predicated region
  $region14: #{up_forward.7} parent=0 // pred_check
    _
  $region15: #{up_forward.7} parent=0 // pred_check_branch
    %605 = sbr.rel (0) target = $region17
  $region16: #{up_forward.7} parent=0 // pred_region
    _
  $region17: #{up_forward.7} parent=0 // pred_fallthru
    _
  // Predicated region
  $region18: #{up_forward.7} parent=0 // pred_check
    _
  $region19: #{up_forward.7} parent=0 // pred_check_branch
    %607 = sbr.rel (0) target = $region21
  $region20: #{up_forward.7} parent=0 // pred_region
    _
  $region21: #{up_forward.7} parent=0 // pred_fallthru
    _

// kernel: up_forward.6
$region0: #{up_forward.6}
  #allocation0 [shape = 'u32[]', space=smem, size = 0x4, offset = 0x4, fixed_abs, tag = 'smem constant byte address 0x4 - core index']
  #allocation1 [shape = 'u32[144,128]{1,0:T(1,128)}', space=vmem, size = 0x12000, scoped, tag = 'internal scratch']
  %s0 = inlined_call_operand.vmem [shape: bf16[512,72], index: 0, kind: input, shape index: {}]
  %s1 = inlined_call_operand.vmem [shape: bf16[72,128], index: 1, kind: input, shape index: {}]
  %s2 = inlined_call_operand.vmem [shape: f32[1,128], index: 2, kind: input, shape index: {}]
  %s3 = inlined_call_operand.vmem [shape: f32[512,128], index: 3, kind: output, shape index: {0}]
  %s4 = inlined_call_operand.vmem [shape: f32[1,8,128], index: 4, kind: output, shape index: {1}]
  %5 = xla_tuple %s3, %s4
  %s6 = sld [smem:[#allocation0]]
  $region30: #{up_forward.6} parent=0
    _
  %s8 = ssub.s32 1, %s6
  %s9 = scalar_select 0, %s8, %s6
  // Predicated region
  $region2: #{up_forward.6} parent=0 // pred_check
    _
  $region3: #{up_forward.6} parent=0 // pred_check_branch
    %11 = sbr.rel (0) target = $region5
  $region4: #{up_forward.6} parent=0 // pred_region
    _
  $region5: #{up_forward.6} parent=0 // pred_fallthru
    _
  // Predicated region
  $region6: #{up_forward.6} parent=0 // pred_check
    _
  $region7: #{up_forward.6} parent=0 // pred_check_branch
    %13 = sbr.rel (0) target = $region9
  $region8: #{up_forward.6} parent=0 // pred_region
    _
  $region9: #{up_forward.6} parent=0 // pred_fallthru
    _
  // Predicated region
  $region10: #{up_forward.6} parent=0 // pred_check
    _
  $region11: #{up_forward.6} parent=0 // pred_check_branch
    %15 = sbr.rel (0) target = $region13
  $region12: #{up_forward.6} parent=0 // pred_region
    _
  $region13: #{up_forward.6} parent=0 // pred_fallthru
    _
  %v17 = vld [vmem:[%s0] sm:$0xf]
  %v18 = vld [vmem:[%s0 + $0x4] sm:$0xf]
  %v19 = vld [vmem:[%s0 + $0x8] sm:$0xf]
  %v20 = vld [vmem:[%s0 + $0xc] sm:$0xf]
  %v21 = vld [vmem:[%s0 + $0x10] sm:$0xf]
  %v22 = vld [vmem:[%s0 + $0x14] sm:$0xf]
  %v23 = vld [vmem:[%s0 + $0x18] sm:$0xf]
  %v24 = vld [vmem:[%s0 + $0x1c] sm:$0xf]
  %v25 = vld [vmem:[%s0 + $0x20] sm:$0xf]
  %v26 = vld [vmem:[%s0 + $0x24] sm:$0xf]
  %v27 = vld [vmem:[%s0 + $0x28] sm:$0xf]
  %v28 = vld [vmem:[%s0 + $0x2c] sm:$0xf]
  %v29 = vld [vmem:[%s0 + $0x30] sm:$0xf]
  %v30 = vld [vmem:[%s0 + $0x34] sm:$0xf]
  %v31 = vld [vmem:[%s0 + $0x38] sm:$0xf]
  %v32 = vld [vmem:[%s0 + $0x3c] sm:$0xf]
  %v33 = vld [vmem:[%s0 + $0x40] sm:$0xf]
  %v34 = vld [vmem:[%s0 + $0x44] sm:$0xf]
  %v35 = vld [vmem:[%s0 + $0x48] sm:$0xf]
  %v36 = vld [vmem:[%s0 + $0x4c] sm:$0xf]
  %v37 = vld [vmem:[%s0 + $0x50] sm:$0xf]
  %v38 = vld [vmem:[%s0 + $0x54] sm:$0xf]
  %v39 = vld [vmem:[%s0 + $0x58] sm:$0xf]
  %v40 = vld [vmem:[%s0 + $0x5c] sm:$0xf]
  %v41 = vld [vmem:[%s0 + $0x60] sm:$0xf]
  %v42 = vld [vmem:[%s0 + $0x64] sm:$0xf]
  %v43 = vld [vmem:[%s0 + $0x68] sm:$0xf]
  %v44 = vld [vmem:[%s0 + $0x6c] sm:$0xf]
  %v45 = vld [vmem:[%s0 + $0x70] sm:$0xf]
  %v46 = vld [vmem:[%s0 + $0x74] sm:$0xf]
  %v47 = vld [vmem:[%s0 + $0x78] sm:$0xf]
  %v48 = vld [vmem:[%s0 + $0x7c] sm:$0xf]
  %v49 = vld [vmem:[%s0 + $0x80] sm:$0xf]
  %v50 = vld [vmem:[%s0 + $0x84] sm:$0xf]
  %v51 = vld [vmem:[%s0 + $0x88] sm:$0xf]
  %v52 = vld [vmem:[%s0 + $0x8c] sm:$0xf]
  %v53 = vld [vmem:[%s0 + $0x90] sm:$0xf]
  %v54 = vld [vmem:[%s0 + $0x94] sm:$0xf]
  %v55 = vld [vmem:[%s0 + $0x98] sm:$0xf]
  %v56 = vld [vmem:[%s0 + $0x9c] sm:$0xf]
  %v57 = vld [vmem:[%s0 + $0xa0] sm:$0xf]
  %v58 = vld [vmem:[%s0 + $0xa4] sm:$0xf]
  %v59 = vld [vmem:[%s0 + $0xa8] sm:$0xf]
  %v60 = vld [vmem:[%s0 + $0xac] sm:$0xf]
  %v61 = vld [vmem:[%s0 + $0xb0] sm:$0xf]
  %v62 = vld [vmem:[%s0 + $0xb4] sm:$0xf]
  %v63 = vld [vmem:[%s0 + $0xb8] sm:$0xf]
  %v64 = vld [vmem:[%s0 + $0xbc] sm:$0xf]
  %v65 = vld [vmem:[%s0 + $0xc0] sm:$0xf]
  %v66 = vld [vmem:[%s0 + $0xc4] sm:$0xf]
  %v67 = vld [vmem:[%s0 + $0xc8] sm:$0xf]
  %v68 = vld [vmem:[%s0 + $0xcc] sm:$0xf]
  %v69 = vld [vmem:[%s0 + $0xd0] sm:$0xf]
  %v70 = vld [vmem:[%s0 + $0xd4] sm:$0xf]
  %v71 = vld [vmem:[%s0 + $0xd8] sm:$0xf]
  %v72 = vld [vmem:[%s0 + $0xdc] sm:$0xf]
  %v73 = vld [vmem:[%s0 + $0xe0] sm:$0xf]
  %v74 = vld [vmem:[%s0 + $0xe4] sm:$0xf]
  %v75 = vld [vmem:[%s0 + $0xe8] sm:$0xf]
  %v76 = vld [vmem:[%s0 + $0xec] sm:$0xf]
  %v77 = vld [vmem:[%s0 + $0xf0] sm:$0xf]
  %v78 = vld [vmem:[%s0 + $0xf4] sm:$0xf]
  %v79 = vld [vmem:[%s0 + $0xf8] sm:$0xf]
  %v80 = vld [vmem:[%s0 + $0xfc] sm:$0xf]
  %v81 = vld [vmem:[%s1] sm:$0xf]
  %v82 = vld [vmem:[%s1 + $0x4] sm:$0xf]
  %v83 = vld [vmem:[%s1 + $0x8] sm:$0xf]
  %v84 = vld [vmem:[%s1 + $0xc] sm:$0xf]
  %v85 = vld [vmem:[%s1 + $0x10] sm:$0xf]
  %v86 = vld [vmem:[%s1 + $0x14] sm:$0xf]
  %v87 = vld [vmem:[%s1 + $0x18] sm:$0xf]
  %v88 = vld [vmem:[%s1 + $0x1c] sm:$0xf]
  %v89 = vld [vmem:[%s1 + $0x20] sm:$0xf]
  %v90 = vld [vmem:[%s2] sm:$0x1]
  %v92 = vlaneseq
  %v93 = vshrl.u32 %v92, 7
  %v94 = vsub.s32 0, %v93
  %v95 = vrot.slane %v90, %v94
  %v161 = vunpack.c.l.b16 %v17
  %v162 = vunpack.c.l.b16 %v18
  %v163 = vunpack.c.l.b16 %v19
  %v164 = vunpack.c.l.b16 %v20
  %v165 = vunpack.c.l.b16 %v21
  %v166 = vunpack.c.l.b16 %v22
  %v167 = vunpack.c.l.b16 %v23
  %v168 = vunpack.c.l.b16 %v24
  %v169 = vunpack.c.l.b16 %v25
  %v170 = vunpack.c.l.b16 %v26
  %v171 = vunpack.c.l.b16 %v27
  %v172 = vunpack.c.l.b16 %v28
  %v173 = vunpack.c.l.b16 %v29
  %v174 = vunpack.c.l.b16 %v30
  %v175 = vunpack.c.l.b16 %v31
  %v176 = vunpack.c.l.b16 %v32
  %v177 = vunpack.c.l.b16 %v33
  %v178 = vunpack.c.l.b16 %v34
  %v179 = vunpack.c.l.b16 %v35
  %v180 = vunpack.c.l.b16 %v36
  %v181 = vunpack.c.l.b16 %v37
  %v182 = vunpack.c.l.b16 %v38
  %v183 = vunpack.c.l.b16 %v39
  %v184 = vunpack.c.l.b16 %v40
  %v185 = vunpack.c.l.b16 %v41
  %v186 = vunpack.c.l.b16 %v42
  %v187 = vunpack.c.l.b16 %v43
  %v188 = vunpack.c.l.b16 %v44
  %v189 = vunpack.c.l.b16 %v45
  %v190 = vunpack.c.l.b16 %v46
  %v191 = vunpack.c.l.b16 %v47
  %v192 = vunpack.c.l.b16 %v48
  %v193 = vunpack.c.l.b16 %v49
  %v194 = vunpack.c.l.b16 %v50
  %v195 = vunpack.c.l.b16 %v51
  %v196 = vunpack.c.l.b16 %v52
  %v197 = vunpack.c.l.b16 %v53
  %v198 = vunpack.c.l.b16 %v54
  %v199 = vunpack.c.l.b16 %v55
  %v200 = vunpack.c.l.b16 %v56
  %v201 = vunpack.c.l.b16 %v57
  %v202 = vunpack.c.l.b16 %v58
  %v203 = vunpack.c.l.b16 %v59
  %v204 = vunpack.c.l.b16 %v60
  %v205 = vunpack.c.l.b16 %v61
  %v206 = vunpack.c.l.b16 %v62
  %v207 = vunpack.c.l.b16 %v63
  %v208 = vunpack.c.l.b16 %v64
  %v209 = vunpack.c.l.b16 %v65
  %v210 = vunpack.c.l.b16 %v66
  %v211 = vunpack.c.l.b16 %v67
  %v212 = vunpack.c.l.b16 %v68
  %v213 = vunpack.c.l.b16 %v69
  %v214 = vunpack.c.l.b16 %v70
  %v215 = vunpack.c.l.b16 %v71
  %v216 = vunpack.c.l.b16 %v72
  %v217 = vunpack.c.l.b16 %v73
  %v218 = vunpack.c.l.b16 %v74
  %v219 = vunpack.c.l.b16 %v75
  %v220 = vunpack.c.l.b16 %v76
  %v221 = vunpack.c.l.b16 %v77
  %v222 = vunpack.c.l.b16 %v78
  %v223 = vunpack.c.l.b16 %v79
  %v224 = vunpack.c.l.b16 %v80
  %v225 = vpack.c.b16 %v162, %v161
  %v226 = vpack.c.b16 %v164, %v163
  %v227 = vpack.c.b16 %v166, %v165
  %v228 = vpack.c.b16 %v168, %v167
  %v229 = vpack.c.b16 %v170, %v169
  %v230 = vpack.c.b16 %v172, %v171
  %v231 = vpack.c.b16 %v174, %v173
  %v232 = vpack.c.b16 %v176, %v175
  %v233 = vpack.c.b16 %v178, %v177
  %v234 = vpack.c.b16 %v180, %v179
  %v235 = vpack.c.b16 %v182, %v181
  %v236 = vpack.c.b16 %v184, %v183
  %v237 = vpack.c.b16 %v186, %v185
  %v238 = vpack.c.b16 %v188, %v187
  %v239 = vpack.c.b16 %v190, %v189
  %v240 = vpack.c.b16 %v192, %v191
  %v241 = vpack.c.b16 %v194, %v193
  %v242 = vpack.c.b16 %v196, %v195
  %v243 = vpack.c.b16 %v198, %v197
  %v244 = vpack.c.b16 %v200, %v199
  %v245 = vpack.c.b16 %v202, %v201
  %v246 = vpack.c.b16 %v204, %v203
  %v247 = vpack.c.b16 %v206, %v205
  %v248 = vpack.c.b16 %v208, %v207
  %v249 = vpack.c.b16 %v210, %v209
  %v250 = vpack.c.b16 %v212, %v211
  %v251 = vpack.c.b16 %v214, %v213
  %v252 = vpack.c.b16 %v216, %v215
  %v253 = vpack.c.b16 %v218, %v217
  %v254 = vpack.c.b16 %v220, %v219
  %v255 = vpack.c.b16 %v222, %v221
  %v256 = vpack.c.b16 %v224, %v223
  %v266 = vunpack.c.l.b16 %v81
  %v267 = vunpack.c.l.b16 %v82
  %v268 = vunpack.c.l.b16 %v83
  %v269 = vunpack.c.l.b16 %v84
  %v270 = vunpack.c.l.b16 %v85
  %v271 = vunpack.c.l.b16 %v86
  %v272 = vunpack.c.l.b16 %v87
  %v273 = vunpack.c.l.b16 %v88
  %v274 = vunpack.c.l.b16 %v89
  %v275 = vpack.c.b16 %v267, %v266
  %v276 = vpack.c.b16 %v269, %v268
  %v277 = vpack.c.b16 %v271, %v270
  %v278 = vpack.c.b16 %v273, %v272
  %v279 = vpack.c.b16 %v274, %v274
  %vm284 = vcmask 588800
  %v286 = vsel %vm284, %v225, 0
  %v289 = vsel %vm284, %v226, 0
  %v292 = vsel %vm284, %v227, 0
  %v295 = vsel %vm284, %v228, 0
  %v298 = vsel %vm284, %v229, 0
  %v301 = vsel %vm284, %v230, 0
  %v304 = vsel %vm284, %v231, 0
  %v307 = vsel %vm284, %v232, 0
  %v310 = vsel %vm284, %v233, 0
  %v313 = vsel %vm284, %v234, 0
  %v316 = vsel %vm284, %v235, 0
  %v319 = vsel %vm284, %v236, 0
  %v322 = vsel %vm284, %v237, 0
  %v325 = vsel %vm284, %v238, 0
  %v328 = vsel %vm284, %v239, 0
  %v331 = vsel %vm284, %v240, 0
  %v334 = vsel %vm284, %v241, 0
  %v337 = vsel %vm284, %v242, 0
  %v340 = vsel %vm284, %v243, 0
  %v343 = vsel %vm284, %v244, 0
  %v346 = vsel %vm284, %v245, 0
  %v349 = vsel %vm284, %v246, 0
  %v352 = vsel %vm284, %v247, 0
  %v355 = vsel %vm284, %v248, 0
  %v358 = vsel %vm284, %v249, 0
  %v361 = vsel %vm284, %v250, 0
  %v364 = vsel %vm284, %v251, 0
  %v367 = vsel %vm284, %v252, 0
  %v370 = vsel %vm284, %v253, 0
  %v373 = vsel %vm284, %v254, 0
  %v376 = vsel %vm284, %v255, 0
  %v379 = vsel %vm284, %v256, 0
  %vm381 = vcmask 1043456
  %v383 = vsel %vm381, %v279, 0
  %385 = vmatprep.subr.bf16.mxu0 0
  %386 = vmatpush1.bf16.msra.mxu0 %v275
  %387 = vmatprep.subr.bf16.mxu0 0
  %388 = vmatpush1.bf16.msra.mxu0 %v276
  %389 = vmatprep.subr.bf16.mxu0 0
  %390 = vmatpush1.bf16.msra.mxu0 %v277
  %391 = vmatprep.subr.bf16.mxu0 0
  %392 = vmatpush1.bf16.msra.mxu0 %v278
  %393 = vmatprep.subr.bf16.mxu0 0
  %394 = vmatpush1.bf16.msra.mxu0 %v383
  %395 = vmatprep.subr.bf16.mxu0 0
  %396 = vmatpush1.bf16.msra.mxu0 0
  %397 = vmatprep.subr.bf16.mxu0 0
  %398 = vmatpush1.bf16.msra.mxu0 0
  %399 = vmatprep.subr.bf16.mxu0 0
  %400 = vmatpush1.bf16.msra.mxu0 0
  %401 = vmatprep.subr.bf16.mxu0 0
  %402 = vmatpush1.bf16.msra.mxu0 0
  %403 = vmatprep.subr.bf16.mxu0 0
  %404 = vmatpush1.bf16.msra.mxu0 0
  %405 = vmatprep.subr.bf16.mxu0 0
  %406 = vmatpush1.bf16.msra.mxu0 0
  %407 = vmatprep.subr.bf16.mxu0 0
  %408 = vmatpush1.bf16.msra.mxu0 0
  %409 = vmatprep.subr.bf16.mxu0 0
  %410 = vmatpush1.bf16.msra.mxu0 0
  %411 = vmatprep.subr.bf16.mxu0 0
  %412 = vmatpush1.bf16.msra.mxu0 0
  %413 = vmatprep.subr.bf16.mxu0 0
  %414 = vmatpush1.bf16.msra.mxu0 0
  %415 = vmatprep.subr.bf16.mxu0 0
  %416 = vmatpush1.bf16.msra.mxu0 0
  %417 = vmatprep.mubr.bf16.mxu0 0
  %418 = vmatmul.mubr.bf16.gmra.mrb[0].mxu0 %v286
  %v419 = vpop.f32.mrb[0].mxu0
  %v420 = vadd.f32 %v95, %v419
  %v421 = vpop.f32.mrb[0].mxu0
  %v422 = vpop.f32.mrb[0].mxu0
  %v423 = vadd.f32 %v95, %v422
  %v424 = vpop.f32.mrb[0].mxu0
  %425 = vmatprep.mubr.bf16.mxu0 0
  %426 = vmatmul.mubr.bf16.gmra.mrb[0].mxu0 %v289
  %v427 = vpop.f32.mrb[0].mxu0
  %v428 = vadd.f32 %v95, %v427
  %v429 = vpop.f32.mrb[0].mxu0
  %v430 = vpop.f32.mrb[0].mxu0
  %v431 = vadd.f32 %v95, %v430
  %v432 = vpop.f32.mrb[0].mxu0
  %433 = vmatprep.mubr.bf16.mxu0 0
  %434 = vmatmul.mubr.bf16.gmra.mrb[0].mxu0 %v292
  %v435 = vpop.f32.mrb[0].mxu0
  %v436 = vadd.f32 %v95, %v435
  %v437 = vpop.f32.mrb[0].mxu0
  %v438 = vpop.f32.mrb[0].mxu0
  %v439 = vadd.f32 %v95, %v438
  %v440 = vpop.f32.mrb[0].mxu0
  %441 = vmatprep.mubr.bf16.mxu0 0
  %442 = vmatmul.mubr.bf16.gmra.mrb[0].mxu0 %v295
  %v443 = vpop.f32.mrb[0].mxu0
  %v444 = vadd.f32 %v95, %v443
  %v445 = vpop.f32.mrb[0].mxu0
  %v446 = vpop.f32.mrb[0].mxu0
  %v447 = vadd.f32 %v95, %v446
  %v448 = vpop.f32.mrb[0].mxu0
  %449 = vmatprep.mubr.bf16.mxu0 0
  %450 = vmatmul.mubr.bf16.gmra.mrb[0].mxu0 %v298
  %v451 = vpop.f32.mrb[0].mxu0
  %v452 = vadd.f32 %v95, %v451
  %v453 = vpop.f32.mrb[0].mxu0
  %v454 = vpop.f32.mrb[0].mxu0
  %v455 = vadd.f32 %v95, %v454
  %v456 = vpop.f32.mrb[0].mxu0
  %457 = vmatprep.mubr.bf16.mxu0 0
  %458 = vmatmul.mubr.bf16.gmra.mrb[0].mxu0 %v301
  %v459 = vpop.f32.mrb[0].mxu0
  %v460 = vadd.f32 %v95, %v459
  %v461 = vpop.f32.mrb[0].mxu0
  %v462 = vpop.f32.mrb[0].mxu0
  %v463 = vadd.f32 %v95, %v462
  %v464 = vpop.f32.mrb[0].mxu0
  %465 = vmatprep.mubr.bf16.mxu0 0
  %466 = vmatmul.mubr.bf16.gmra.mrb[0].mxu0 %v304
  %v467 = vpop.f32.mrb[0].mxu0
  %v468 = vadd.f32 %v95, %v467
  %v469 = vpop.f32.mrb[0].mxu0
  %v470 = vpop.f32.mrb[0].mxu0
  %v471 = vadd.f32 %v95, %v470
  %v472 = vpop.f32.mrb[0].mxu0
  %473 = vmatprep.mubr.bf16.mxu0 0
  %474 = vmatmul.mubr.bf16.gmra.mrb[0].mxu0 %v307
  %v475 = vpop.f32.mrb[0].mxu0
  %v476 = vadd.f32 %v95, %v475
  %v477 = vpop.f32.mrb[0].mxu0
  %v478 = vpop.f32.mrb[0].mxu0
  %v479 = vadd.f32 %v95, %v478
  %v480 = vpop.f32.mrb[0].mxu0
  %481 = vmatprep.mubr.bf16.mxu0 0
  %482 = vmatmul.mubr.bf16.gmra.mrb[0].mxu0 %v310
  %v483 = vpop.f32.mrb[0].mxu0
  %v484 = vadd.f32 %v95, %v483
  %v485 = vpop.f32.mrb[0].mxu0
  %v486 = vpop.f32.mrb[0].mxu0
  %v487 = vadd.f32 %v95, %v486
  %v488 = vpop.f32.mrb[0].mxu0
  %489 = vmatprep.mubr.bf16.mxu0 0
  %490 = vmatmul.mubr.bf16.gmra.mrb[0].mxu0 %v313
  %v491 = vpop.f32.mrb[0].mxu0
  %v492 = vadd.f32 %v95, %v491
  %v493 = vpop.f32.mrb[0].mxu0
  %v494 = vpop.f32.mrb[0].mxu0
  %v495 = vadd.f32 %v95, %v494
  %v496 = vpop.f32.mrb[0].mxu0
  %497 = vmatprep.mubr.bf16.mxu0 0
  %498 = vmatmul.mubr.bf16.gmra.mrb[0].mxu0 %v316
  %v499 = vpop.f32.mrb[0].mxu0
  %v500 = vadd.f32 %v95, %v499
  %v501 = vpop.f32.mrb[0].mxu0
  %v502 = vpop.f32.mrb[0].mxu0
  %v503 = vadd.f32 %v95, %v502
  %v504 = vpop.f32.mrb[0].mxu0
  %505 = vmatprep.mubr.bf16.mxu0 0
  %506 = vmatmul.mubr.bf16.gmra.mrb[0].mxu0 %v319
  %v507 = vpop.f32.mrb[0].mxu0
  %v508 = vadd.f32 %v95, %v507
  %v509 = vpop.f32.mrb[0].mxu0
  %v510 = vpop.f32.mrb[0].mxu0
  %v511 = vadd.f32 %v95, %v510
  %v512 = vpop.f32.mrb[0].mxu0
  %513 = vmatprep.mubr.bf16.mxu0 0
  %514 = vmatmul.mubr.bf16.gmra.mrb[0].mxu0 %v322
  %v515 = vpop.f32.mrb[0].mxu0
  %v516 = vadd.f32 %v95, %v515
  %v517 = vpop.f32.mrb[0].mxu0
  %v518 = vpop.f32.mrb[0].mxu0
  %v519 = vadd.f32 %v95, %v518
  %v520 = vpop.f32.mrb[0].mxu0
  %521 = vmatprep.mubr.bf16.mxu0 0
  %522 = vmatmul.mubr.bf16.gmra.mrb[0].mxu0 %v325
  %v523 = vpop.f32.mrb[0].mxu0
  %v524 = vadd.f32 %v95, %v523
  %v525 = vpop.f32.mrb[0].mxu0
  %v526 = vpop.f32.mrb[0].mxu0
  %v527 = vadd.f32 %v95, %v526
  %v528 = vpop.f32.mrb[0].mxu0
  %529 = vmatprep.mubr.bf16.mxu0 0
  %530 = vmatmul.mubr.bf16.gmra.mrb[0].mxu0 %v328
  %v531 = vpop.f32.mrb[0].mxu0
  %v532 = vadd.f32 %v95, %v531
  %v533 = vpop.f32.mrb[0].mxu0
  %v534 = vpop.f32.mrb[0].mxu0
  %v535 = vadd.f32 %v95, %v534
  %v536 = vpop.f32.mrb[0].mxu0
  %537 = vmatprep.mubr.bf16.mxu0 0
  %538 = vmatmul.mubr.bf16.gmra.mrb[0].mxu0 %v331
  %v539 = vpop.f32.mrb[0].mxu0
  %v540 = vadd.f32 %v95, %v539
  %v541 = vpop.f32.mrb[0].mxu0
  %v542 = vpop.f32.mrb[0].mxu0
  %v543 = vadd.f32 %v95, %v542
  %v544 = vpop.f32.mrb[0].mxu0
  %545 = vmatprep.mubr.bf16.mxu0 0
  %546 = vmatmul.mubr.bf16.gmra.mrb[0].mxu0 %v334
  %v547 = vpop.f32.mrb[0].mxu0
  %v548 = vadd.f32 %v95, %v547
  %v549 = vpop.f32.mrb[0].mxu0
  %v550 = vpop.f32.mrb[0].mxu0
  %v551 = vadd.f32 %v95, %v550
  %v552 = vpop.f32.mrb[0].mxu0
  %553 = vmatprep.mubr.bf16.mxu0 0
  %554 = vmatmul.mubr.bf16.gmra.mrb[0].mxu0 %v337
  %v555 = vpop.f32.mrb[0].mxu0
  %v556 = vadd.f32 %v95, %v555
  %v557 = vpop.f32.mrb[0].mxu0
  %v558 = vpop.f32.mrb[0].mxu0
  %v559 = vadd.f32 %v95, %v558
  %v560 = vpop.f32.mrb[0].mxu0
  %561 = vmatprep.mubr.bf16.mxu0 0
  %562 = vmatmul.mubr.bf16.gmra.mrb[0].mxu0 %v340
  %v563 = vpop.f32.mrb[0].mxu0
  %v564 = vadd.f32 %v95, %v563
  %v565 = vpop.f32.mrb[0].mxu0
  %v566 = vpop.f32.mrb[0].mxu0
  %v567 = vadd.f32 %v95, %v566
  %v568 = vpop.f32.mrb[0].mxu0
  %569 = vmatprep.mubr.bf16.mxu0 0
  %570 = vmatmul.mubr.bf16.gmra.mrb[0].mxu0 %v343
  %v571 = vpop.f32.mrb[0].mxu0
  %v572 = vadd.f32 %v95, %v571
  %v573 = vpop.f32.mrb[0].mxu0
  %v574 = vpop.f32.mrb[0].mxu0
  %v575 = vadd.f32 %v95, %v574
  %v576 = vpop.f32.mrb[0].mxu0
  %577 = vmatprep.mubr.bf16.mxu0 0
  %578 = vmatmul.mubr.bf16.gmra.mrb[0].mxu0 %v346
  %v579 = vpop.f32.mrb[0].mxu0
  %v580 = vadd.f32 %v95, %v579
  %v581 = vpop.f32.mrb[0].mxu0
  %v582 = vpop.f32.mrb[0].mxu0
  %v583 = vadd.f32 %v95, %v582
  %v584 = vpop.f32.mrb[0].mxu0
  %585 = vmatprep.mubr.bf16.mxu0 0
  %586 = vmatmul.mubr.bf16.gmra.mrb[0].mxu0 %v349
  %v587 = vpop.f32.mrb[0].mxu0
  %v588 = vadd.f32 %v95, %v587
  %v589 = vpop.f32.mrb[0].mxu0
  %v590 = vpop.f32.mrb[0].mxu0
  %v591 = vadd.f32 %v95, %v590
  %v592 = vpop.f32.mrb[0].mxu0
  %593 = vmatprep.mubr.bf16.mxu0 0
  %594 = vmatmul.mubr.bf16.gmra.mrb[0].mxu0 %v352
  %v595 = vpop.f32.mrb[0].mxu0
  %v596 = vadd.f32 %v95, %v595
  %v597 = vpop.f32.mrb[0].mxu0
  %v598 = vpop.f32.mrb[0].mxu0
  %v599 = vadd.f32 %v95, %v598
  %v600 = vpop.f32.mrb[0].mxu0
  %601 = vmatprep.mubr.bf16.mxu0 0
  %602 = vmatmul.mubr.bf16.gmra.mrb[0].mxu0 %v355
  %v603 = vpop.f32.mrb[0].mxu0
  %v604 = vadd.f32 %v95, %v603
  %v605 = vpop.f32.mrb[0].mxu0
  %v606 = vpop.f32.mrb[0].mxu0
  %v607 = vadd.f32 %v95, %v606
  %v608 = vpop.f32.mrb[0].mxu0
  %609 = vmatprep.mubr.bf16.mxu0 0
  %610 = vmatmul.mubr.bf16.gmra.mrb[0].mxu0 %v358
  %v611 = vpop.f32.mrb[0].mxu0
  %v612 = vadd.f32 %v95, %v611
  %v613 = vpop.f32.mrb[0].mxu0
  %v614 = vpop.f32.mrb[0].mxu0
  %v615 = vadd.f32 %v95, %v614
  %v616 = vpop.f32.mrb[0].mxu0
  %617 = vmatprep.mubr.bf16.mxu0 0
  %618 = vmatmul.mubr.bf16.gmra.mrb[0].mxu0 %v361
  %v619 = vpop.f32.mrb[0].mxu0
  %v620 = vadd.f32 %v95, %v619
  %v621 = vpop.f32.mrb[0].mxu0
  %v622 = vpop.f32.mrb[0].mxu0
  %v623 = vadd.f32 %v95, %v622
  %v624 = vpop.f32.mrb[0].mxu0
  %625 = vmatprep.mubr.bf16.mxu0 0
  %626 = vmatmul.mubr.bf16.gmra.mrb[0].mxu0 %v364
  %v627 = vpop.f32.mrb[0].mxu0
  %v628 = vadd.f32 %v95, %v627
  %v629 = vpop.f32.mrb[0].mxu0
  %v630 = vpop.f32.mrb[0].mxu0
  %v631 = vadd.f32 %v95, %v630
  %v632 = vpop.f32.mrb[0].mxu0
  %633 = vmatprep.mubr.bf16.mxu0 0
  %634 = vmatmul.mubr.bf16.gmra.mrb[0].mxu0 %v367
  %v635 = vpop.f32.mrb[0].mxu0
  %v636 = vadd.f32 %v95, %v635
  %v637 = vpop.f32.mrb[0].mxu0
  %v638 = vpop.f32.mrb[0].mxu0
  %v639 = vadd.f32 %v95, %v638
  %v640 = vpop.f32.mrb[0].mxu0
  %641 = vmatprep.mubr.bf16.mxu0 0
  %642 = vmatmul.mubr.bf16.gmra.mrb[0].mxu0 %v370
  %v643 = vpop.f32.mrb[0].mxu0
  %v644 = vadd.f32 %v95, %v643
  %v645 = vpop.f32.mrb[0].mxu0
  %v646 = vpop.f32.mrb[0].mxu0
  %v647 = vadd.f32 %v95, %v646
  %v648 = vpop.f32.mrb[0].mxu0
  %649 = vmatprep.mubr.bf16.mxu0 0
  %650 = vmatmul.mubr.bf16.gmra.mrb[0].mxu0 %v373
  %v651 = vpop.f32.mrb[0].mxu0
  %v652 = vadd.f32 %v95, %v651
  %v653 = vpop.f32.mrb[0].mxu0
  %v654 = vpop.f32.mrb[0].mxu0
  %v655 = vadd.f32 %v95, %v654
  %v656 = vpop.f32.mrb[0].mxu0
  %657 = vmatprep.mubr.bf16.mxu0 0
  %658 = vmatmul.mubr.bf16.gmra.mrb[0].mxu0 %v376
  %v659 = vpop.f32.mrb[0].mxu0
  %v660 = vadd.f32 %v95, %v659
  %v661 = vpop.f32.mrb[0].mxu0
  %v662 = vpop.f32.mrb[0].mxu0
  %v663 = vadd.f32 %v95, %v662
  %v664 = vpop.f32.mrb[0].mxu0
  %665 = vmatprep.mubr.bf16.mxu0 0
  %666 = vmatmul.mubr.bf16.gmra.mrb[0].mxu0 %v379
  %v667 = vpop.f32.mrb[0].mxu0
  %v668 = vadd.f32 %v95, %v667
  %v669 = vpop.f32.mrb[0].mxu0
  %v670 = vpop.f32.mrb[0].mxu0
  %v671 = vadd.f32 %v95, %v670
  %v672 = vpop.f32.mrb[0].mxu0
  %673 = vdwg.mxu0
  %674 = vst [vmem:[%s3] sm:$0xff] %v420
  %675 = vst [vmem:[%s3 + $0x8] sm:$0xff] %v423
  %676 = vst [vmem:[%s3 + $0x10] sm:$0xff] %v428
  %677 = vst [vmem:[%s3 + $0x18] sm:$0xff] %v431
  %678 = vst [vmem:[%s3 + $0x20] sm:$0xff] %v436
  %679 = vst [vmem:[%s3 + $0x28] sm:$0xff] %v439
  %680 = vst [vmem:[%s3 + $0x30] sm:$0xff] %v444
  %681 = vst [vmem:[%s3 + $0x38] sm:$0xff] %v447
  %682 = vst [vmem:[%s3 + $0x40] sm:$0xff] %v452
  %683 = vst [vmem:[%s3 + $0x48] sm:$0xff] %v455
  %684 = vst [vmem:[%s3 + $0x50] sm:$0xff] %v460
  %685 = vst [vmem:[%s3 + $0x58] sm:$0xff] %v463
  %686 = vst [vmem:[%s3 + $0x60] sm:$0xff] %v468
  %687 = vst [vmem:[%s3 + $0x68] sm:$0xff] %v471
  %688 = vst [vmem:[%s3 + $0x70] sm:$0xff] %v476
  %689 = vst [vmem:[%s3 + $0x78] sm:$0xff] %v479
  %690 = vst [vmem:[%s3 + $0x80] sm:$0xff] %v484
  %691 = vst [vmem:[%s3 + $0x88] sm:$0xff] %v487
  %692 = vst [vmem:[%s3 + $0x90] sm:$0xff] %v492
  %693 = vst [vmem:[%s3 + $0x98] sm:$0xff] %v495
  %694 = vst [vmem:[%s3 + $0xa0] sm:$0xff] %v500
  %695 = vst [vmem:[%s3 + $0xa8] sm:$0xff] %v503
  %696 = vst [vmem:[%s3 + $0xb0] sm:$0xff] %v508
  %697 = vst [vmem:[%s3 + $0xb8] sm:$0xff] %v511
  %698 = vst [vmem:[%s3 + $0xc0] sm:$0xff] %v516
  %699 = vst [vmem:[%s3 + $0xc8] sm:$0xff] %v519
  %700 = vst [vmem:[%s3 + $0xd0] sm:$0xff] %v524
  %701 = vst [vmem:[%s3 + $0xd8] sm:$0xff] %v527
  %702 = vst [vmem:[%s3 + $0xe0] sm:$0xff] %v532
  %703 = vst [vmem:[%s3 + $0xe8] sm:$0xff] %v535
  %704 = vst [vmem:[%s3 + $0xf0] sm:$0xff] %v540
  %705 = vst [vmem:[%s3 + $0xf8] sm:$0xff] %v543
  %706 = vst [vmem:[%s3 + $0x100] sm:$0xff] %v548
  %707 = vst [vmem:[%s3 + $0x108] sm:$0xff] %v551
  %708 = vst [vmem:[%s3 + $0x110] sm:$0xff] %v556
  %709 = vst [vmem:[%s3 + $0x118] sm:$0xff] %v559
  %710 = vst [vmem:[%s3 + $0x120] sm:$0xff] %v564
  %711 = vst [vmem:[%s3 + $0x128] sm:$0xff] %v567
  %712 = vst [vmem:[%s3 + $0x130] sm:$0xff] %v572
  %713 = vst [vmem:[%s3 + $0x138] sm:$0xff] %v575
  %714 = vst [vmem:[%s3 + $0x140] sm:$0xff] %v580
  %715 = vst [vmem:[%s3 + $0x148] sm:$0xff] %v583
  %716 = vst [vmem:[%s3 + $0x150] sm:$0xff] %v588
  %717 = vst [vmem:[%s3 + $0x158] sm:$0xff] %v591
  %718 = vst [vmem:[%s3 + $0x160] sm:$0xff] %v596
  %719 = vst [vmem:[%s3 + $0x168] sm:$0xff] %v599
  %720 = vst [vmem:[%s3 + $0x170] sm:$0xff] %v604
  %721 = vst [vmem:[%s3 + $0x178] sm:$0xff] %v607
  %722 = vst [vmem:[%s3 + $0x180] sm:$0xff] %v612
  %723 = vst [vmem:[%s3 + $0x188] sm:$0xff] %v615
  %724 = vst [vmem:[%s3 + $0x190] sm:$0xff] %v620
  %725 = vst [vmem:[%s3 + $0x198] sm:$0xff] %v623
  %726 = vst [vmem:[%s3 + $0x1a0] sm:$0xff] %v628
  %727 = vst [vmem:[%s3 + $0x1a8] sm:$0xff] %v631
  %728 = vst [vmem:[%s3 + $0x1b0] sm:$0xff] %v636
  %729 = vst [vmem:[%s3 + $0x1b8] sm:$0xff] %v639
  %730 = vst [vmem:[%s3 + $0x1c0] sm:$0xff] %v644
  %731 = vst [vmem:[%s3 + $0x1c8] sm:$0xff] %v647
  %732 = vst [vmem:[%s3 + $0x1d0] sm:$0xff] %v652
  %733 = vst [vmem:[%s3 + $0x1d8] sm:$0xff] %v655
  %734 = vst [vmem:[%s3 + $0x1e0] sm:$0xff] %v660
  %735 = vst [vmem:[%s3 + $0x1e8] sm:$0xff] %v663
  %736 = vst [vmem:[%s3 + $0x1f0] sm:$0xff] %v668
  %737 = vst [vmem:[%s3 + $0x1f8] sm:$0xff] %v671
  %v738 = vadd.f32 %v420, %v423
  %v739 = vadd.f32 %v738, %v428
  %v740 = vadd.f32 %v739, %v431
  %v741 = vadd.f32 %v740, %v436
  %v742 = vadd.f32 %v741, %v439
  %v743 = vadd.f32 %v742, %v444
  %v744 = vadd.f32 %v743, %v447
  %v745 = vadd.f32 %v744, %v452
  %v746 = vadd.f32 %v745, %v455
  %v747 = vadd.f32 %v746, %v460
  %v748 = vadd.f32 %v747, %v463
  %v749 = vadd.f32 %v748, %v468
  %v750 = vadd.f32 %v749, %v471
  %v751 = vadd.f32 %v750, %v476
  %v752 = vadd.f32 %v751, %v479
  %v753 = vadd.f32 %v752, %v484
  %v754 = vadd.f32 %v753, %v487
  %v755 = vadd.f32 %v754, %v492
  %v756 = vadd.f32 %v755, %v495
  %v757 = vadd.f32 %v756, %v500
  %v758 = vadd.f32 %v757, %v503
  %v759 = vadd.f32 %v758, %v508
  %v760 = vadd.f32 %v759, %v511
  %v761 = vadd.f32 %v760, %v516
  %v762 = vadd.f32 %v761, %v519
  %v763 = vadd.f32 %v762, %v524
  %v764 = vadd.f32 %v763, %v527
  %v765 = vadd.f32 %v764, %v532
  %v766 = vadd.f32 %v765, %v535
  %v767 = vadd.f32 %v766, %v540
  %v768 = vadd.f32 %v767, %v543
  %v769 = vadd.f32 %v768, %v548
  %v770 = vadd.f32 %v769, %v551
  %v771 = vadd.f32 %v770, %v556
  %v772 = vadd.f32 %v771, %v559
  %v773 = vadd.f32 %v772, %v564
  %v774 = vadd.f32 %v773, %v567
  %v775 = vadd.f32 %v774, %v572
  %v776 = vadd.f32 %v775, %v575
  %v777 = vadd.f32 %v776, %v580
  %v778 = vadd.f32 %v777, %v583
  %v779 = vadd.f32 %v778, %v588
  %v780 = vadd.f32 %v779, %v591
  %v781 = vadd.f32 %v780, %v596
  %v782 = vadd.f32 %v781, %v599
  %v783 = vadd.f32 %v782, %v604
  %v784 = vadd.f32 %v783, %v607
  %v785 = vadd.f32 %v784, %v612
  %v786 = vadd.f32 %v785, %v615
  %v787 = vadd.f32 %v786, %v620
  %v788 = vadd.f32 %v787, %v623
  %v789 = vadd.f32 %v788, %v628
  %v790 = vadd.f32 %v789, %v631
  %v791 = vadd.f32 %v790, %v636
  %v792 = vadd.f32 %v791, %v639
  %v793 = vadd.f32 %v792, %v644
  %v794 = vadd.f32 %v793, %v647
  %v795 = vadd.f32 %v794, %v652
  %v796 = vadd.f32 %v795, %v655
  %v797 = vadd.f32 %v796, %v660
  %v798 = vadd.f32 %v797, %v663
  %v799 = vadd.f32 %v798, %v668
  %v800 = vadd.f32 %v799, %v671
  %v801 = vrot.slane %v800, 4
  %v802 = vadd.f32 %v800, %v801
  %v803 = vrot.slane %v802, 2
  %v804 = vadd.f32 %v802, %v803
  %v805 = vrot.slane %v804, 1
  %v806 = vadd.f32 %v804, %v805
  %v807 = vmul.f32 %v420, %v420
  %v808 = vmul.f32 %v423, %v423
  %v809 = vmul.f32 %v428, %v428
  %v810 = vmul.f32 %v431, %v431
  %v811 = vmul.f32 %v436, %v436
  %v812 = vmul.f32 %v439, %v439
  %v813 = vmul.f32 %v444, %v444
  %v814 = vmul.f32 %v447, %v447
  %v815 = vmul.f32 %v452, %v452
  %v816 = vmul.f32 %v455, %v455
  %v817 = vmul.f32 %v460, %v460
  %v818 = vmul.f32 %v463, %v463
  %v819 = vmul.f32 %v468, %v468
  %v820 = vmul.f32 %v471, %v471
  %v821 = vmul.f32 %v476, %v476
  %v822 = vmul.f32 %v479, %v479
  %v823 = vmul.f32 %v484, %v484
  %v824 = vmul.f32 %v487, %v487
  %v825 = vmul.f32 %v492, %v492
  %v826 = vmul.f32 %v495, %v495
  %v827 = vmul.f32 %v500, %v500
  %v828 = vmul.f32 %v503, %v503
  %v829 = vmul.f32 %v508, %v508
  %v830 = vmul.f32 %v511, %v511
  %v831 = vmul.f32 %v516, %v516
  %v832 = vmul.f32 %v519, %v519
  %v833 = vmul.f32 %v524, %v524
  %v834 = vmul.f32 %v527, %v527
  %v835 = vmul.f32 %v532, %v532
  %v836 = vmul.f32 %v535, %v535
  %v837 = vmul.f32 %v540, %v540
  %v838 = vmul.f32 %v543, %v543
  %v839 = vmul.f32 %v548, %v548
  %v840 = vmul.f32 %v551, %v551
  %v841 = vmul.f32 %v556, %v556
  %v842 = vmul.f32 %v559, %v559
  %v843 = vmul.f32 %v564, %v564
  %v844 = vmul.f32 %v567, %v567
  %v845 = vmul.f32 %v572, %v572
  %v846 = vmul.f32 %v575, %v575
  %v847 = vmul.f32 %v580, %v580
  %v848 = vmul.f32 %v583, %v583
  %v849 = vmul.f32 %v588, %v588
  %v850 = vmul.f32 %v591, %v591
  %v851 = vmul.f32 %v596, %v596
  %v852 = vmul.f32 %v599, %v599
  %v853 = vmul.f32 %v604, %v604
  %v854 = vmul.f32 %v607, %v607
  %v855 = vmul.f32 %v612, %v612
  %v856 = vmul.f32 %v615, %v615
  %v857 = vmul.f32 %v620, %v620
  %v858 = vmul.f32 %v623, %v623
  %v859 = vmul.f32 %v628, %v628
  %v860 = vmul.f32 %v631, %v631
  %v861 = vmul.f32 %v636, %v636
  %v862 = vmul.f32 %v639, %v639
  %v863 = vmul.f32 %v644, %v644
  %v864 = vmul.f32 %v647, %v647
  %v865 = vmul.f32 %v652, %v652
  %v866 = vmul.f32 %v655, %v655
  %v867 = vmul.f32 %v660, %v660
  %v868 = vmul.f32 %v663, %v663
  %v869 = vmul.f32 %v668, %v668
  %v870 = vmul.f32 %v671, %v671
  %v871 = vadd.f32 %v807, %v808
  %v872 = vadd.f32 %v871, %v809
  %v873 = vadd.f32 %v872, %v810
  %v874 = vadd.f32 %v873, %v811
  %v875 = vadd.f32 %v874, %v812
  %v876 = vadd.f32 %v875, %v813
  %v877 = vadd.f32 %v876, %v814
  %v878 = vadd.f32 %v877, %v815
  %v879 = vadd.f32 %v878, %v816
  %v880 = vadd.f32 %v879, %v817
  %v881 = vadd.f32 %v880, %v818
  %v882 = vadd.f32 %v881, %v819
  %v883 = vadd.f32 %v882, %v820
  %v884 = vadd.f32 %v883, %v821
  %v885 = vadd.f32 %v884, %v822
  %v886 = vadd.f32 %v885, %v823
  %v887 = vadd.f32 %v886, %v824
  %v888 = vadd.f32 %v887, %v825
  %v889 = vadd.f32 %v888, %v826
  %v890 = vadd.f32 %v889, %v827
  %v891 = vadd.f32 %v890, %v828
  %v892 = vadd.f32 %v891, %v829
  %v893 = vadd.f32 %v892, %v830
  %v894 = vadd.f32 %v893, %v831
  %v895 = vadd.f32 %v894, %v832
  %v896 = vadd.f32 %v895, %v833
  %v897 = vadd.f32 %v896, %v834
  %v898 = vadd.f32 %v897, %v835
  %v899 = vadd.f32 %v898, %v836
  %v900 = vadd.f32 %v899, %v837
  %v901 = vadd.f32 %v900, %v838
  %v902 = vadd.f32 %v901, %v839
  %v903 = vadd.f32 %v902, %v840
  %v904 = vadd.f32 %v903, %v841
  %v905 = vadd.f32 %v904, %v842
  %v906 = vadd.f32 %v905, %v843
  %v907 = vadd.f32 %v906, %v844
  %v908 = vadd.f32 %v907, %v845
  %v909 = vadd.f32 %v908, %v846
  %v910 = vadd.f32 %v909, %v847
  %v911 = vadd.f32 %v910, %v848
  %v912 = vadd.f32 %v911, %v849
  %v913 = vadd.f32 %v912, %v850
  %v914 = vadd.f32 %v913, %v851
  %v915 = vadd.f32 %v914, %v852
  %v916 = vadd.f32 %v915, %v853
  %v917 = vadd.f32 %v916, %v854
  %v918 = vadd.f32 %v917, %v855
  %v919 = vadd.f32 %v918, %v856
  %v920 = vadd.f32 %v919, %v857
  %v921 = vadd.f32 %v920, %v858
  %v922 = vadd.f32 %v921, %v859
  %v923 = vadd.f32 %v922, %v860
  %v924 = vadd.f32 %v923, %v861
  %v925 = vadd.f32 %v924, %v862
  %v926 = vadd.f32 %v925, %v863
  %v927 = vadd.f32 %v926, %v864
  %v928 = vadd.f32 %v927, %v865
  %v929 = vadd.f32 %v928, %v866
  %v930 = vadd.f32 %v929, %v867
  %v931 = vadd.f32 %v930, %v868
  %v932 = vadd.f32 %v931, %v869
  %v933 = vadd.f32 %v932, %v870
  %v934 = vrot.slane %v933, 4
  %v935 = vadd.f32 %v933, %v934
  %v936 = vrot.slane %v935, 2
  %v937 = vadd.f32 %v935, %v936
  %v938 = vrot.slane %v937, 1
  %v939 = vadd.f32 %v937, %v938
  %v940 = vlaneseq
  %v941 = vshrl.u32 %v940, 7
  %vm942 = vcmp.eq.s32.totalorder %v941, 0
  %vm943 = vcmp.eq.s32.totalorder %v941, 1
  %v944 = vsel %vm943, %v939, 0.0
  %v945 = vsel %vm942, %v806, %v944
  %946 = vst [vmem:[%s4] sm:$0xff] %v945
  // Predicated region
  $region14: #{up_forward.6} parent=0 // pred_check
    _
  $region15: #{up_forward.6} parent=0 // pred_check_branch
    %948 = sbr.rel (0) target = $region17
  $region16: #{up_forward.6} parent=0 // pred_region
    _
  $region17: #{up_forward.6} parent=0 // pred_fallthru
    _
  // Predicated region
  $region18: #{up_forward.6} parent=0 // pred_check
    _
  $region19: #{up_forward.6} parent=0 // pred_check_branch
    %950 = sbr.rel (0) target = $region21
  $region20: #{up_forward.6} parent=0 // pred_region
    _
  $region21: #{up_forward.6} parent=0 // pred_fallthru
    _
  // Predicated region
  $region22: #{up_forward.6} parent=0 // pred_check
    _
  $region23: #{up_forward.6} parent=0 // pred_check_branch
    %952 = sbr.rel (0) target = $region25
  $region24: #{up_forward.6} parent=0 // pred_region
    _
  $region25: #{up_forward.6} parent=0 // pred_fallthru
    _
  // Predicated region
  $region26: #{up_forward.6} parent=0 // pred_check
    _
  $region27: #{up_forward.6} parent=0 // pred_check_branch
    %954 = sbr.rel (0) target = $region29
  $region28: #{up_forward.6} parent=0 // pred_region
    _
  $region29: #{up_forward.6} parent=0 // pred_fallthru
    _

// kernel: up_forward.9
$region0: #{up_forward.9}
  #allocation0 [shape = 'u32[]', space=smem, size = 0x4, offset = 0x4, fixed_abs, tag = 'smem constant byte address 0x4 - core index']
  #allocation1 [shape = 'u32[144,128]{1,0:T(1,128)}', space=vmem, size = 0x12000, scoped, tag = 'internal scratch']
  %s0 = inlined_call_operand.vmem [shape: f32[512,128], index: 0, kind: input, shape index: {}]
  %s1 = inlined_call_operand.vmem [shape: f32[1,128], index: 1, kind: input, shape index: {}]
  %s2 = inlined_call_operand.vmem [shape: f32[1,128], index: 2, kind: input, shape index: {}]
  %s3 = inlined_call_operand.vmem [shape: f32[512,128], index: 3, kind: output, shape index: {}]
  %s4 = sld [smem:[#allocation0]]
  $region22: #{up_forward.9} parent=0
    _
  %s6 = ssub.s32 1, %s4
  %s7 = scalar_select 0, %s6, %s4
  // Predicated region
  $region2: #{up_forward.9} parent=0 // pred_check
    _
  $region3: #{up_forward.9} parent=0 // pred_check_branch
    %9 = sbr.rel (0) target = $region5
  $region4: #{up_forward.9} parent=0 // pred_region
    _
  $region5: #{up_forward.9} parent=0 // pred_fallthru
    _
  // Predicated region
  $region6: #{up_forward.9} parent=0 // pred_check
    _
  $region7: #{up_forward.9} parent=0 // pred_check_branch
    %11 = sbr.rel (0) target = $region9
  $region8: #{up_forward.9} parent=0 // pred_region
    _
  $region9: #{up_forward.9} parent=0 // pred_fallthru
    _
  // Predicated region
  $region10: #{up_forward.9} parent=0 // pred_check
    _
  $region11: #{up_forward.9} parent=0 // pred_check_branch
    %13 = sbr.rel (0) target = $region13
  $region12: #{up_forward.9} parent=0 // pred_region
    _
  $region13: #{up_forward.9} parent=0 // pred_fallthru
    _
  %v14 = vld [vmem:[%s0] sm:$0xff]
  %v15 = vld [vmem:[%s0 + $0x8] sm:$0xff]
  %v16 = vld [vmem:[%s0 + $0x10] sm:$0xff]
  %v17 = vld [vmem:[%s0 + $0x18] sm:$0xff]
  %v18 = vld [vmem:[%s0 + $0x20] sm:$0xff]
  %v19 = vld [vmem:[%s0 + $0x28] sm:$0xff]
  %v20 = vld [vmem:[%s0 + $0x30] sm:$0xff]
  %v21 = vld [vmem:[%s0 + $0x38] sm:$0xff]
  %v22 = vld [vmem:[%s0 + $0x40] sm:$0xff]
  %v23 = vld [vmem:[%s0 + $0x48] sm:$0xff]
  %v24 = vld [vmem:[%s0 + $0x50] sm:$0xff]
  %v25 = vld [vmem:[%s0 + $0x58] sm:$0xff]
  %v26 = vld [vmem:[%s0 + $0x60] sm:$0xff]
  %v27 = vld [vmem:[%s0 + $0x68] sm:$0xff]
  %v28 = vld [vmem:[%s0 + $0x70] sm:$0xff]
  %v29 = vld [vmem:[%s0 + $0x78] sm:$0xff]
  %v30 = vld [vmem:[%s0 + $0x80] sm:$0xff]
  %v31 = vld [vmem:[%s0 + $0x88] sm:$0xff]
  %v32 = vld [vmem:[%s0 + $0x90] sm:$0xff]
  %v33 = vld [vmem:[%s0 + $0x98] sm:$0xff]
  %v34 = vld [vmem:[%s0 + $0xa0] sm:$0xff]
  %v35 = vld [vmem:[%s0 + $0xa8] sm:$0xff]
  %v36 = vld [vmem:[%s0 + $0xb0] sm:$0xff]
  %v37 = vld [vmem:[%s0 + $0xb8] sm:$0xff]
  %v38 = vld [vmem:[%s0 + $0xc0] sm:$0xff]
  %v39 = vld [vmem:[%s0 + $0xc8] sm:$0xff]
  %v40 = vld [vmem:[%s0 + $0xd0] sm:$0xff]
  %v41 = vld [vmem:[%s0 + $0xd8] sm:$0xff]
  %v42 = vld [vmem:[%s0 + $0xe0] sm:$0xff]
  %v43 = vld [vmem:[%s0 + $0xe8] sm:$0xff]
  %v44 = vld [vmem:[%s0 + $0xf0] sm:$0xff]
  %v45 = vld [vmem:[%s0 + $0xf8] sm:$0xff]
  %v46 = vld [vmem:[%s0 + $0x100] sm:$0xff]
  %v47 = vld [vmem:[%s0 + $0x108] sm:$0xff]
  %v48 = vld [vmem:[%s0 + $0x110] sm:$0xff]
  %v49 = vld [vmem:[%s0 + $0x118] sm:$0xff]
  %v50 = vld [vmem:[%s0 + $0x120] sm:$0xff]
  %v51 = vld [vmem:[%s0 + $0x128] sm:$0xff]
  %v52 = vld [vmem:[%s0 + $0x130] sm:$0xff]
  %v53 = vld [vmem:[%s0 + $0x138] sm:$0xff]
  %v54 = vld [vmem:[%s0 + $0x140] sm:$0xff]
  %v55 = vld [vmem:[%s0 + $0x148] sm:$0xff]
  %v56 = vld [vmem:[%s0 + $0x150] sm:$0xff]
  %v57 = vld [vmem:[%s0 + $0x158] sm:$0xff]
  %v58 = vld [vmem:[%s0 + $0x160] sm:$0xff]
  %v59 = vld [vmem:[%s0 + $0x168] sm:$0xff]
  %v60 = vld [vmem:[%s0 + $0x170] sm:$0xff]
  %v61 = vld [vmem:[%s0 + $0x178] sm:$0xff]
  %v62 = vld [vmem:[%s0 + $0x180] sm:$0xff]
  %v63 = vld [vmem:[%s0 + $0x188] sm:$0xff]
  %v64 = vld [vmem:[%s0 + $0x190] sm:$0xff]
  %v65 = vld [vmem:[%s0 + $0x198] sm:$0xff]
  %v66 = vld [vmem:[%s0 + $0x1a0] sm:$0xff]
  %v67 = vld [vmem:[%s0 + $0x1a8] sm:$0xff]
  %v68 = vld [vmem:[%s0 + $0x1b0] sm:$0xff]
  %v69 = vld [vmem:[%s0 + $0x1b8] sm:$0xff]
  %v70 = vld [vmem:[%s0 + $0x1c0] sm:$0xff]
  %v71 = vld [vmem:[%s0 + $0x1c8] sm:$0xff]
  %v72 = vld [vmem:[%s0 + $0x1d0] sm:$0xff]
  %v73 = vld [vmem:[%s0 + $0x1d8] sm:$0xff]
  %v74 = vld [vmem:[%s0 + $0x1e0] sm:$0xff]
  %v75 = vld [vmem:[%s0 + $0x1e8] sm:$0xff]
  %v76 = vld [vmem:[%s0 + $0x1f0] sm:$0xff]
  %v77 = vld [vmem:[%s0 + $0x1f8] sm:$0xff]
  %v78 = vld [vmem:[%s1] sm:$0x1]
  %v80 = vlaneseq
  %v81 = vshrl.u32 %v80, 7
  %v82 = vsub.s32 0, %v81
  %v83 = vrot.slane %v78, %v82
  %v85 = vmul.f32 %v14, %v83
  %v86 = vmul.f32 %v15, %v83
  %v87 = vmul.f32 %v16, %v83
  %v88 = vmul.f32 %v17, %v83
  %v89 = vmul.f32 %v18, %v83
  %v90 = vmul.f32 %v19, %v83
  %v91 = vmul.f32 %v20, %v83
  %v92 = vmul.f32 %v21, %v83
  %v93 = vmul.f32 %v22, %v83
  %v94 = vmul.f32 %v23, %v83
  %v95 = vmul.f32 %v24, %v83
  %v96 = vmul.f32 %v25, %v83
  %v97 = vmul.f32 %v26, %v83
  %v98 = vmul.f32 %v27, %v83
  %v99 = vmul.f32 %v28, %v83
  %v100 = vmul.f32 %v29, %v83
  %v101 = vmul.f32 %v30, %v83
  %v102 = vmul.f32 %v31, %v83
  %v103 = vmul.f32 %v32, %v83
  %v104 = vmul.f32 %v33, %v83
  %v105 = vmul.f32 %v34, %v83
  %v106 = vmul.f32 %v35, %v83
  %v107 = vmul.f32 %v36, %v83
  %v108 = vmul.f32 %v37, %v83
  %v109 = vmul.f32 %v38, %v83
  %v110 = vmul.f32 %v39, %v83
  %v111 = vmul.f32 %v40, %v83
  %v112 = vmul.f32 %v41, %v83
  %v113 = vmul.f32 %v42, %v83
  %v114 = vmul.f32 %v43, %v83
  %v115 = vmul.f32 %v44, %v83
  %v116 = vmul.f32 %v45, %v83
  %v117 = vmul.f32 %v46, %v83
  %v118 = vmul.f32 %v47, %v83
  %v119 = vmul.f32 %v48, %v83
  %v120 = vmul.f32 %v49, %v83
  %v121 = vmul.f32 %v50, %v83
  %v122 = vmul.f32 %v51, %v83
  %v123 = vmul.f32 %v52, %v83
  %v124 = vmul.f32 %v53, %v83
  %v125 = vmul.f32 %v54, %v83
  %v126 = vmul.f32 %v55, %v83
  %v127 = vmul.f32 %v56, %v83
  %v128 = vmul.f32 %v57, %v83
  %v129 = vmul.f32 %v58, %v83
  %v130 = vmul.f32 %v59, %v83
  %v131 = vmul.f32 %v60, %v83
  %v132 = vmul.f32 %v61, %v83
  %v133 = vmul.f32 %v62, %v83
  %v134 = vmul.f32 %v63, %v83
  %v135 = vmul.f32 %v64, %v83
  %v136 = vmul.f32 %v65, %v83
  %v137 = vmul.f32 %v66, %v83
  %v138 = vmul.f32 %v67, %v83
  %v139 = vmul.f32 %v68, %v83
  %v140 = vmul.f32 %v69, %v83
  %v141 = vmul.f32 %v70, %v83
  %v142 = vmul.f32 %v71, %v83
  %v143 = vmul.f32 %v72, %v83
  %v144 = vmul.f32 %v73, %v83
  %v145 = vmul.f32 %v74, %v83
  %v146 = vmul.f32 %v75, %v83
  %v147 = vmul.f32 %v76, %v83
  %v148 = vmul.f32 %v77, %v83
  %v149 = vld [vmem:[%s2] sm:$0x1]
  %v151 = vlaneseq
  %v152 = vshrl.u32 %v151, 7
  %v153 = vsub.s32 0, %v152
  %v154 = vrot.slane %v149, %v153
  %v156 = vadd.f32 %v85, %v154
  %v157 = vadd.f32 %v86, %v154
  %v158 = vadd.f32 %v87, %v154
  %v159 = vadd.f32 %v88, %v154
  %v160 = vadd.f32 %v89, %v154
  %v161 = vadd.f32 %v90, %v154
  %v162 = vadd.f32 %v91, %v154
  %v163 = vadd.f32 %v92, %v154
  %v164 = vadd.f32 %v93, %v154
  %v165 = vadd.f32 %v94, %v154
  %v166 = vadd.f32 %v95, %v154
  %v167 = vadd.f32 %v96, %v154
  %v168 = vadd.f32 %v97, %v154
  %v169 = vadd.f32 %v98, %v154
  %v170 = vadd.f32 %v99, %v154
  %v171 = vadd.f32 %v100, %v154
  %v172 = vadd.f32 %v101, %v154
  %v173 = vadd.f32 %v102, %v154
  %v174 = vadd.f32 %v103, %v154
  %v175 = vadd.f32 %v104, %v154
  %v176 = vadd.f32 %v105, %v154
  %v177 = vadd.f32 %v106, %v154
  %v178 = vadd.f32 %v107, %v154
  %v179 = vadd.f32 %v108, %v154
  %v180 = vadd.f32 %v109, %v154
  %v181 = vadd.f32 %v110, %v154
  %v182 = vadd.f32 %v111, %v154
  %v183 = vadd.f32 %v112, %v154
  %v184 = vadd.f32 %v113, %v154
  %v185 = vadd.f32 %v114, %v154
  %v186 = vadd.f32 %v115, %v154
  %v187 = vadd.f32 %v116, %v154
  %v188 = vadd.f32 %v117, %v154
  %v189 = vadd.f32 %v118, %v154
  %v190 = vadd.f32 %v119, %v154
  %v191 = vadd.f32 %v120, %v154
  %v192 = vadd.f32 %v121, %v154
  %v193 = vadd.f32 %v122, %v154
  %v194 = vadd.f32 %v123, %v154
  %v195 = vadd.f32 %v124, %v154
  %v196 = vadd.f32 %v125, %v154
  %v197 = vadd.f32 %v126, %v154
  %v198 = vadd.f32 %v127, %v154
  %v199 = vadd.f32 %v128, %v154
  %v200 = vadd.f32 %v129, %v154
  %v201 = vadd.f32 %v130, %v154
  %v202 = vadd.f32 %v131, %v154
  %v203 = vadd.f32 %v132, %v154
  %v204 = vadd.f32 %v133, %v154
  %v205 = vadd.f32 %v134, %v154
  %v206 = vadd.f32 %v135, %v154
  %v207 = vadd.f32 %v136, %v154
  %v208 = vadd.f32 %v137, %v154
  %v209 = vadd.f32 %v138, %v154
  %v210 = vadd.f32 %v139, %v154
  %v211 = vadd.f32 %v140, %v154
  %v212 = vadd.f32 %v141, %v154
  %v213 = vadd.f32 %v142, %v154
  %v214 = vadd.f32 %v143, %v154
  %v215 = vadd.f32 %v144, %v154
  %v216 = vadd.f32 %v145, %v154
  %v217 = vadd.f32 %v146, %v154
  %v218 = vadd.f32 %v147, %v154
  %v219 = vadd.f32 %v148, %v154
  %v220 = vmax.f32 %v156, 0.0
  %v221 = vmax.f32 %v157, 0.0
  %v222 = vmax.f32 %v158, 0.0
  %v223 = vmax.f32 %v159, 0.0
  %v224 = vmax.f32 %v160, 0.0
  %v225 = vmax.f32 %v161, 0.0
  %v226 = vmax.f32 %v162, 0.0
  %v227 = vmax.f32 %v163, 0.0
  %v228 = vmax.f32 %v164, 0.0
  %v229 = vmax.f32 %v165, 0.0
  %v230 = vmax.f32 %v166, 0.0
  %v231 = vmax.f32 %v167, 0.0
  %v232 = vmax.f32 %v168, 0.0
  %v233 = vmax.f32 %v169, 0.0
  %v234 = vmax.f32 %v170, 0.0
  %v235 = vmax.f32 %v171, 0.0
  %v236 = vmax.f32 %v172, 0.0
  %v237 = vmax.f32 %v173, 0.0
  %v238 = vmax.f32 %v174, 0.0
  %v239 = vmax.f32 %v175, 0.0
  %v240 = vmax.f32 %v176, 0.0
  %v241 = vmax.f32 %v177, 0.0
  %v242 = vmax.f32 %v178, 0.0
  %v243 = vmax.f32 %v179, 0.0
  %v244 = vmax.f32 %v180, 0.0
  %v245 = vmax.f32 %v181, 0.0
  %v246 = vmax.f32 %v182, 0.0
  %v247 = vmax.f32 %v183, 0.0
  %v248 = vmax.f32 %v184, 0.0
  %v249 = vmax.f32 %v185, 0.0
  %v250 = vmax.f32 %v186, 0.0
  %v251 = vmax.f32 %v187, 0.0
  %v252 = vmax.f32 %v188, 0.0
  %v253 = vmax.f32 %v189, 0.0
  %v254 = vmax.f32 %v190, 0.0
  %v255 = vmax.f32 %v191, 0.0
  %v256 = vmax.f32 %v192, 0.0
  %v257 = vmax.f32 %v193, 0.0
  %v258 = vmax.f32 %v194, 0.0
  %v259 = vmax.f32 %v195, 0.0
  %v260 = vmax.f32 %v196, 0.0
  %v261 = vmax.f32 %v197, 0.0
  %v262 = vmax.f32 %v198, 0.0
  %v263 = vmax.f32 %v199, 0.0
  %v264 = vmax.f32 %v200, 0.0
  %v265 = vmax.f32 %v201, 0.0
  %v266 = vmax.f32 %v202, 0.0
  %v267 = vmax.f32 %v203, 0.0
  %v268 = vmax.f32 %v204, 0.0
  %v269 = vmax.f32 %v205, 0.0
  %v270 = vmax.f32 %v206, 0.0
  %v271 = vmax.f32 %v207, 0.0
  %v272 = vmax.f32 %v208, 0.0
  %v273 = vmax.f32 %v209, 0.0
  %v274 = vmax.f32 %v210, 0.0
  %v275 = vmax.f32 %v211, 0.0
  %v276 = vmax.f32 %v212, 0.0
  %v277 = vmax.f32 %v213, 0.0
  %v278 = vmax.f32 %v214, 0.0
  %v279 = vmax.f32 %v215, 0.0
  %v280 = vmax.f32 %v216, 0.0
  %v281 = vmax.f32 %v217, 0.0
  %v282 = vmax.f32 %v218, 0.0
  %v283 = vmax.f32 %v219, 0.0
  %284 = vst [vmem:[%s3] sm:$0xff] %v220
  %285 = vst [vmem:[%s3 + $0x8] sm:$0xff] %v221
  %286 = vst [vmem:[%s3 + $0x10] sm:$0xff] %v222
  %287 = vst [vmem:[%s3 + $0x18] sm:$0xff] %v223
  %288 = vst [vmem:[%s3 + $0x20] sm:$0xff] %v224
  %289 = vst [vmem:[%s3 + $0x28] sm:$0xff] %v225
  %290 = vst [vmem:[%s3 + $0x30] sm:$0xff] %v226
  %291 = vst [vmem:[%s3 + $0x38] sm:$0xff] %v227
  %292 = vst [vmem:[%s3 + $0x40] sm:$0xff] %v228
  %293 = vst [vmem:[%s3 + $0x48] sm:$0xff] %v229
  %294 = vst [vmem:[%s3 + $0x50] sm:$0xff] %v230
  %295 = vst [vmem:[%s3 + $0x58] sm:$0xff] %v231
  %296 = vst [vmem:[%s3 + $0x60] sm:$0xff] %v232
  %297 = vst [vmem:[%s3 + $0x68] sm:$0xff] %v233
  %298 = vst [vmem:[%s3 + $0x70] sm:$0xff] %v234
  %299 = vst [vmem:[%s3 + $0x78] sm:$0xff] %v235
  %300 = vst [vmem:[%s3 + $0x80] sm:$0xff] %v236
  %301 = vst [vmem:[%s3 + $0x88] sm:$0xff] %v237
  %302 = vst [vmem:[%s3 + $0x90] sm:$0xff] %v238
  %303 = vst [vmem:[%s3 + $0x98] sm:$0xff] %v239
  %304 = vst [vmem:[%s3 + $0xa0] sm:$0xff] %v240
  %305 = vst [vmem:[%s3 + $0xa8] sm:$0xff] %v241
  %306 = vst [vmem:[%s3 + $0xb0] sm:$0xff] %v242
  %307 = vst [vmem:[%s3 + $0xb8] sm:$0xff] %v243
  %308 = vst [vmem:[%s3 + $0xc0] sm:$0xff] %v244
  %309 = vst [vmem:[%s3 + $0xc8] sm:$0xff] %v245
  %310 = vst [vmem:[%s3 + $0xd0] sm:$0xff] %v246
  %311 = vst [vmem:[%s3 + $0xd8] sm:$0xff] %v247
  %312 = vst [vmem:[%s3 + $0xe0] sm:$0xff] %v248
  %313 = vst [vmem:[%s3 + $0xe8] sm:$0xff] %v249
  %314 = vst [vmem:[%s3 + $0xf0] sm:$0xff] %v250
  %315 = vst [vmem:[%s3 + $0xf8] sm:$0xff] %v251
  %316 = vst [vmem:[%s3 + $0x100] sm:$0xff] %v252
  %317 = vst [vmem:[%s3 + $0x108] sm:$0xff] %v253
  %318 = vst [vmem:[%s3 + $0x110] sm:$0xff] %v254
  %319 = vst [vmem:[%s3 + $0x118] sm:$0xff] %v255
  %320 = vst [vmem:[%s3 + $0x120] sm:$0xff] %v256
  %321 = vst [vmem:[%s3 + $0x128] sm:$0xff] %v257
  %322 = vst [vmem:[%s3 + $0x130] sm:$0xff] %v258
  %323 = vst [vmem:[%s3 + $0x138] sm:$0xff] %v259
  %324 = vst [vmem:[%s3 + $0x140] sm:$0xff] %v260
  %325 = vst [vmem:[%s3 + $0x148] sm:$0xff] %v261
  %326 = vst [vmem:[%s3 + $0x150] sm:$0xff] %v262
  %327 = vst [vmem:[%s3 + $0x158] sm:$0xff] %v263
  %328 = vst [vmem:[%s3 + $0x160] sm:$0xff] %v264
  %329 = vst [vmem:[%s3 + $0x168] sm:$0xff] %v265
  %330 = vst [vmem:[%s3 + $0x170] sm:$0xff] %v266
  %331 = vst [vmem:[%s3 + $0x178] sm:$0xff] %v267
  %332 = vst [vmem:[%s3 + $0x180] sm:$0xff] %v268
  %333 = vst [vmem:[%s3 + $0x188] sm:$0xff] %v269
  %334 = vst [vmem:[%s3 + $0x190] sm:$0xff] %v270
  %335 = vst [vmem:[%s3 + $0x198] sm:$0xff] %v271
  %336 = vst [vmem:[%s3 + $0x1a0] sm:$0xff] %v272
  %337 = vst [vmem:[%s3 + $0x1a8] sm:$0xff] %v273
  %338 = vst [vmem:[%s3 + $0x1b0] sm:$0xff] %v274
  %339 = vst [vmem:[%s3 + $0x1b8] sm:$0xff] %v275
  %340 = vst [vmem:[%s3 + $0x1c0] sm:$0xff] %v276
  %341 = vst [vmem:[%s3 + $0x1c8] sm:$0xff] %v277
  %342 = vst [vmem:[%s3 + $0x1d0] sm:$0xff] %v278
  %343 = vst [vmem:[%s3 + $0x1d8] sm:$0xff] %v279
  %344 = vst [vmem:[%s3 + $0x1e0] sm:$0xff] %v280
  %345 = vst [vmem:[%s3 + $0x1e8] sm:$0xff] %v281
  %346 = vst [vmem:[%s3 + $0x1f0] sm:$0xff] %v282
  %347 = vst [vmem:[%s3 + $0x1f8] sm:$0xff] %v283
  // Predicated region
  $region14: #{up_forward.9} parent=0 // pred_check
    _
  $region15: #{up_forward.9} parent=0 // pred_check_branch
    %349 = sbr.rel (0) target = $region17
  $region16: #{up_forward.9} parent=0 // pred_region
    _
  $region17: #{up_forward.9} parent=0 // pred_fallthru
    _
  // Predicated region
  $region18: #{up_forward.9} parent=0 // pred_check
    _
  $region19: #{up_forward.9} parent=0 // pred_check_branch
    %351 = sbr.rel (0) target = $region21
  $region20: #{up_forward.9} parent=0 // pred_region
    _
  $region21: #{up_forward.9} parent=0 // pred_fallthru
    _

// kernel: up_forward.8
$region0: #{up_forward.8}
  #allocation0 [shape = 'u32[]', space=smem, size = 0x4, offset = 0x4, fixed_abs, tag = 'smem constant byte address 0x4 - core index']
  #allocation1 [shape = 'u32[144,128]{1,0:T(1,128)}', space=vmem, size = 0x12000, scoped, tag = 'internal scratch']
  %s0 = inlined_call_operand.vmem [shape: bf16[512,36], index: 0, kind: input, shape index: {}]
  %s1 = inlined_call_operand.vmem [shape: bf16[36,128], index: 1, kind: input, shape index: {}]
  %s2 = inlined_call_operand.vmem [shape: f32[1,128], index: 2, kind: input, shape index: {}]
  %s3 = inlined_call_operand.vmem [shape: f32[512,128], index: 3, kind: output, shape index: {0}]
  %s4 = inlined_call_operand.vmem [shape: f32[1,8,128], index: 4, kind: output, shape index: {1}]
  %5 = xla_tuple %s3, %s4
  %s6 = sld [smem:[#allocation0]]
  $region30: #{up_forward.8} parent=0
    _
  %s8 = ssub.s32 1, %s6
  %s9 = scalar_select 0, %s8, %s6
  // Predicated region
  $region2: #{up_forward.8} parent=0 // pred_check
    _
  $region3: #{up_forward.8} parent=0 // pred_check_branch
    %11 = sbr.rel (0) target = $region5
  $region4: #{up_forward.8} parent=0 // pred_region
    _
  $region5: #{up_forward.8} parent=0 // pred_fallthru
    _
  // Predicated region
  $region6: #{up_forward.8} parent=0 // pred_check
    _
  $region7: #{up_forward.8} parent=0 // pred_check_branch
    %13 = sbr.rel (0) target = $region9
  $region8: #{up_forward.8} parent=0 // pred_region
    _
  $region9: #{up_forward.8} parent=0 // pred_fallthru
    _
  // Predicated region
  $region10: #{up_forward.8} parent=0 // pred_check
    _
  $region11: #{up_forward.8} parent=0 // pred_check_branch
    %15 = sbr.rel (0) target = $region13
  $region12: #{up_forward.8} parent=0 // pred_region
    _
  $region13: #{up_forward.8} parent=0 // pred_fallthru
    _
  %v17 = vld [vmem:[%s0] sm:$0xf]
  %v18 = vld [vmem:[%s0 + $0x4] sm:$0xf]
  %v19 = vld [vmem:[%s0 + $0x8] sm:$0xf]
  %v20 = vld [vmem:[%s0 + $0xc] sm:$0xf]
  %v21 = vld [vmem:[%s0 + $0x10] sm:$0xf]
  %v22 = vld [vmem:[%s0 + $0x14] sm:$0xf]
  %v23 = vld [vmem:[%s0 + $0x18] sm:$0xf]
  %v24 = vld [vmem:[%s0 + $0x1c] sm:$0xf]
  %v25 = vld [vmem:[%s0 + $0x20] sm:$0xf]
  %v26 = vld [vmem:[%s0 + $0x24] sm:$0xf]
  %v27 = vld [vmem:[%s0 + $0x28] sm:$0xf]
  %v28 = vld [vmem:[%s0 + $0x2c] sm:$0xf]
  %v29 = vld [vmem:[%s0 + $0x30] sm:$0xf]
  %v30 = vld [vmem:[%s0 + $0x34] sm:$0xf]
  %v31 = vld [vmem:[%s0 + $0x38] sm:$0xf]
  %v32 = vld [vmem:[%s0 + $0x3c] sm:$0xf]
  %v33 = vld [vmem:[%s0 + $0x40] sm:$0xf]
  %v34 = vld [vmem:[%s0 + $0x44] sm:$0xf]
  %v35 = vld [vmem:[%s0 + $0x48] sm:$0xf]
  %v36 = vld [vmem:[%s0 + $0x4c] sm:$0xf]
  %v37 = vld [vmem:[%s0 + $0x50] sm:$0xf]
  %v38 = vld [vmem:[%s0 + $0x54] sm:$0xf]
  %v39 = vld [vmem:[%s0 + $0x58] sm:$0xf]
  %v40 = vld [vmem:[%s0 + $0x5c] sm:$0xf]
  %v41 = vld [vmem:[%s0 + $0x60] sm:$0xf]
  %v42 = vld [vmem:[%s0 + $0x64] sm:$0xf]
  %v43 = vld [vmem:[%s0 + $0x68] sm:$0xf]
  %v44 = vld [vmem:[%s0 + $0x6c] sm:$0xf]
  %v45 = vld [vmem:[%s0 + $0x70] sm:$0xf]
  %v46 = vld [vmem:[%s0 + $0x74] sm:$0xf]
  %v47 = vld [vmem:[%s0 + $0x78] sm:$0xf]
  %v48 = vld [vmem:[%s0 + $0x7c] sm:$0xf]
  %v49 = vld [vmem:[%s0 + $0x80] sm:$0xf]
  %v50 = vld [vmem:[%s0 + $0x84] sm:$0xf]
  %v51 = vld [vmem:[%s0 + $0x88] sm:$0xf]
  %v52 = vld [vmem:[%s0 + $0x8c] sm:$0xf]
  %v53 = vld [vmem:[%s0 + $0x90] sm:$0xf]
  %v54 = vld [vmem:[%s0 + $0x94] sm:$0xf]
  %v55 = vld [vmem:[%s0 + $0x98] sm:$0xf]
  %v56 = vld [vmem:[%s0 + $0x9c] sm:$0xf]
  %v57 = vld [vmem:[%s0 + $0xa0] sm:$0xf]
  %v58 = vld [vmem:[%s0 + $0xa4] sm:$0xf]
  %v59 = vld [vmem:[%s0 + $0xa8] sm:$0xf]
  %v60 = vld [vmem:[%s0 + $0xac] sm:$0xf]
  %v61 = vld [vmem:[%s0 + $0xb0] sm:$0xf]
  %v62 = vld [vmem:[%s0 + $0xb4] sm:$0xf]
  %v63 = vld [vmem:[%s0 + $0xb8] sm:$0xf]
  %v64 = vld [vmem:[%s0 + $0xbc] sm:$0xf]
  %v65 = vld [vmem:[%s0 + $0xc0] sm:$0xf]
  %v66 = vld [vmem:[%s0 + $0xc4] sm:$0xf]
  %v67 = vld [vmem:[%s0 + $0xc8] sm:$0xf]
  %v68 = vld [vmem:[%s0 + $0xcc] sm:$0xf]
  %v69 = vld [vmem:[%s0 + $0xd0] sm:$0xf]
  %v70 = vld [vmem:[%s0 + $0xd4] sm:$0xf]
  %v71 = vld [vmem:[%s0 + $0xd8] sm:$0xf]
  %v72 = vld [vmem:[%s0 + $0xdc] sm:$0xf]
  %v73 = vld [vmem:[%s0 + $0xe0] sm:$0xf]
  %v74 = vld [vmem:[%s0 + $0xe4] sm:$0xf]
  %v75 = vld [vmem:[%s0 + $0xe8] sm:$0xf]
  %v76 = vld [vmem:[%s0 + $0xec] sm:$0xf]
  %v77 = vld [vmem:[%s0 + $0xf0] sm:$0xf]
  %v78 = vld [vmem:[%s0 + $0xf4] sm:$0xf]
  %v79 = vld [vmem:[%s0 + $0xf8] sm:$0xf]
  %v80 = vld [vmem:[%s0 + $0xfc] sm:$0xf]
  %v81 = vld [vmem:[%s1] sm:$0xf]
  %v82 = vld [vmem:[%s1 + $0x4] sm:$0xf]
  %v83 = vld [vmem:[%s1 + $0x8] sm:$0xf]
  %v84 = vld [vmem:[%s1 + $0xc] sm:$0xf]
  %v85 = vld [vmem:[%s1 + $0x10] sm:$0x3]
  %v86 = vld [vmem:[%s2] sm:$0x1]
  %v88 = vlaneseq
  %v89 = vshrl.u32 %v88, 7
  %v90 = vsub.s32 0, %v89
  %v91 = vrot.slane %v86, %v90
  %v157 = vunpack.c.l.b16 %v17
  %v158 = vunpack.c.l.b16 %v18
  %v159 = vunpack.c.l.b16 %v19
  %v160 = vunpack.c.l.b16 %v20
  %v161 = vunpack.c.l.b16 %v21
  %v162 = vunpack.c.l.b16 %v22
  %v163 = vunpack.c.l.b16 %v23
  %v164 = vunpack.c.l.b16 %v24
  %v165 = vunpack.c.l.b16 %v25
  %v166 = vunpack.c.l.b16 %v26
  %v167 = vunpack.c.l.b16 %v27
  %v168 = vunpack.c.l.b16 %v28
  %v169 = vunpack.c.l.b16 %v29
  %v170 = vunpack.c.l.b16 %v30
  %v171 = vunpack.c.l.b16 %v31
  %v172 = vunpack.c.l.b16 %v32
  %v173 = vunpack.c.l.b16 %v33
  %v174 = vunpack.c.l.b16 %v34
  %v175 = vunpack.c.l.b16 %v35
  %v176 = vunpack.c.l.b16 %v36
  %v177 = vunpack.c.l.b16 %v37
  %v178 = vunpack.c.l.b16 %v38
  %v179 = vunpack.c.l.b16 %v39
  %v180 = vunpack.c.l.b16 %v40
  %v181 = vunpack.c.l.b16 %v41
  %v182 = vunpack.c.l.b16 %v42
  %v183 = vunpack.c.l.b16 %v43
  %v184 = vunpack.c.l.b16 %v44
  %v185 = vunpack.c.l.b16 %v45
  %v186 = vunpack.c.l.b16 %v46
  %v187 = vunpack.c.l.b16 %v47
  %v188 = vunpack.c.l.b16 %v48
  %v189 = vunpack.c.l.b16 %v49
  %v190 = vunpack.c.l.b16 %v50
  %v191 = vunpack.c.l.b16 %v51
  %v192 = vunpack.c.l.b16 %v52
  %v193 = vunpack.c.l.b16 %v53
  %v194 = vunpack.c.l.b16 %v54
  %v195 = vunpack.c.l.b16 %v55
  %v196 = vunpack.c.l.b16 %v56
  %v197 = vunpack.c.l.b16 %v57
  %v198 = vunpack.c.l.b16 %v58
  %v199 = vunpack.c.l.b16 %v59
  %v200 = vunpack.c.l.b16 %v60
  %v201 = vunpack.c.l.b16 %v61
  %v202 = vunpack.c.l.b16 %v62
  %v203 = vunpack.c.l.b16 %v63
  %v204 = vunpack.c.l.b16 %v64
  %v205 = vunpack.c.l.b16 %v65
  %v206 = vunpack.c.l.b16 %v66
  %v207 = vunpack.c.l.b16 %v67
  %v208 = vunpack.c.l.b16 %v68
  %v209 = vunpack.c.l.b16 %v69
  %v210 = vunpack.c.l.b16 %v70
  %v211 = vunpack.c.l.b16 %v71
  %v212 = vunpack.c.l.b16 %v72
  %v213 = vunpack.c.l.b16 %v73
  %v214 = vunpack.c.l.b16 %v74
  %v215 = vunpack.c.l.b16 %v75
  %v216 = vunpack.c.l.b16 %v76
  %v217 = vunpack.c.l.b16 %v77
  %v218 = vunpack.c.l.b16 %v78
  %v219 = vunpack.c.l.b16 %v79
  %v220 = vunpack.c.l.b16 %v80
  %v221 = vpack.c.b16 %v158, %v157
  %v222 = vpack.c.b16 %v160, %v159
  %v223 = vpack.c.b16 %v162, %v161
  %v224 = vpack.c.b16 %v164, %v163
  %v225 = vpack.c.b16 %v166, %v165
  %v226 = vpack.c.b16 %v168, %v167
  %v227 = vpack.c.b16 %v170, %v169
  %v228 = vpack.c.b16 %v172, %v171
  %v229 = vpack.c.b16 %v174, %v173
  %v230 = vpack.c.b16 %v176, %v175
  %v231 = vpack.c.b16 %v178, %v177
  %v232 = vpack.c.b16 %v180, %v179
  %v233 = vpack.c.b16 %v182, %v181
  %v234 = vpack.c.b16 %v184, %v183
  %v235 = vpack.c.b16 %v186, %v185
  %v236 = vpack.c.b16 %v188, %v187
  %v237 = vpack.c.b16 %v190, %v189
  %v238 = vpack.c.b16 %v192, %v191
  %v239 = vpack.c.b16 %v194, %v193
  %v240 = vpack.c.b16 %v196, %v195
  %v241 = vpack.c.b16 %v198, %v197
  %v242 = vpack.c.b16 %v200, %v199
  %v243 = vpack.c.b16 %v202, %v201
  %v244 = vpack.c.b16 %v204, %v203
  %v245 = vpack.c.b16 %v206, %v205
  %v246 = vpack.c.b16 %v208, %v207
  %v247 = vpack.c.b16 %v210, %v209
  %v248 = vpack.c.b16 %v212, %v211
  %v249 = vpack.c.b16 %v214, %v213
  %v250 = vpack.c.b16 %v216, %v215
  %v251 = vpack.c.b16 %v218, %v217
  %v252 = vpack.c.b16 %v220, %v219
  %v258 = vunpack.c.l.b16 %v81
  %v259 = vunpack.c.l.b16 %v82
  %v260 = vunpack.c.l.b16 %v83
  %v261 = vunpack.c.l.b16 %v84
  %v262 = vunpack.c.l.b16 %v85
  %v263 = vpack.c.b16 %v259, %v258
  %v264 = vpack.c.b16 %v261, %v260
  %v265 = vpack.c.b16 %v262, %v262
  %vm268 = vcmask 293888
  %v270 = vsel %vm268, %v221, 0
  %v273 = vsel %vm268, %v222, 0
  %v276 = vsel %vm268, %v223, 0
  %v279 = vsel %vm268, %v224, 0
  %v282 = vsel %vm268, %v225, 0
  %v285 = vsel %vm268, %v226, 0
  %v288 = vsel %vm268, %v227, 0
  %v291 = vsel %vm268, %v228, 0
  %v294 = vsel %vm268, %v229, 0
  %v297 = vsel %vm268, %v230, 0
  %v300 = vsel %vm268, %v231, 0
  %v303 = vsel %vm268, %v232, 0
  %v306 = vsel %vm268, %v233, 0
  %v309 = vsel %vm268, %v234, 0
  %v312 = vsel %vm268, %v235, 0
  %v315 = vsel %vm268, %v236, 0
  %v318 = vsel %vm268, %v237, 0
  %v321 = vsel %vm268, %v238, 0
  %v324 = vsel %vm268, %v239, 0
  %v327 = vsel %vm268, %v240, 0
  %v330 = vsel %vm268, %v241, 0
  %v333 = vsel %vm268, %v242, 0
  %v336 = vsel %vm268, %v243, 0
  %v339 = vsel %vm268, %v244, 0
  %v342 = vsel %vm268, %v245, 0
  %v345 = vsel %vm268, %v246, 0
  %v348 = vsel %vm268, %v247, 0
  %v351 = vsel %vm268, %v248, 0
  %v354 = vsel %vm268, %v249, 0
  %v357 = vsel %vm268, %v250, 0
  %v360 = vsel %vm268, %v251, 0
  %v363 = vsel %vm268, %v252, 0
  %vm365 = vcmask 1041408
  %v367 = vsel %vm365, %v265, 0
  %369 = vmatprep.subr.bf16.mxu0 0
  %370 = vmatpush1.bf16.msra.mxu0 %v263
  %371 = vmatprep.subr.bf16.mxu0 0
  %372 = vmatpush1.bf16.msra.mxu0 %v264
  %373 = vmatprep.subr.bf16.mxu0 0
  %374 = vmatpush1.bf16.msra.mxu0 %v367
  %375 = vmatprep.subr.bf16.mxu0 0
  %376 = vmatpush1.bf16.msra.mxu0 0
  %377 = vmatprep.subr.bf16.mxu0 0
  %378 = vmatpush1.bf16.msra.mxu0 0
  %379 = vmatprep.subr.bf16.mxu0 0
  %380 = vmatpush1.bf16.msra.mxu0 0
  %381 = vmatprep.subr.bf16.mxu0 0
  %382 = vmatpush1.bf16.msra.mxu0 0
  %383 = vmatprep.subr.bf16.mxu0 0
  %384 = vmatpush1.bf16.msra.mxu0 0
  %385 = vmatprep.subr.bf16.mxu0 0
  %386 = vmatpush1.bf16.msra.mxu0 0
  %387 = vmatprep.subr.bf16.mxu0 0
  %388 = vmatpush1.bf16.msra.mxu0 0
  %389 = vmatprep.subr.bf16.mxu0 0
  %390 = vmatpush1.bf16.msra.mxu0 0
  %391 = vmatprep.subr.bf16.mxu0 0
  %392 = vmatpush1.bf16.msra.mxu0 0
  %393 = vmatprep.subr.bf16.mxu0 0
  %394 = vmatpush1.bf16.msra.mxu0 0
  %395 = vmatprep.subr.bf16.mxu0 0
  %396 = vmatpush1.bf16.msra.mxu0 0
  %397 = vmatprep.subr.bf16.mxu0 0
  %398 = vmatpush1.bf16.msra.mxu0 0
  %399 = vmatprep.subr.bf16.mxu0 0
  %400 = vmatpush1.bf16.msra.mxu0 0
  %401 = vmatprep.mubr.bf16.mxu0 0
  %402 = vmatmul.mubr.bf16.gmra.mrb[0].mxu0 %v270
  %v403 = vpop.f32.mrb[0].mxu0
  %v404 = vadd.f32 %v91, %v403
  %v405 = vpop.f32.mrb[0].mxu0
  %v406 = vpop.f32.mrb[0].mxu0
  %v407 = vadd.f32 %v91, %v406
  %v408 = vpop.f32.mrb[0].mxu0
  %409 = vmatprep.mubr.bf16.mxu0 0
  %410 = vmatmul.mubr.bf16.gmra.mrb[0].mxu0 %v273
  %v411 = vpop.f32.mrb[0].mxu0
  %v412 = vadd.f32 %v91, %v411
  %v413 = vpop.f32.mrb[0].mxu0
  %v414 = vpop.f32.mrb[0].mxu0
  %v415 = vadd.f32 %v91, %v414
  %v416 = vpop.f32.mrb[0].mxu0
  %417 = vmatprep.mubr.bf16.mxu0 0
  %418 = vmatmul.mubr.bf16.gmra.mrb[0].mxu0 %v276
  %v419 = vpop.f32.mrb[0].mxu0
  %v420 = vadd.f32 %v91, %v419
  %v421 = vpop.f32.mrb[0].mxu0
  %v422 = vpop.f32.mrb[0].mxu0
  %v423 = vadd.f32 %v91, %v422
  %v424 = vpop.f32.mrb[0].mxu0
  %425 = vmatprep.mubr.bf16.mxu0 0
  %426 = vmatmul.mubr.bf16.gmra.mrb[0].mxu0 %v279
  %v427 = vpop.f32.mrb[0].mxu0
  %v428 = vadd.f32 %v91, %v427
  %v429 = vpop.f32.mrb[0].mxu0
  %v430 = vpop.f32.mrb[0].mxu0
  %v431 = vadd.f32 %v91, %v430
  %v432 = vpop.f32.mrb[0].mxu0
  %433 = vmatprep.mubr.bf16.mxu0 0
  %434 = vmatmul.mubr.bf16.gmra.mrb[0].mxu0 %v282
  %v435 = vpop.f32.mrb[0].mxu0
  %v436 = vadd.f32 %v91, %v435
  %v437 = vpop.f32.mrb[0].mxu0
  %v438 = vpop.f32.mrb[0].mxu0
  %v439 = vadd.f32 %v91, %v438
  %v440 = vpop.f32.mrb[0].mxu0
  %441 = vmatprep.mubr.bf16.mxu0 0
  %442 = vmatmul.mubr.bf16.gmra.mrb[0].mxu0 %v285
  %v443 = vpop.f32.mrb[0].mxu0
  %v444 = vadd.f32 %v91, %v443
  %v445 = vpop.f32.mrb[0].mxu0
  %v446 = vpop.f32.mrb[0].mxu0
  %v447 = vadd.f32 %v91, %v446
  %v448 = vpop.f32.mrb[0].mxu0
  %449 = vmatprep.mubr.bf16.mxu0 0
  %450 = vmatmul.mubr.bf16.gmra.mrb[0].mxu0 %v288
  %v451 = vpop.f32.mrb[0].mxu0
  %v452 = vadd.f32 %v91, %v451
  %v453 = vpop.f32.mrb[0].mxu0
  %v454 = vpop.f32.mrb[0].mxu0
  %v455 = vadd.f32 %v91, %v454
  %v456 = vpop.f32.mrb[0].mxu0
  %457 = vmatprep.mubr.bf16.mxu0 0
  %458 = vmatmul.mubr.bf16.gmra.mrb[0].mxu0 %v291
  %v459 = vpop.f32.mrb[0].mxu0
  %v460 = vadd.f32 %v91, %v459
  %v461 = vpop.f32.mrb[0].mxu0
  %v462 = vpop.f32.mrb[0].mxu0
  %v463 = vadd.f32 %v91, %v462
  %v464 = vpop.f32.mrb[0].mxu0
  %465 = vmatprep.mubr.bf16.mxu0 0
  %466 = vmatmul.mubr.bf16.gmra.mrb[0].mxu0 %v294
  %v467 = vpop.f32.mrb[0].mxu0
  %v468 = vadd.f32 %v91, %v467
  %v469 = vpop.f32.mrb[0].mxu0
  %v470 = vpop.f32.mrb[0].mxu0
  %v471 = vadd.f32 %v91, %v470
  %v472 = vpop.f32.mrb[0].mxu0
  %473 = vmatprep.mubr.bf16.mxu0 0
  %474 = vmatmul.mubr.bf16.gmra.mrb[0].mxu0 %v297
  %v475 = vpop.f32.mrb[0].mxu0
  %v476 = vadd.f32 %v91, %v475
  %v477 = vpop.f32.mrb[0].mxu0
  %v478 = vpop.f32.mrb[0].mxu0
  %v479 = vadd.f32 %v91, %v478
  %v480 = vpop.f32.mrb[0].mxu0
  %481 = vmatprep.mubr.bf16.mxu0 0
  %482 = vmatmul.mubr.bf16.gmra.mrb[0].mxu0 %v300
  %v483 = vpop.f32.mrb[0].mxu0
  %v484 = vadd.f32 %v91, %v483
  %v485 = vpop.f32.mrb[0].mxu0
  %v486 = vpop.f32.mrb[0].mxu0
  %v487 = vadd.f32 %v91, %v486
  %v488 = vpop.f32.mrb[0].mxu0
  %489 = vmatprep.mubr.bf16.mxu0 0
  %490 = vmatmul.mubr.bf16.gmra.mrb[0].mxu0 %v303
  %v491 = vpop.f32.mrb[0].mxu0
  %v492 = vadd.f32 %v91, %v491
  %v493 = vpop.f32.mrb[0].mxu0
  %v494 = vpop.f32.mrb[0].mxu0
  %v495 = vadd.f32 %v91, %v494
  %v496 = vpop.f32.mrb[0].mxu0
  %497 = vmatprep.mubr.bf16.mxu0 0
  %498 = vmatmul.mubr.bf16.gmra.mrb[0].mxu0 %v306
  %v499 = vpop.f32.mrb[0].mxu0
  %v500 = vadd.f32 %v91, %v499
  %v501 = vpop.f32.mrb[0].mxu0
  %v502 = vpop.f32.mrb[0].mxu0
  %v503 = vadd.f32 %v91, %v502
  %v504 = vpop.f32.mrb[0].mxu0
  %505 = vmatprep.mubr.bf16.mxu0 0
  %506 = vmatmul.mubr.bf16.gmra.mrb[0].mxu0 %v309
  %v507 = vpop.f32.mrb[0].mxu0
  %v508 = vadd.f32 %v91, %v507
  %v509 = vpop.f32.mrb[0].mxu0
  %v510 = vpop.f32.mrb[0].mxu0
  %v511 = vadd.f32 %v91, %v510
  %v512 = vpop.f32.mrb[0].mxu0
  %513 = vmatprep.mubr.bf16.mxu0 0
  %514 = vmatmul.mubr.bf16.gmra.mrb[0].mxu0 %v312
  %v515 = vpop.f32.mrb[0].mxu0
  %v516 = vadd.f32 %v91, %v515
  %v517 = vpop.f32.mrb[0].mxu0
  %v518 = vpop.f32.mrb[0].mxu0
  %v519 = vadd.f32 %v91, %v518
  %v520 = vpop.f32.mrb[0].mxu0
  %521 = vmatprep.mubr.bf16.mxu0 0
  %522 = vmatmul.mubr.bf16.gmra.mrb[0].mxu0 %v315
  %v523 = vpop.f32.mrb[0].mxu0
  %v524 = vadd.f32 %v91, %v523
  %v525 = vpop.f32.mrb[0].mxu0
  %v526 = vpop.f32.mrb[0].mxu0
  %v527 = vadd.f32 %v91, %v526
  %v528 = vpop.f32.mrb[0].mxu0
  %529 = vmatprep.mubr.bf16.mxu0 0
  %530 = vmatmul.mubr.bf16.gmra.mrb[0].mxu0 %v318
  %v531 = vpop.f32.mrb[0].mxu0
  %v532 = vadd.f32 %v91, %v531
  %v533 = vpop.f32.mrb[0].mxu0
  %v534 = vpop.f32.mrb[0].mxu0
  %v535 = vadd.f32 %v91, %v534
  %v536 = vpop.f32.mrb[0].mxu0
  %537 = vmatprep.mubr.bf16.mxu0 0
  %538 = vmatmul.mubr.bf16.gmra.mrb[0].mxu0 %v321
  %v539 = vpop.f32.mrb[0].mxu0
  %v540 = vadd.f32 %v91, %v539
  %v541 = vpop.f32.mrb[0].mxu0
  %v542 = vpop.f32.mrb[0].mxu0
  %v543 = vadd.f32 %v91, %v542
  %v544 = vpop.f32.mrb[0].mxu0
  %545 = vmatprep.mubr.bf16.mxu0 0
  %546 = vmatmul.mubr.bf16.gmra.mrb[0].mxu0 %v324
  %v547 = vpop.f32.mrb[0].mxu0
  %v548 = vadd.f32 %v91, %v547
  %v549 = vpop.f32.mrb[0].mxu0
  %v550 = vpop.f32.mrb[0].mxu0
  %v551 = vadd.f32 %v91, %v550
  %v552 = vpop.f32.mrb[0].mxu0
  %553 = vmatprep.mubr.bf16.mxu0 0
  %554 = vmatmul.mubr.bf16.gmra.mrb[0].mxu0 %v327
  %v555 = vpop.f32.mrb[0].mxu0
  %v556 = vadd.f32 %v91, %v555
  %v557 = vpop.f32.mrb[0].mxu0
  %v558 = vpop.f32.mrb[0].mxu0
  %v559 = vadd.f32 %v91, %v558
  %v560 = vpop.f32.mrb[0].mxu0
  %561 = vmatprep.mubr.bf16.mxu0 0
  %562 = vmatmul.mubr.bf16.gmra.mrb[0].mxu0 %v330
  %v563 = vpop.f32.mrb[0].mxu0
  %v564 = vadd.f32 %v91, %v563
  %v565 = vpop.f32.mrb[0].mxu0
  %v566 = vpop.f32.mrb[0].mxu0
  %v567 = vadd.f32 %v91, %v566
  %v568 = vpop.f32.mrb[0].mxu0
  %569 = vmatprep.mubr.bf16.mxu0 0
  %570 = vmatmul.mubr.bf16.gmra.mrb[0].mxu0 %v333
  %v571 = vpop.f32.mrb[0].mxu0
  %v572 = vadd.f32 %v91, %v571
  %v573 = vpop.f32.mrb[0].mxu0
  %v574 = vpop.f32.mrb[0].mxu0
  %v575 = vadd.f32 %v91, %v574
  %v576 = vpop.f32.mrb[0].mxu0
  %577 = vmatprep.mubr.bf16.mxu0 0
  %578 = vmatmul.mubr.bf16.gmra.mrb[0].mxu0 %v336
  %v579 = vpop.f32.mrb[0].mxu0
  %v580 = vadd.f32 %v91, %v579
  %v581 = vpop.f32.mrb[0].mxu0
  %v582 = vpop.f32.mrb[0].mxu0
  %v583 = vadd.f32 %v91, %v582
  %v584 = vpop.f32.mrb[0].mxu0
  %585 = vmatprep.mubr.bf16.mxu0 0
  %586 = vmatmul.mubr.bf16.gmra.mrb[0].mxu0 %v339
  %v587 = vpop.f32.mrb[0].mxu0
  %v588 = vadd.f32 %v91, %v587
  %v589 = vpop.f32.mrb[0].mxu0
  %v590 = vpop.f32.mrb[0].mxu0
  %v591 = vadd.f32 %v91, %v590
  %v592 = vpop.f32.mrb[0].mxu0
  %593 = vmatprep.mubr.bf16.mxu0 0
  %594 = vmatmul.mubr.bf16.gmra.mrb[0].mxu0 %v342
  %v595 = vpop.f32.mrb[0].mxu0
  %v596 = vadd.f32 %v91, %v595
  %v597 = vpop.f32.mrb[0].mxu0
  %v598 = vpop.f32.mrb[0].mxu0
  %v599 = vadd.f32 %v91, %v598
  %v600 = vpop.f32.mrb[0].mxu0
  %601 = vmatprep.mubr.bf16.mxu0 0
  %602 = vmatmul.mubr.bf16.gmra.mrb[0].mxu0 %v345
  %v603 = vpop.f32.mrb[0].mxu0
  %v604 = vadd.f32 %v91, %v603
  %v605 = vpop.f32.mrb[0].mxu0
  %v606 = vpop.f32.mrb[0].mxu0
  %v607 = vadd.f32 %v91, %v606
  %v608 = vpop.f32.mrb[0].mxu0
  %609 = vmatprep.mubr.bf16.mxu0 0
  %610 = vmatmul.mubr.bf16.gmra.mrb[0].mxu0 %v348
  %v611 = vpop.f32.mrb[0].mxu0
  %v612 = vadd.f32 %v91, %v611
  %v613 = vpop.f32.mrb[0].mxu0
  %v614 = vpop.f32.mrb[0].mxu0
  %v615 = vadd.f32 %v91, %v614
  %v616 = vpop.f32.mrb[0].mxu0
  %617 = vmatprep.mubr.bf16.mxu0 0
  %618 = vmatmul.mubr.bf16.gmra.mrb[0].mxu0 %v351
  %v619 = vpop.f32.mrb[0].mxu0
  %v620 = vadd.f32 %v91, %v619
  %v621 = vpop.f32.mrb[0].mxu0
  %v622 = vpop.f32.mrb[0].mxu0
  %v623 = vadd.f32 %v91, %v622
  %v624 = vpop.f32.mrb[0].mxu0
  %625 = vmatprep.mubr.bf16.mxu0 0
  %626 = vmatmul.mubr.bf16.gmra.mrb[0].mxu0 %v354
  %v627 = vpop.f32.mrb[0].mxu0
  %v628 = vadd.f32 %v91, %v627
  %v629 = vpop.f32.mrb[0].mxu0
  %v630 = vpop.f32.mrb[0].mxu0
  %v631 = vadd.f32 %v91, %v630
  %v632 = vpop.f32.mrb[0].mxu0
  %633 = vmatprep.mubr.bf16.mxu0 0
  %634 = vmatmul.mubr.bf16.gmra.mrb[0].mxu0 %v357
  %v635 = vpop.f32.mrb[0].mxu0
  %v636 = vadd.f32 %v91, %v635
  %v637 = vpop.f32.mrb[0].mxu0
  %v638 = vpop.f32.mrb[0].mxu0
  %v639 = vadd.f32 %v91, %v638
  %v640 = vpop.f32.mrb[0].mxu0
  %641 = vmatprep.mubr.bf16.mxu0 0
  %642 = vmatmul.mubr.bf16.gmra.mrb[0].mxu0 %v360
  %v643 = vpop.f32.mrb[0].mxu0
  %v644 = vadd.f32 %v91, %v643
  %v645 = vpop.f32.mrb[0].mxu0
  %v646 = vpop.f32.mrb[0].mxu0
  %v647 = vadd.f32 %v91, %v646
  %v648 = vpop.f32.mrb[0].mxu0
  %649 = vmatprep.mubr.bf16.mxu0 0
  %650 = vmatmul.mubr.bf16.gmra.mrb[0].mxu0 %v363
  %v651 = vpop.f32.mrb[0].mxu0
  %v652 = vadd.f32 %v91, %v651
  %v653 = vpop.f32.mrb[0].mxu0
  %v654 = vpop.f32.mrb[0].mxu0
  %v655 = vadd.f32 %v91, %v654
  %v656 = vpop.f32.mrb[0].mxu0
  %657 = vdwg.mxu0
  %658 = vst [vmem:[%s3] sm:$0xff] %v404
  %659 = vst [vmem:[%s3 + $0x8] sm:$0xff] %v407
  %660 = vst [vmem:[%s3 + $0x10] sm:$0xff] %v412
  %661 = vst [vmem:[%s3 + $0x18] sm:$0xff] %v415
  %662 = vst [vmem:[%s3 + $0x20] sm:$0xff] %v420
  %663 = vst [vmem:[%s3 + $0x28] sm:$0xff] %v423
  %664 = vst [vmem:[%s3 + $0x30] sm:$0xff] %v428
  %665 = vst [vmem:[%s3 + $0x38] sm:$0xff] %v431
  %666 = vst [vmem:[%s3 + $0x40] sm:$0xff] %v436
  %667 = vst [vmem:[%s3 + $0x48] sm:$0xff] %v439
  %668 = vst [vmem:[%s3 + $0x50] sm:$0xff] %v444
  %669 = vst [vmem:[%s3 + $0x58] sm:$0xff] %v447
  %670 = vst [vmem:[%s3 + $0x60] sm:$0xff] %v452
  %671 = vst [vmem:[%s3 + $0x68] sm:$0xff] %v455
  %672 = vst [vmem:[%s3 + $0x70] sm:$0xff] %v460
  %673 = vst [vmem:[%s3 + $0x78] sm:$0xff] %v463
  %674 = vst [vmem:[%s3 + $0x80] sm:$0xff] %v468
  %675 = vst [vmem:[%s3 + $0x88] sm:$0xff] %v471
  %676 = vst [vmem:[%s3 + $0x90] sm:$0xff] %v476
  %677 = vst [vmem:[%s3 + $0x98] sm:$0xff] %v479
  %678 = vst [vmem:[%s3 + $0xa0] sm:$0xff] %v484
  %679 = vst [vmem:[%s3 + $0xa8] sm:$0xff] %v487
  %680 = vst [vmem:[%s3 + $0xb0] sm:$0xff] %v492
  %681 = vst [vmem:[%s3 + $0xb8] sm:$0xff] %v495
  %682 = vst [vmem:[%s3 + $0xc0] sm:$0xff] %v500
  %683 = vst [vmem:[%s3 + $0xc8] sm:$0xff] %v503
  %684 = vst [vmem:[%s3 + $0xd0] sm:$0xff] %v508
  %685 = vst [vmem:[%s3 + $0xd8] sm:$0xff] %v511
  %686 = vst [vmem:[%s3 + $0xe0] sm:$0xff] %v516
  %687 = vst [vmem:[%s3 + $0xe8] sm:$0xff] %v519
  %688 = vst [vmem:[%s3 + $0xf0] sm:$0xff] %v524
  %689 = vst [vmem:[%s3 + $0xf8] sm:$0xff] %v527
  %690 = vst [vmem:[%s3 + $0x100] sm:$0xff] %v532
  %691 = vst [vmem:[%s3 + $0x108] sm:$0xff] %v535
  %692 = vst [vmem:[%s3 + $0x110] sm:$0xff] %v540
  %693 = vst [vmem:[%s3 + $0x118] sm:$0xff] %v543
  %694 = vst [vmem:[%s3 + $0x120] sm:$0xff] %v548
  %695 = vst [vmem:[%s3 + $0x128] sm:$0xff] %v551
  %696 = vst [vmem:[%s3 + $0x130] sm:$0xff] %v556
  %697 = vst [vmem:[%s3 + $0x138] sm:$0xff] %v559
  %698 = vst [vmem:[%s3 + $0x140] sm:$0xff] %v564
  %699 = vst [vmem:[%s3 + $0x148] sm:$0xff] %v567
  %700 = vst [vmem:[%s3 + $0x150] sm:$0xff] %v572
  %701 = vst [vmem:[%s3 + $0x158] sm:$0xff] %v575
  %702 = vst [vmem:[%s3 + $0x160] sm:$0xff] %v580
  %703 = vst [vmem:[%s3 + $0x168] sm:$0xff] %v583
  %704 = vst [vmem:[%s3 + $0x170] sm:$0xff] %v588
  %705 = vst [vmem:[%s3 + $0x178] sm:$0xff] %v591
  %706 = vst [vmem:[%s3 + $0x180] sm:$0xff] %v596
  %707 = vst [vmem:[%s3 + $0x188] sm:$0xff] %v599
  %708 = vst [vmem:[%s3 + $0x190] sm:$0xff] %v604
  %709 = vst [vmem:[%s3 + $0x198] sm:$0xff] %v607
  %710 = vst [vmem:[%s3 + $0x1a0] sm:$0xff] %v612
  %711 = vst [vmem:[%s3 + $0x1a8] sm:$0xff] %v615
  %712 = vst [vmem:[%s3 + $0x1b0] sm:$0xff] %v620
  %713 = vst [vmem:[%s3 + $0x1b8] sm:$0xff] %v623
  %714 = vst [vmem:[%s3 + $0x1c0] sm:$0xff] %v628
  %715 = vst [vmem:[%s3 + $0x1c8] sm:$0xff] %v631
  %716 = vst [vmem:[%s3 + $0x1d0] sm:$0xff] %v636
  %717 = vst [vmem:[%s3 + $0x1d8] sm:$0xff] %v639
  %718 = vst [vmem:[%s3 + $0x1e0] sm:$0xff] %v644
  %719 = vst [vmem:[%s3 + $0x1e8] sm:$0xff] %v647
  %720 = vst [vmem:[%s3 + $0x1f0] sm:$0xff] %v652
  %721 = vst [vmem:[%s3 + $0x1f8] sm:$0xff] %v655
  %v722 = vadd.f32 %v404, %v407
  %v723 = vadd.f32 %v722, %v412
  %v724 = vadd.f32 %v723, %v415
  %v725 = vadd.f32 %v724, %v420
  %v726 = vadd.f32 %v725, %v423
  %v727 = vadd.f32 %v726, %v428
  %v728 = vadd.f32 %v727, %v431
  %v729 = vadd.f32 %v728, %v436
  %v730 = vadd.f32 %v729, %v439
  %v731 = vadd.f32 %v730, %v444
  %v732 = vadd.f32 %v731, %v447
  %v733 = vadd.f32 %v732, %v452
  %v734 = vadd.f32 %v733, %v455
  %v735 = vadd.f32 %v734, %v460
  %v736 = vadd.f32 %v735, %v463
  %v737 = vadd.f32 %v736, %v468
  %v738 = vadd.f32 %v737, %v471
  %v739 = vadd.f32 %v738, %v476
  %v740 = vadd.f32 %v739, %v479
  %v741 = vadd.f32 %v740, %v484
  %v742 = vadd.f32 %v741, %v487
  %v743 = vadd.f32 %v742, %v492
  %v744 = vadd.f32 %v743, %v495
  %v745 = vadd.f32 %v744, %v500
  %v746 = vadd.f32 %v745, %v503
  %v747 = vadd.f32 %v746, %v508
  %v748 = vadd.f32 %v747, %v511
  %v749 = vadd.f32 %v748, %v516
  %v750 = vadd.f32 %v749, %v519
  %v751 = vadd.f32 %v750, %v524
  %v752 = vadd.f32 %v751, %v527
  %v753 = vadd.f32 %v752, %v532
  %v754 = vadd.f32 %v753, %v535
  %v755 = vadd.f32 %v754, %v540
  %v756 = vadd.f32 %v755, %v543
  %v757 = vadd.f32 %v756, %v548
  %v758 = vadd.f32 %v757, %v551
  %v759 = vadd.f32 %v758, %v556
  %v760 = vadd.f32 %v759, %v559
  %v761 = vadd.f32 %v760, %v564
  %v762 = vadd.f32 %v761, %v567
  %v763 = vadd.f32 %v762, %v572
  %v764 = vadd.f32 %v763, %v575
  %v765 = vadd.f32 %v764, %v580
  %v766 = vadd.f32 %v765, %v583
  %v767 = vadd.f32 %v766, %v588
  %v768 = vadd.f32 %v767, %v591
  %v769 = vadd.f32 %v768, %v596
  %v770 = vadd.f32 %v769, %v599
  %v771 = vadd.f32 %v770, %v604
  %v772 = vadd.f32 %v771, %v607
  %v773 = vadd.f32 %v772, %v612
  %v774 = vadd.f32 %v773, %v615
  %v775 = vadd.f32 %v774, %v620
  %v776 = vadd.f32 %v775, %v623
  %v777 = vadd.f32 %v776, %v628
  %v778 = vadd.f32 %v777, %v631
  %v779 = vadd.f32 %v778, %v636
  %v780 = vadd.f32 %v779, %v639
  %v781 = vadd.f32 %v780, %v644
  %v782 = vadd.f32 %v781, %v647
  %v783 = vadd.f32 %v782, %v652
  %v784 = vadd.f32 %v783, %v655
  %v785 = vrot.slane %v784, 4
  %v786 = vadd.f32 %v784, %v785
  %v787 = vrot.slane %v786, 2
  %v788 = vadd.f32 %v786, %v787
  %v789 = vrot.slane %v788, 1
  %v790 = vadd.f32 %v788, %v789
  %v791 = vmul.f32 %v404, %v404
  %v792 = vmul.f32 %v407, %v407
  %v793 = vmul.f32 %v412, %v412
  %v794 = vmul.f32 %v415, %v415
  %v795 = vmul.f32 %v420, %v420
  %v796 = vmul.f32 %v423, %v423
  %v797 = vmul.f32 %v428, %v428
  %v798 = vmul.f32 %v431, %v431
  %v799 = vmul.f32 %v436, %v436
  %v800 = vmul.f32 %v439, %v439
  %v801 = vmul.f32 %v444, %v444
  %v802 = vmul.f32 %v447, %v447
  %v803 = vmul.f32 %v452, %v452
  %v804 = vmul.f32 %v455, %v455
  %v805 = vmul.f32 %v460, %v460
  %v806 = vmul.f32 %v463, %v463
  %v807 = vmul.f32 %v468, %v468
  %v808 = vmul.f32 %v471, %v471
  %v809 = vmul.f32 %v476, %v476
  %v810 = vmul.f32 %v479, %v479
  %v811 = vmul.f32 %v484, %v484
  %v812 = vmul.f32 %v487, %v487
  %v813 = vmul.f32 %v492, %v492
  %v814 = vmul.f32 %v495, %v495
  %v815 = vmul.f32 %v500, %v500
  %v816 = vmul.f32 %v503, %v503
  %v817 = vmul.f32 %v508, %v508
  %v818 = vmul.f32 %v511, %v511
  %v819 = vmul.f32 %v516, %v516
  %v820 = vmul.f32 %v519, %v519
  %v821 = vmul.f32 %v524, %v524
  %v822 = vmul.f32 %v527, %v527
  %v823 = vmul.f32 %v532, %v532
  %v824 = vmul.f32 %v535, %v535
  %v825 = vmul.f32 %v540, %v540
  %v826 = vmul.f32 %v543, %v543
  %v827 = vmul.f32 %v548, %v548
  %v828 = vmul.f32 %v551, %v551
  %v829 = vmul.f32 %v556, %v556
  %v830 = vmul.f32 %v559, %v559
  %v831 = vmul.f32 %v564, %v564
  %v832 = vmul.f32 %v567, %v567
  %v833 = vmul.f32 %v572, %v572
  %v834 = vmul.f32 %v575, %v575
  %v835 = vmul.f32 %v580, %v580
  %v836 = vmul.f32 %v583, %v583
  %v837 = vmul.f32 %v588, %v588
  %v838 = vmul.f32 %v591, %v591
  %v839 = vmul.f32 %v596, %v596
  %v840 = vmul.f32 %v599, %v599
  %v841 = vmul.f32 %v604, %v604
  %v842 = vmul.f32 %v607, %v607
  %v843 = vmul.f32 %v612, %v612
  %v844 = vmul.f32 %v615, %v615
  %v845 = vmul.f32 %v620, %v620
  %v846 = vmul.f32 %v623, %v623
  %v847 = vmul.f32 %v628, %v628
  %v848 = vmul.f32 %v631, %v631
  %v849 = vmul.f32 %v636, %v636
  %v850 = vmul.f32 %v639, %v639
  %v851 = vmul.f32 %v644, %v644
  %v852 = vmul.f32 %v647, %v647
  %v853 = vmul.f32 %v652, %v652
  %v854 = vmul.f32 %v655, %v655
  %v855 = vadd.f32 %v791, %v792
  %v856 = vadd.f32 %v855, %v793
  %v857 = vadd.f32 %v856, %v794
  %v858 = vadd.f32 %v857, %v795
  %v859 = vadd.f32 %v858, %v796
  %v860 = vadd.f32 %v859, %v797
  %v861 = vadd.f32 %v860, %v798
  %v862 = vadd.f32 %v861, %v799
  %v863 = vadd.f32 %v862, %v800
  %v864 = vadd.f32 %v863, %v801
  %v865 = vadd.f32 %v864, %v802
  %v866 = vadd.f32 %v865, %v803
  %v867 = vadd.f32 %v866, %v804
  %v868 = vadd.f32 %v867, %v805
  %v869 = vadd.f32 %v868, %v806
  %v870 = vadd.f32 %v869, %v807
  %v871 = vadd.f32 %v870, %v808
  %v872 = vadd.f32 %v871, %v809
  %v873 = vadd.f32 %v872, %v810
  %v874 = vadd.f32 %v873, %v811
  %v875 = vadd.f32 %v874, %v812
  %v876 = vadd.f32 %v875, %v813
  %v877 = vadd.f32 %v876, %v814
  %v878 = vadd.f32 %v877, %v815
  %v879 = vadd.f32 %v878, %v816
  %v880 = vadd.f32 %v879, %v817
  %v881 = vadd.f32 %v880, %v818
  %v882 = vadd.f32 %v881, %v819
  %v883 = vadd.f32 %v882, %v820
  %v884 = vadd.f32 %v883, %v821
  %v885 = vadd.f32 %v884, %v822
  %v886 = vadd.f32 %v885, %v823
  %v887 = vadd.f32 %v886, %v824
  %v888 = vadd.f32 %v887, %v825
  %v889 = vadd.f32 %v888, %v826
  %v890 = vadd.f32 %v889, %v827
  %v891 = vadd.f32 %v890, %v828
  %v892 = vadd.f32 %v891, %v829
  %v893 = vadd.f32 %v892, %v830
  %v894 = vadd.f32 %v893, %v831
  %v895 = vadd.f32 %v894, %v832
  %v896 = vadd.f32 %v895, %v833
  %v897 = vadd.f32 %v896, %v834
  %v898 = vadd.f32 %v897, %v835
  %v899 = vadd.f32 %v898, %v836
  %v900 = vadd.f32 %v899, %v837
  %v901 = vadd.f32 %v900, %v838
  %v902 = vadd.f32 %v901, %v839
  %v903 = vadd.f32 %v902, %v840
  %v904 = vadd.f32 %v903, %v841
  %v905 = vadd.f32 %v904, %v842
  %v906 = vadd.f32 %v905, %v843
  %v907 = vadd.f32 %v906, %v844
  %v908 = vadd.f32 %v907, %v845
  %v909 = vadd.f32 %v908, %v846
  %v910 = vadd.f32 %v909, %v847
  %v911 = vadd.f32 %v910, %v848
  %v912 = vadd.f32 %v911, %v849
  %v913 = vadd.f32 %v912, %v850
  %v914 = vadd.f32 %v913, %v851
  %v915 = vadd.f32 %v914, %v852
  %v916 = vadd.f32 %v915, %v853
  %v917 = vadd.f32 %v916, %v854
  %v918 = vrot.slane %v917, 4
  %v919 = vadd.f32 %v917, %v918
  %v920 = vrot.slane %v919, 2
  %v921 = vadd.f32 %v919, %v920
  %v922 = vrot.slane %v921, 1
  %v923 = vadd.f32 %v921, %v922
  %v924 = vlaneseq
  %v925 = vshrl.u32 %v924, 7
  %vm926 = vcmp.eq.s32.totalorder %v925, 0
  %vm927 = vcmp.eq.s32.totalorder %v925, 1
  %v928 = vsel %vm927, %v923, 0.0
  %v929 = vsel %vm926, %v790, %v928
  %930 = vst [vmem:[%s4] sm:$0xff] %v929
  // Predicated region
  $region14: #{up_forward.8} parent=0 // pred_check
    _
  $region15: #{up_forward.8} parent=0 // pred_check_branch
    %932 = sbr.rel (0) target = $region17
  $region16: #{up_forward.8} parent=0 // pred_region
    _
  $region17: #{up_forward.8} parent=0 // pred_fallthru
    _
  // Predicated region
  $region18: #{up_forward.8} parent=0 // pred_check
    _
  $region19: #{up_forward.8} parent=0 // pred_check_branch
    %934 = sbr.rel (0) target = $region21
  $region20: #{up_forward.8} parent=0 // pred_region
    _
  $region21: #{up_forward.8} parent=0 // pred_fallthru
    _
  // Predicated region
  $region22: #{up_forward.8} parent=0 // pred_check
    _
  $region23: #{up_forward.8} parent=0 // pred_check_branch
    %936 = sbr.rel (0) target = $region25
  $region24: #{up_forward.8} parent=0 // pred_region
    _
  $region25: #{up_forward.8} parent=0 // pred_fallthru
    _
  // Predicated region
  $region26: #{up_forward.8} parent=0 // pred_check
    _
  $region27: #{up_forward.8} parent=0 // pred_check_branch
    %938 = sbr.rel (0) target = $region29
  $region28: #{up_forward.8} parent=0 // pred_region
    _
  $region29: #{up_forward.8} parent=0 // pred_fallthru
    _

</llo_original>
